<compile_context>
chip_gen: v5e
topology: v5e:2x2
jax: 0.10.0
libtpu: 0.0.40
codegen_flags: <defaults>
</compile_context>

<pallas_src>
import functools

import jax
import jax.numpy as jnp
from jax.experimental import pallas as pl
from jax.experimental.pallas import tpu as pltpu


def _round_up(x, m):
    return ((x + m - 1) // m) * m


def _branch4_kernel(x_ref, w_ref, gamma_ref, beta_ref, mask_ref, out_ref,
                    act_ref, slab_ref,
                    *, n_layers, c_sub, n_pos, margin, offsets, inv_count,
                    eps, slope):
    """All Conv3x3 -> BN(train) -> LeakyReLU layers fused, activation VMEM-resident.

    Layout: channels on sublanes (c_sub rows), flattened padded spatial
    positions (n_pos = N*(H+2)*(W+2)) on lanes, with `margin` zero lanes on
    each side so each 3x3 tap is a static lane-offset window.
    """
    mask = mask_ref[...]                      # (1, n_pos): 1 at valid (non-halo) positions
    gammas = gamma_ref[...]                   # (L, c_sub, 1)
    betas = beta_ref[...]                     # (L, c_sub, 1)

    # Zero once (24 KiB): keeps the lane margins (and, together with the
    # masking below, the 1-pixel halo) exactly zero for every layer's padding.
    act_ref[...] = jnp.zeros_like(act_ref)

    def layer(src_ref, l, last):
        # Stack the 9 lane-shifted windows on sublanes -> (9*c_sub, n_pos).
        for j, off in enumerate(offsets):
            lo = margin + off
            slab_ref[j * c_sub:(j + 1) * c_sub, :] = src_ref[:, lo:lo + n_pos]

        # Conv3x3 as one small matmul with the TRUE contraction K = 9*c_sub.
        # (Conv bias omitted: cancelled exactly by train-mode BN's mean subtract.)
        y = jnp.dot(w_ref[l], slab_ref[...],
                    preferred_element_type=jnp.float32)               # (c_sub, n_pos)

        # BatchNorm2d training-mode forward: per-channel batch mean / biased
        # variance over the N*H*W valid positions (halo positions masked out).
        mean = jnp.sum(y * mask, axis=1, keepdims=True) * inv_count   # (c_sub, 1)
        d = (y - mean) * mask
        var = jnp.sum(d * d, axis=1, keepdims=True) * inv_count       # (c_sub, 1)
        scale = gammas[l] * jax.lax.rsqrt(var + eps)                  # (c_sub, 1)
        shift = betas[l] - mean * scale
        y = y * scale + shift                                         # fused BN epilogue
        if not last:
            y = jnp.maximum(y, slope * y)                             # LeakyReLU(0.01)
        return y * mask                                               # re-zero halo / pad rows

    y = layer(x_ref, 0, last=(n_layers == 1))
    for l in range(1, n_layers):
        act_ref[:, margin:margin + n_pos] = y        # activation stays in VMEM
        y = layer(act_ref, l, last=(l == n_layers - 1))

    out_ref[...] = y


def branch4_forward(x_nchw, params):
    """params: list of (w_oihw (Cout,Cin,3,3), bias (Cout,), gamma (Cout,), beta (Cout,))."""
    N, Cin, H, W = x_nchw.shape
    Cout = params[0][0].shape[0]
    L = len(params)
    Hp, Wp = H + 2, W + 2
    n_pos = N * Hp * Wp                           # flattened padded spatial positions
    c_sub = _round_up(max(Cin, Cout), 8)          # channels packed on sublanes
    margin = max(32, _round_up(Wp + 1, 8))        # >= largest 3x3 tap offset (Wp+1)
    lane_w = _round_up(margin + n_pos + margin, 128)

    # NCHW -> (C, N*Hp*Wp): zero halo, channel-pad to c_sub, zero lane margins.
    xpad = jnp.pad(x_nchw, ((0, 0), (0, c_sub - Cin), (1, 1), (1, 1)))
    x_cp = jnp.transpose(xpad, (1, 0, 2, 3)).reshape(c_sub, n_pos)
    x_slab = jnp.pad(x_cp, ((0, 0), (margin, lane_w - margin - n_pos)))

    # Weights -> (c_sub, 9*c_sub) with column index (kh*3+kw)*c_sub + ci,
    # matching the slab's sublane stacking order; gamma/beta as (c_sub, 1).
    ws, gs, bs = [], [], []
    for (w_oihw, _bias, gamma, beta) in params:   # conv bias folded away (BN cancels it)
        co, ci = w_oihw.shape[0], w_oihw.shape[1]
        wt = jnp.transpose(w_oihw, (0, 2, 3, 1))                          # (co,3,3,ci)
        wt = jnp.pad(wt, ((0, c_sub - co), (0, 0), (0, 0), (0, c_sub - ci)))
        ws.append(wt.reshape(c_sub, 9 * c_sub))
        gs.append(jnp.pad(gamma, (0, c_sub - co)).reshape(c_sub, 1))
        bs.append(jnp.pad(beta, (0, c_sub - co)).reshape(c_sub, 1))
    w_all = jnp.stack(ws)                                                 # (L, c_sub, 9*c_sub)
    g_all = jnp.stack(gs)                                                 # (L, c_sub, 1)
    b_all = jnp.stack(bs)                                                 # (L, c_sub, 1)

    # Valid-position mask: interior of each padded plane.
    mask = jnp.zeros((N, Hp, Wp), jnp.float32)
    mask = mask.at[:, 1:H + 1, 1:W + 1].set(1.0).reshape(1, n_pos)

    # Lane offset of tap (kh, kw) in the flattened padded layout.
    offsets = tuple((kh - 1) * Wp + (kw - 1) for kh in range(3) for kw in range(3))

    kernel = functools.partial(
        _branch4_kernel, n_layers=L, c_sub=c_sub, n_pos=n_pos, margin=margin,
        offsets=offsets, inv_count=1.0 / float(N * H * W), eps=1e-5, slope=0.01)

    vmem = pl.BlockSpec(memory_space=pltpu.MemorySpace.VMEM)
    y = pl.pallas_call(
        kernel,
        out_shape=jax.ShapeDtypeStruct((c_sub, n_pos), jnp.float32),
        in_specs=[vmem, vmem, vmem, vmem, vmem],
        out_specs=vmem,
        scratch_shapes=[
            pltpu.VMEM((c_sub, lane_w), jnp.float32),        # resident activation (+margins)
            pltpu.VMEM((9 * c_sub, n_pos), jnp.float32),     # 9-window sublane-stacked slab
        ],
        compiler_params=pltpu.CompilerParams(vmem_limit_bytes=16 * 1024 * 1024),
    )(x_slab, w_all, g_all, b_all, mask)

    y = y.reshape(c_sub, N, Hp, Wp)[:Cout, :, 1:H + 1, 1:W + 1]           # (Cout,N,H,W)
    return jnp.transpose(y, (1, 0, 2, 3))                                 # NCHW


# ------------------------- pure-JAX reference ------------------------------ #
def _ref_layer(x_nhwc, w_oihw, bias, gamma, beta, *, apply_act):
    co = w_oihw.shape[0]
    w_hwio = jnp.transpose(w_oihw, (2, 3, 1, 0))
    y = jax.lax.conv_general_dilated(
        x_nhwc, w_hwio, window_strides=(1, 1), padding="SAME",
        dimension_numbers=("NHWC", "HWIO", "NHWC"))
    y = y + bias.reshape(1, 1, 1, co)
    mean = jnp.mean(y, axis=(0, 1, 2), keepdims=True)
    var = jnp.mean((y - mean) ** 2, axis=(0, 1, 2), keepdims=True)
    y = (y - mean) * jax.lax.rsqrt(var + 1e-5)
    y = y * gamma.reshape(1, 1, 1, co) + beta.reshape(1, 1, 1, co)
    if apply_act:
        y = jnp.where(y >= 0, y, 0.01 * y)
    return y


def branch4_reference(x_nchw, params):
    x = jnp.transpose(x_nchw, (0, 2, 3, 1))
    for i, (w, b, g, be) in enumerate(params):
        x = _ref_layer(x, w, b, g, be, apply_act=(i < len(params) - 1))
    return jnp.transpose(x, (0, 3, 1, 2))


# ------------------------------- main --------------------------------------- #
def _make_params(key, in_ch, out_ch, n_layers=4):
    params = []
    cin = in_ch
    for _ in range(n_layers):
        key, kw, kb, kg, kbe = jax.random.split(key, 5)
        w = jax.random.normal(kw, (out_ch, cin, 3, 3), jnp.float32) * 0.2
        bias = jax.random.normal(kb, (out_ch,), jnp.float32) * 0.1
        gamma = 1.0 + 0.1 * jax.random.normal(kg, (out_ch,), jnp.float32)
        beta = 0.1 * jax.random.normal(kbe, (out_ch,), jnp.float32)
        params.append((w, bias, gamma, beta))
        cin = out_ch
    return params


if __name__ == "__main__":
    key = jax.random.PRNGKey(0)
    k_x, k_p = jax.random.split(key)

    N, in_ch, out_ch, H, W = 2, 4, 8, 16, 16
    x = jax.random.normal(k_x, (N, in_ch, H, W), jnp.float32)   # NCHW, like PyTorch
    params = _make_params(k_p, in_ch, out_ch)

    out = jax.block_until_ready(branch4_forward(x, params))
    ref = jax.block_until_ready(branch4_reference(x, params))

    assert out.shape == (N, out_ch, H, W), out.shape
    assert jnp.allclose(out, ref, rtol=2e-4, atol=2e-4), (
        float(jnp.max(jnp.abs(out - ref))))
    print("KERNEL_OK")
</pallas_src>

<mosaic_0001>
module attributes {stable_mosaic.version = 11 : i64} {
  func.func @_branch4_kernel(%arg0: memref<8x768xf32, #tpu.memory_space<vmem>>, %arg1: memref<4x8x72xf32, #tpu.memory_space<vmem>>, %arg2: memref<4x8x1xf32, #tpu.memory_space<vmem>>, %arg3: memref<4x8x1xf32, #tpu.memory_space<vmem>>, %arg4: memref<1x648xf32, #tpu.memory_space<vmem>>, %arg5: memref<8x648xf32, #tpu.memory_space<vmem>>, %arg6: memref<8x768xf32, #tpu.memory_space<vmem>>, %arg7: memref<72x648xf32, #tpu.memory_space<vmem>>) attributes {dimension_semantics = [], scalar_prefetch = 0 : i64, scratch_operands = 2 : i64, tpu.core_type = #tpu.core_type<tc>} {
    %c0 = arith.constant 0 : index
    %c0_0 = arith.constant 0 : index
    %0 = vector.load %arg4[%c0, %c0_0] : memref<1x648xf32, #tpu.memory_space<vmem>>, vector<1x648xf32>
    %c0_1 = arith.constant 0 : index
    %c0_2 = arith.constant 0 : index
    %c0_3 = arith.constant 0 : index
    %1 = vector.load %arg2[%c0_1, %c0_2, %c0_3] : memref<4x8x1xf32, #tpu.memory_space<vmem>>, vector<4x8x1xf32>
    %c0_4 = arith.constant 0 : index
    %c0_5 = arith.constant 0 : index
    %c0_6 = arith.constant 0 : index
    %2 = vector.load %arg3[%c0_4, %c0_5, %c0_6] : memref<4x8x1xf32, #tpu.memory_space<vmem>>, vector<4x8x1xf32>
    %cst = arith.constant 0.000000e+00 : f32
    %3 = vector.broadcast %cst : f32 to vector<8x768xf32>
    %c0_7 = arith.constant 0 : index
    %c0_8 = arith.constant 0 : index
    %4 = vector.load %arg6[%c0_7, %c0_8] : memref<8x768xf32, #tpu.memory_space<vmem>>, vector<8x768xf32>
    tpu.vector_store %arg6[%c0_7, %c0_8], %3 {strides = array<i32>} : memref<8x768xf32, #tpu.memory_space<vmem>>, vector<8x768xf32>,
    %c0_9 = arith.constant 0 : index
    %c13 = arith.constant 13 : index
    %5 = vector.load %arg0[%c0_9, %c13] : memref<8x768xf32, #tpu.memory_space<vmem>>, vector<8x648xf32>
    %c0_10 = arith.constant 0 : index
    %c0_11 = arith.constant 0 : index
    %6 = vector.load %arg7[%c0_10, %c0_11] : memref<72x648xf32, #tpu.memory_space<vmem>>, vector<8x648xf32>
    tpu.vector_store %arg7[%c0_10, %c0_11], %5 {strides = array<i32>} : memref<72x648xf32, #tpu.memory_space<vmem>>, vector<8x648xf32>,
    %c0_12 = arith.constant 0 : index
    %c14 = arith.constant 14 : index
    %7 = vector.load %arg0[%c0_12, %c14] : memref<8x768xf32, #tpu.memory_space<vmem>>, vector<8x648xf32>
    %c8 = arith.constant 8 : index
    %c0_13 = arith.constant 0 : index
    %8 = vector.load %arg7[%c8, %c0_13] : memref<72x648xf32, #tpu.memory_space<vmem>>, vector<8x648xf32>
    tpu.vector_store %arg7[%c8, %c0_13], %7 {strides = array<i32>} : memref<72x648xf32, #tpu.memory_space<vmem>>, vector<8x648xf32>,
    %c0_14 = arith.constant 0 : index
    %c15 = arith.constant 15 : index
    %9 = vector.load %arg0[%c0_14, %c15] : memref<8x768xf32, #tpu.memory_space<vmem>>, vector<8x648xf32>
    %c16 = arith.constant 16 : index
    %c0_15 = arith.constant 0 : index
    %10 = vector.load %arg7[%c16, %c0_15] : memref<72x648xf32, #tpu.memory_space<vmem>>, vector<8x648xf32>
    tpu.vector_store %arg7[%c16, %c0_15], %9 {strides = array<i32>} : memref<72x648xf32, #tpu.memory_space<vmem>>, vector<8x648xf32>,
    %c0_16 = arith.constant 0 : index
    %c31 = arith.constant 31 : index
    %11 = vector.load %arg0[%c0_16, %c31] : memref<8x768xf32, #tpu.memory_space<vmem>>, vector<8x648xf32>
    %c24 = arith.constant 24 : index
    %c0_17 = arith.constant 0 : index
    %12 = vector.load %arg7[%c24, %c0_17] : memref<72x648xf32, #tpu.memory_space<vmem>>, vector<8x648xf32>
    tpu.vector_store %arg7[%c24, %c0_17], %11 {strides = array<i32>} : memref<72x648xf32, #tpu.memory_space<vmem>>, vector<8x648xf32>,
    %c0_18 = arith.constant 0 : index
    %c32 = arith.constant 32 : index
    %13 = vector.load %arg0[%c0_18, %c32] : memref<8x768xf32, #tpu.memory_space<vmem>>, vector<8x648xf32>
    %c32_19 = arith.constant 32 : index
    %c0_20 = arith.constant 0 : index
    %14 = vector.load %arg7[%c32_19, %c0_20] : memref<72x648xf32, #tpu.memory_space<vmem>>, vector<8x648xf32>
    tpu.vector_store %arg7[%c32_19, %c0_20], %13 {strides = array<i32>} : memref<72x648xf32, #tpu.memory_space<vmem>>, vector<8x648xf32>,
    %c0_21 = arith.constant 0 : index
    %c33 = arith.constant 33 : index
    %15 = vector.load %arg0[%c0_21, %c33] : memref<8x768xf32, #tpu.memory_space<vmem>>, vector<8x648xf32>
    %c40 = arith.constant 40 : index
    %c0_22 = arith.constant 0 : index
    %16 = vector.load %arg7[%c40, %c0_22] : memref<72x648xf32, #tpu.memory_space<vmem>>, vector<8x648xf32>
    tpu.vector_store %arg7[%c40, %c0_22], %15 {strides = array<i32>} : memref<72x648xf32, #tpu.memory_space<vmem>>, vector<8x648xf32>,
    %c0_23 = arith.constant 0 : index
    %c49 = arith.constant 49 : index
    %17 = vector.load %arg0[%c0_23, %c49] : memref<8x768xf32, #tpu.memory_space<vmem>>, vector<8x648xf32>
    %c48 = arith.constant 48 : index
    %c0_24 = arith.constant 0 : index
    %18 = vector.load %arg7[%c48, %c0_24] : memref<72x648xf32, #tpu.memory_space<vmem>>, vector<8x648xf32>
    tpu.vector_store %arg7[%c48, %c0_24], %17 {strides = array<i32>} : memref<72x648xf32, #tpu.memory_space<vmem>>, vector<8x648xf32>,
    %c0_25 = arith.constant 0 : index
    %c50 = arith.constant 50 : index
    %19 = vector.load %arg0[%c0_25, %c50] : memref<8x768xf32, #tpu.memory_space<vmem>>, vector<8x648xf32>
    %c56 = arith.constant 56 : index
    %c0_26 = arith.constant 0 : index
    %20 = vector.load %arg7[%c56, %c0_26] : memref<72x648xf32, #tpu.memory_space<vmem>>, vector<8x648xf32>
    tpu.vector_store %arg7[%c56, %c0_26], %19 {strides = array<i32>} : memref<72x648xf32, #tpu.memory_space<vmem>>, vector<8x648xf32>,
    %c0_27 = arith.constant 0 : index
    %c51 = arith.constant 51 : index
    %21 = vector.load %arg0[%c0_27, %c51] : memref<8x768xf32, #tpu.memory_space<vmem>>, vector<8x648xf32>
    %c64 = arith.constant 64 : index
    %c0_28 = arith.constant 0 : index
    %22 = vector.load %arg7[%c64, %c0_28] : memref<72x648xf32, #tpu.memory_space<vmem>>, vector<8x648xf32>
    tpu.vector_store %arg7[%c64, %c0_28], %21 {strides = array<i32>} : memref<72x648xf32, #tpu.memory_space<vmem>>, vector<8x648xf32>,
    %c0_29 = arith.constant 0 : index
    %c0_30 = arith.constant 0 : index
    %c0_31 = arith.constant 0 : index
    %23 = vector.load %arg1[%c0_29, %c0_30, %c0_31] : memref<4x8x72xf32, #tpu.memory_space<vmem>>, vector<1x8x72xf32>
    %24 = vector.shape_cast %23 : vector<1x8x72xf32> to vector<8x72xf32>
    %c0_32 = arith.constant 0 : index
    %c0_33 = arith.constant 0 : index
    %25 = vector.load %arg7[%c0_32, %c0_33] : memref<72x648xf32, #tpu.memory_space<vmem>>, vector<72x648xf32>
    %cst_34 = arith.constant dense<0.000000e+00> : vector<8x648xf32>
    %26 = tpu.matmul %24, %25, %cst_34 {dimension_numbers = #tpu.dot_dimension_numbers<[1], [0], [0], [1], [0, 0, 1, 1], [], []>} : vector<8x72xf32>, vector<72x648xf32>, vector<8x648xf32> -> vector<8x648xf32>
    %27 = vector.broadcast %0 : vector<1x648xf32> to vector<8x648xf32>
    %28 = arith.mulf %26, %27 : vector<8x648xf32>
    %cst_35 = arith.constant dense<0.000000e+00> : vector<8xf32>
    %29 = vector.multi_reduction <add>, %28, %cst_35 [1] : vector<8x648xf32> to vector<8xf32>
    %30 = vector.shape_cast %29 : vector<8xf32> to vector<8x1xf32>
    %cst_36 = arith.constant 0.001953125 : f32
    %31 = vector.broadcast %cst_36 : f32 to vector<8x1xf32>
    %32 = arith.mulf %30, %31 : vector<8x1xf32>
    %33 = vector.broadcast %32 : vector<8x1xf32> to vector<8x648xf32>
    %34 = arith.subf %26, %33 : vector<8x648xf32>
    %35 = vector.broadcast %0 : vector<1x648xf32> to vector<8x648xf32>
    %36 = arith.mulf %34, %35 : vector<8x648xf32>
    %37 = arith.mulf %36, %36 : vector<8x648xf32>
    %cst_37 = arith.constant dense<0.000000e+00> : vector<8xf32>
    %38 = vector.multi_reduction <add>, %37, %cst_37 [1] : vector<8x648xf32> to vector<8xf32>
    %39 = vector.shape_cast %38 : vector<8xf32> to vector<8x1xf32>
    %cst_38 = arith.constant 0.001953125 : f32
    %40 = vector.broadcast %cst_38 : f32 to vector<8x1xf32>
    %41 = arith.mulf %39, %40 : vector<8x1xf32>
    %42 = vector.extract_strided_slice %1 {offsets = [0, 0, 0], sizes = [1, 8, 1], strides = [1, 1, 1]} : vector<4x8x1xf32> to vector<1x8x1xf32>
    %43 = vector.shape_cast %42 : vector<1x8x1xf32> to vector<8x1xf32>
    %cst_39 = arith.constant 9.99999974E-6 : f32
    %44 = vector.broadcast %cst_39 : f32 to vector<8x1xf32>
    %45 = arith.addf %41, %44 : vector<8x1xf32>
    %46 = math.rsqrt %45 : vector<8x1xf32>
    %47 = arith.mulf %43, %46 : vector<8x1xf32>
    %48 = vector.extract_strided_slice %2 {offsets = [0, 0, 0], sizes = [1, 8, 1], strides = [1, 1, 1]} : vector<4x8x1xf32> to vector<1x8x1xf32>
    %49 = vector.shape_cast %48 : vector<1x8x1xf32> to vector<8x1xf32>
    %50 = arith.mulf %32, %47 : vector<8x1xf32>
    %51 = arith.subf %49, %50 : vector<8x1xf32>
    %52 = vector.broadcast %47 : vector<8x1xf32> to vector<8x648xf32>
    %53 = arith.mulf %26, %52 : vector<8x648xf32>
    %54 = vector.broadcast %51 : vector<8x1xf32> to vector<8x648xf32>
    %55 = arith.addf %53, %54 : vector<8x648xf32>
    %cst_40 = arith.constant 0.00999999977 : f32
    %56 = vector.broadcast %cst_40 : f32 to vector<8x648xf32>
    %57 = arith.mulf %56, %55 : vector<8x648xf32>
    %58 = arith.maximumf %55, %57 : vector<8x648xf32>
    %59 = vector.broadcast %0 : vector<1x648xf32> to vector<8x648xf32>
    %60 = arith.mulf %58, %59 : vector<8x648xf32>
    %c0_41 = arith.constant 0 : index
    %c32_42 = arith.constant 32 : index
    %61 = vector.load %arg6[%c0_41, %c32_42] : memref<8x768xf32, #tpu.memory_space<vmem>>, vector<8x648xf32>
    tpu.vector_store %arg6[%c0_41, %c32_42], %60 {strides = array<i32>} : memref<8x768xf32, #tpu.memory_space<vmem>>, vector<8x648xf32>,
    %c0_43 = arith.constant 0 : index
    %c13_44 = arith.constant 13 : index
    %62 = vector.load %arg6[%c0_43, %c13_44] : memref<8x768xf32, #tpu.memory_space<vmem>>, vector<8x648xf32>
    %c0_45 = arith.constant 0 : index
    %c0_46 = arith.constant 0 : index
    %63 = vector.load %arg7[%c0_45, %c0_46] : memref<72x648xf32, #tpu.memory_space<vmem>>, vector<8x648xf32>
    tpu.vector_store %arg7[%c0_45, %c0_46], %62 {strides = array<i32>} : memref<72x648xf32, #tpu.memory_space<vmem>>, vector<8x648xf32>,
    %c0_47 = arith.constant 0 : index
    %c14_48 = arith.constant 14 : index
    %64 = vector.load %arg6[%c0_47, %c14_48] : memref<8x768xf32, #tpu.memory_space<vmem>>, vector<8x648xf32>
    %c8_49 = arith.constant 8 : index
    %c0_50 = arith.constant 0 : index
    %65 = vector.load %arg7[%c8_49, %c0_50] : memref<72x648xf32, #tpu.memory_space<vmem>>, vector<8x648xf32>
    tpu.vector_store %arg7[%c8_49, %c0_50], %64 {strides = array<i32>} : memref<72x648xf32, #tpu.memory_space<vmem>>, vector<8x648xf32>,
    %c0_51 = arith.constant 0 : index
    %c15_52 = arith.constant 15 : index
    %66 = vector.load %arg6[%c0_51, %c15_52] : memref<8x768xf32, #tpu.memory_space<vmem>>, vector<8x648xf32>
    %c16_53 = arith.constant 16 : index
    %c0_54 = arith.constant 0 : index
    %67 = vector.load %arg7[%c16_53, %c0_54] : memref<72x648xf32, #tpu.memory_space<vmem>>, vector<8x648xf32>
    tpu.vector_store %arg7[%c16_53, %c0_54], %66 {strides = array<i32>} : memref<72x648xf32, #tpu.memory_space<vmem>>, vector<8x648xf32>,
    %c0_55 = arith.constant 0 : index
    %c31_56 = arith.constant 31 : index
    %68 = vector.load %arg6[%c0_55, %c31_56] : memref<8x768xf32, #tpu.memory_space<vmem>>, vector<8x648xf32>
    %c24_57 = arith.constant 24 : index
    %c0_58 = arith.constant 0 : index
    %69 = vector.load %arg7[%c24_57, %c0_58] : memref<72x648xf32, #tpu.memory_space<vmem>>, vector<8x648xf32>
    tpu.vector_store %arg7[%c24_57, %c0_58], %68 {strides = array<i32>} : memref<72x648xf32, #tpu.memory_space<vmem>>, vector<8x648xf32>,
    %c0_59 = arith.constant 0 : index
    %c32_60 = arith.constant 32 : index
    %70 = vector.load %arg6[%c0_59, %c32_60] : memref<8x768xf32, #tpu.memory_space<vmem>>, vector<8x648xf32>
    %c32_61 = arith.constant 32 : index
    %c0_62 = arith.constant 0 : index
    %71 = vector.load %arg7[%c32_61, %c0_62] : memref<72x648xf32, #tpu.memory_space<vmem>>, vector<8x648xf32>
    tpu.vector_store %arg7[%c32_61, %c0_62], %70 {strides = array<i32>} : memref<72x648xf32, #tpu.memory_space<vmem>>, vector<8x648xf32>,
    %c0_63 = arith.constant 0 : index
    %c33_64 = arith.constant 33 : index
    %72 = vector.load %arg6[%c0_63, %c33_64] : memref<8x768xf32, #tpu.memory_space<vmem>>, vector<8x648xf32>
    %c40_65 = arith.constant 40 : index
    %c0_66 = arith.constant 0 : index
    %73 = vector.load %arg7[%c40_65, %c0_66] : memref<72x648xf32, #tpu.memory_space<vmem>>, vector<8x648xf32>
    tpu.vector_store %arg7[%c40_65, %c0_66], %72 {strides = array<i32>} : memref<72x648xf32, #tpu.memory_space<vmem>>, vector<8x648xf32>,
    %c0_67 = arith.constant 0 : index
    %c49_68 = arith.constant 49 : index
    %74 = vector.load %arg6[%c0_67, %c49_68] : memref<8x768xf32, #tpu.memory_space<vmem>>, vector<8x648xf32>
    %c48_69 = arith.constant 48 : index
    %c0_70 = arith.constant 0 : index
    %75 = vector.load %arg7[%c48_69, %c0_70] : memref<72x648xf32, #tpu.memory_space<vmem>>, vector<8x648xf32>
    tpu.vector_store %arg7[%c48_69, %c0_70], %74 {strides = array<i32>} : memref<72x648xf32, #tpu.memory_space<vmem>>, vector<8x648xf32>,
    %c0_71 = arith.constant 0 : index
    %c50_72 = arith.constant 50 : index
    %76 = vector.load %arg6[%c0_71, %c50_72] : memref<8x768xf32, #tpu.memory_space<vmem>>, vector<8x648xf32>
    %c56_73 = arith.constant 56 : index
    %c0_74 = arith.constant 0 : index
    %77 = vector.load %arg7[%c56_73, %c0_74] : memref<72x648xf32, #tpu.memory_space<vmem>>, vector<8x648xf32>
    tpu.vector_store %arg7[%c56_73, %c0_74], %76 {strides = array<i32>} : memref<72x648xf32, #tpu.memory_space<vmem>>, vector<8x648xf32>,
    %c0_75 = arith.constant 0 : index
    %c51_76 = arith.constant 51 : index
    %78 = vector.load %arg6[%c0_75, %c51_76] : memref<8x768xf32, #tpu.memory_space<vmem>>, vector<8x648xf32>
    %c64_77 = arith.constant 64 : index
    %c0_78 = arith.constant 0 : index
    %79 = vector.load %arg7[%c64_77, %c0_78] : memref<72x648xf32, #tpu.memory_space<vmem>>, vector<8x648xf32>
    tpu.vector_store %arg7[%c64_77, %c0_78], %78 {strides = array<i32>} : memref<72x648xf32, #tpu.memory_space<vmem>>, vector<8x648xf32>,
    %c1 = arith.constant 1 : index
    %c0_79 = arith.constant 0 : index
    %c0_80 = arith.constant 0 : index
    %80 = vector.load %arg1[%c1, %c0_79, %c0_80] : memref<4x8x72xf32, #tpu.memory_space<vmem>>, vector<1x8x72xf32>
    %81 = vector.shape_cast %80 : vector<1x8x72xf32> to vector<8x72xf32>
    %c0_81 = arith.constant 0 : index
    %c0_82 = arith.constant 0 : index
    %82 = vector.load %arg7[%c0_81, %c0_82] : memref<72x648xf32, #tpu.memory_space<vmem>>, vector<72x648xf32>
    %cst_83 = arith.constant dense<0.000000e+00> : vector<8x648xf32>
    %83 = tpu.matmul %81, %82, %cst_83 {dimension_numbers = #tpu.dot_dimension_numbers<[1], [0], [0], [1], [0, 0, 1, 1], [], []>} : vector<8x72xf32>, vector<72x648xf32>, vector<8x648xf32> -> vector<8x648xf32>
    %84 = vector.broadcast %0 : vector<1x648xf32> to vector<8x648xf32>
    %85 = arith.mulf %83, %84 : vector<8x648xf32>
    %cst_84 = arith.constant dense<0.000000e+00> : vector<8xf32>
    %86 = vector.multi_reduction <add>, %85, %cst_84 [1] : vector<8x648xf32> to vector<8xf32>
    %87 = vector.shape_cast %86 : vector<8xf32> to vector<8x1xf32>
    %cst_85 = arith.constant 0.001953125 : f32
    %88 = vector.broadcast %cst_85 : f32 to vector<8x1xf32>
    %89 = arith.mulf %87, %88 : vector<8x1xf32>
    %90 = vector.broadcast %89 : vector<8x1xf32> to vector<8x648xf32>
    %91 = arith.subf %83, %90 : vector<8x648xf32>
    %92 = vector.broadcast %0 : vector<1x648xf32> to vector<8x648xf32>
    %93 = arith.mulf %91, %92 : vector<8x648xf32>
    %94 = arith.mulf %93, %93 : vector<8x648xf32>
    %cst_86 = arith.constant dense<0.000000e+00> : vector<8xf32>
    %95 = vector.multi_reduction <add>, %94, %cst_86 [1] : vector<8x648xf32> to vector<8xf32>
    %96 = vector.shape_cast %95 : vector<8xf32> to vector<8x1xf32>
    %cst_87 = arith.constant 0.001953125 : f32
    %97 = vector.broadcast %cst_87 : f32 to vector<8x1xf32>
    %98 = arith.mulf %96, %97 : vector<8x1xf32>
    %99 = vector.extract_strided_slice %1 {offsets = [1, 0, 0], sizes = [1, 8, 1], strides = [1, 1, 1]} : vector<4x8x1xf32> to vector<1x8x1xf32>
    %100 = vector.shape_cast %99 : vector<1x8x1xf32> to vector<8x1xf32>
    %cst_88 = arith.constant 9.99999974E-6 : f32
    %101 = vector.broadcast %cst_88 : f32 to vector<8x1xf32>
    %102 = arith.addf %98, %101 : vector<8x1xf32>
    %103 = math.rsqrt %102 : vector<8x1xf32>
    %104 = arith.mulf %100, %103 : vector<8x1xf32>
    %105 = vector.extract_strided_slice %2 {offsets = [1, 0, 0], sizes = [1, 8, 1], strides = [1, 1, 1]} : vector<4x8x1xf32> to vector<1x8x1xf32>
    %106 = vector.shape_cast %105 : vector<1x8x1xf32> to vector<8x1xf32>
    %107 = arith.mulf %89, %104 : vector<8x1xf32>
    %108 = arith.subf %106, %107 : vector<8x1xf32>
    %109 = vector.broadcast %104 : vector<8x1xf32> to vector<8x648xf32>
    %110 = arith.mulf %83, %109 : vector<8x648xf32>
    %111 = vector.broadcast %108 : vector<8x1xf32> to vector<8x648xf32>
    %112 = arith.addf %110, %111 : vector<8x648xf32>
    %cst_89 = arith.constant 0.00999999977 : f32
    %113 = vector.broadcast %cst_89 : f32 to vector<8x648xf32>
    %114 = arith.mulf %113, %112 : vector<8x648xf32>
    %115 = arith.maximumf %112, %114 : vector<8x648xf32>
    %116 = vector.broadcast %0 : vector<1x648xf32> to vector<8x648xf32>
    %117 = arith.mulf %115, %116 : vector<8x648xf32>
    %c0_90 = arith.constant 0 : index
    %c32_91 = arith.constant 32 : index
    %118 = vector.load %arg6[%c0_90, %c32_91] : memref<8x768xf32, #tpu.memory_space<vmem>>, vector<8x648xf32>
    tpu.vector_store %arg6[%c0_90, %c32_91], %117 {strides = array<i32>} : memref<8x768xf32, #tpu.memory_space<vmem>>, vector<8x648xf32>,
    %c0_92 = arith.constant 0 : index
    %c13_93 = arith.constant 13 : index
    %119 = vector.load %arg6[%c0_92, %c13_93] : memref<8x768xf32, #tpu.memory_space<vmem>>, vector<8x648xf32>
    %c0_94 = arith.constant 0 : index
    %c0_95 = arith.constant 0 : index
    %120 = vector.load %arg7[%c0_94, %c0_95] : memref<72x648xf32, #tpu.memory_space<vmem>>, vector<8x648xf32>
    tpu.vector_store %arg7[%c0_94, %c0_95], %119 {strides = array<i32>} : memref<72x648xf32, #tpu.memory_space<vmem>>, vector<8x648xf32>,
    %c0_96 = arith.constant 0 : index
    %c14_97 = arith.constant 14 : index
    %121 = vector.load %arg6[%c0_96, %c14_97] : memref<8x768xf32, #tpu.memory_space<vmem>>, vector<8x648xf32>
    %c8_98 = arith.constant 8 : index
    %c0_99 = arith.constant 0 : index
    %122 = vector.load %arg7[%c8_98, %c0_99] : memref<72x648xf32, #tpu.memory_space<vmem>>, vector<8x648xf32>
    tpu.vector_store %arg7[%c8_98, %c0_99], %121 {strides = array<i32>} : memref<72x648xf32, #tpu.memory_space<vmem>>, vector<8x648xf32>,
    %c0_100 = arith.constant 0 : index
    %c15_101 = arith.constant 15 : index
    %123 = vector.load %arg6[%c0_100, %c15_101] : memref<8x768xf32, #tpu.memory_space<vmem>>, vector<8x648xf32>
    %c16_102 = arith.constant 16 : index
    %c0_103 = arith.constant 0 : index
    %124 = vector.load %arg7[%c16_102, %c0_103] : memref<72x648xf32, #tpu.memory_space<vmem>>, vector<8x648xf32>
    tpu.vector_store %arg7[%c16_102, %c0_103], %123 {strides = array<i32>} : memref<72x648xf32, #tpu.memory_space<vmem>>, vector<8x648xf32>,
    %c0_104 = arith.constant 0 : index
    %c31_105 = arith.constant 31 : index
    %125 = vector.load %arg6[%c0_104, %c31_105] : memref<8x768xf32, #tpu.memory_space<vmem>>, vector<8x648xf32>
    %c24_106 = arith.constant 24 : index
    %c0_107 = arith.constant 0 : index
    %126 = vector.load %arg7[%c24_106, %c0_107] : memref<72x648xf32, #tpu.memory_space<vmem>>, vector<8x648xf32>
    tpu.vector_store %arg7[%c24_106, %c0_107], %125 {strides = array<i32>} : memref<72x648xf32, #tpu.memory_space<vmem>>, vector<8x648xf32>,
    %c0_108 = arith.constant 0 : index
    %c32_109 = arith.constant 32 : index
    %127 = vector.load %arg6[%c0_108, %c32_109] : memref<8x768xf32, #tpu.memory_space<vmem>>, vector<8x648xf32>
    %c32_110 = arith.constant 32 : index
    %c0_111 = arith.constant 0 : index
    %128 = vector.load %arg7[%c32_110, %c0_111] : memref<72x648xf32, #tpu.memory_space<vmem>>, vector<8x648xf32>
    tpu.vector_store %arg7[%c32_110, %c0_111], %127 {strides = array<i32>} : memref<72x648xf32, #tpu.memory_space<vmem>>, vector<8x648xf32>,
    %c0_112 = arith.constant 0 : index
    %c33_113 = arith.constant 33 : index
    %129 = vector.load %arg6[%c0_112, %c33_113] : memref<8x768xf32, #tpu.memory_space<vmem>>, vector<8x648xf32>
    %c40_114 = arith.constant 40 : index
    %c0_115 = arith.constant 0 : index
    %130 = vector.load %arg7[%c40_114, %c0_115] : memref<72x648xf32, #tpu.memory_space<vmem>>, vector<8x648xf32>
    tpu.vector_store %arg7[%c40_114, %c0_115], %129 {strides = array<i32>} : memref<72x648xf32, #tpu.memory_space<vmem>>, vector<8x648xf32>,
    %c0_116 = arith.constant 0 : index
    %c49_117 = arith.constant 49 : index
    %131 = vector.load %arg6[%c0_116, %c49_117] : memref<8x768xf32, #tpu.memory_space<vmem>>, vector<8x648xf32>
    %c48_118 = arith.constant 48 : index
    %c0_119 = arith.constant 0 : index
    %132 = vector.load %arg7[%c48_118, %c0_119] : memref<72x648xf32, #tpu.memory_space<vmem>>, vector<8x648xf32>
    tpu.vector_store %arg7[%c48_118, %c0_119], %131 {strides = array<i32>} : memref<72x648xf32, #tpu.memory_space<vmem>>, vector<8x648xf32>,
    %c0_120 = arith.constant 0 : index
    %c50_121 = arith.constant 50 : index
    %133 = vector.load %arg6[%c0_120, %c50_121] : memref<8x768xf32, #tpu.memory_space<vmem>>, vector<8x648xf32>
    %c56_122 = arith.constant 56 : index
    %c0_123 = arith.constant 0 : index
    %134 = vector.load %arg7[%c56_122, %c0_123] : memref<72x648xf32, #tpu.memory_space<vmem>>, vector<8x648xf32>
    tpu.vector_store %arg7[%c56_122, %c0_123], %133 {strides = array<i32>} : memref<72x648xf32, #tpu.memory_space<vmem>>, vector<8x648xf32>,
    %c0_124 = arith.constant 0 : index
    %c51_125 = arith.constant 51 : index
    %135 = vector.load %arg6[%c0_124, %c51_125] : memref<8x768xf32, #tpu.memory_space<vmem>>, vector<8x648xf32>
    %c64_126 = arith.constant 64 : index
    %c0_127 = arith.constant 0 : index
    %136 = vector.load %arg7[%c64_126, %c0_127] : memref<72x648xf32, #tpu.memory_space<vmem>>, vector<8x648xf32>
    tpu.vector_store %arg7[%c64_126, %c0_127], %135 {strides = array<i32>} : memref<72x648xf32, #tpu.memory_space<vmem>>, vector<8x648xf32>,
    %c2 = arith.constant 2 : index
    %c0_128 = arith.constant 0 : index
    %c0_129 = arith.constant 0 : index
    %137 = vector.load %arg1[%c2, %c0_128, %c0_129] : memref<4x8x72xf32, #tpu.memory_space<vmem>>, vector<1x8x72xf32>
    %138 = vector.shape_cast %137 : vector<1x8x72xf32> to vector<8x72xf32>
    %c0_130 = arith.constant 0 : index
    %c0_131 = arith.constant 0 : index
    %139 = vector.load %arg7[%c0_130, %c0_131] : memref<72x648xf32, #tpu.memory_space<vmem>>, vector<72x648xf32>
    %cst_132 = arith.constant dense<0.000000e+00> : vector<8x648xf32>
    %140 = tpu.matmul %138, %139, %cst_132 {dimension_numbers = #tpu.dot_dimension_numbers<[1], [0], [0], [1], [0, 0, 1, 1], [], []>} : vector<8x72xf32>, vector<72x648xf32>, vector<8x648xf32> -> vector<8x648xf32>
    %141 = vector.broadcast %0 : vector<1x648xf32> to vector<8x648xf32>
    %142 = arith.mulf %140, %141 : vector<8x648xf32>
    %cst_133 = arith.constant dense<0.000000e+00> : vector<8xf32>
    %143 = vector.multi_reduction <add>, %142, %cst_133 [1] : vector<8x648xf32> to vector<8xf32>
    %144 = vector.shape_cast %143 : vector<8xf32> to vector<8x1xf32>
    %cst_134 = arith.constant 0.001953125 : f32
    %145 = vector.broadcast %cst_134 : f32 to vector<8x1xf32>
    %146 = arith.mulf %144, %145 : vector<8x1xf32>
    %147 = vector.broadcast %146 : vector<8x1xf32> to vector<8x648xf32>
    %148 = arith.subf %140, %147 : vector<8x648xf32>
    %149 = vector.broadcast %0 : vector<1x648xf32> to vector<8x648xf32>
    %150 = arith.mulf %148, %149 : vector<8x648xf32>
    %151 = arith.mulf %150, %150 : vector<8x648xf32>
    %cst_135 = arith.constant dense<0.000000e+00> : vector<8xf32>
    %152 = vector.multi_reduction <add>, %151, %cst_135 [1] : vector<8x648xf32> to vector<8xf32>
    %153 = vector.shape_cast %152 : vector<8xf32> to vector<8x1xf32>
    %cst_136 = arith.constant 0.001953125 : f32
    %154 = vector.broadcast %cst_136 : f32 to vector<8x1xf32>
    %155 = arith.mulf %153, %154 : vector<8x1xf32>
    %156 = vector.extract_strided_slice %1 {offsets = [2, 0, 0], sizes = [1, 8, 1], strides = [1, 1, 1]} : vector<4x8x1xf32> to vector<1x8x1xf32>
    %157 = vector.shape_cast %156 : vector<1x8x1xf32> to vector<8x1xf32>
    %cst_137 = arith.constant 9.99999974E-6 : f32
    %158 = vector.broadcast %cst_137 : f32 to vector<8x1xf32>
    %159 = arith.addf %155, %158 : vector<8x1xf32>
    %160 = math.rsqrt %159 : vector<8x1xf32>
    %161 = arith.mulf %157, %160 : vector<8x1xf32>
    %162 = vector.extract_strided_slice %2 {offsets = [2, 0, 0], sizes = [1, 8, 1], strides = [1, 1, 1]} : vector<4x8x1xf32> to vector<1x8x1xf32>
    %163 = vector.shape_cast %162 : vector<1x8x1xf32> to vector<8x1xf32>
    %164 = arith.mulf %146, %161 : vector<8x1xf32>
    %165 = arith.subf %163, %164 : vector<8x1xf32>
    %166 = vector.broadcast %161 : vector<8x1xf32> to vector<8x648xf32>
    %167 = arith.mulf %140, %166 : vector<8x648xf32>
    %168 = vector.broadcast %165 : vector<8x1xf32> to vector<8x648xf32>
    %169 = arith.addf %167, %168 : vector<8x648xf32>
    %cst_138 = arith.constant 0.00999999977 : f32
    %170 = vector.broadcast %cst_138 : f32 to vector<8x648xf32>
    %171 = arith.mulf %170, %169 : vector<8x648xf32>
    %172 = arith.maximumf %169, %171 : vector<8x648xf32>
    %173 = vector.broadcast %0 : vector<1x648xf32> to vector<8x648xf32>
    %174 = arith.mulf %172, %173 : vector<8x648xf32>
    %c0_139 = arith.constant 0 : index
    %c32_140 = arith.constant 32 : index
    %175 = vector.load %arg6[%c0_139, %c32_140] : memref<8x768xf32, #tpu.memory_space<vmem>>, vector<8x648xf32>
    tpu.vector_store %arg6[%c0_139, %c32_140], %174 {strides = array<i32>} : memref<8x768xf32, #tpu.memory_space<vmem>>, vector<8x648xf32>,
    %c0_141 = arith.constant 0 : index
    %c13_142 = arith.constant 13 : index
    %176 = vector.load %arg6[%c0_141, %c13_142] : memref<8x768xf32, #tpu.memory_space<vmem>>, vector<8x648xf32>
    %c0_143 = arith.constant 0 : index
    %c0_144 = arith.constant 0 : index
    %177 = vector.load %arg7[%c0_143, %c0_144] : memref<72x648xf32, #tpu.memory_space<vmem>>, vector<8x648xf32>
    tpu.vector_store %arg7[%c0_143, %c0_144], %176 {strides = array<i32>} : memref<72x648xf32, #tpu.memory_space<vmem>>, vector<8x648xf32>,
    %c0_145 = arith.constant 0 : index
    %c14_146 = arith.constant 14 : index
    %178 = vector.load %arg6[%c0_145, %c14_146] : memref<8x768xf32, #tpu.memory_space<vmem>>, vector<8x648xf32>
    %c8_147 = arith.constant 8 : index
    %c0_148 = arith.constant 0 : index
    %179 = vector.load %arg7[%c8_147, %c0_148] : memref<72x648xf32, #tpu.memory_space<vmem>>, vector<8x648xf32>
    tpu.vector_store %arg7[%c8_147, %c0_148], %178 {strides = array<i32>} : memref<72x648xf32, #tpu.memory_space<vmem>>, vector<8x648xf32>,
    %c0_149 = arith.constant 0 : index
    %c15_150 = arith.constant 15 : index
    %180 = vector.load %arg6[%c0_149, %c15_150] : memref<8x768xf32, #tpu.memory_space<vmem>>, vector<8x648xf32>
    %c16_151 = arith.constant 16 : index
    %c0_152 = arith.constant 0 : index
    %181 = vector.load %arg7[%c16_151, %c0_152] : memref<72x648xf32, #tpu.memory_space<vmem>>, vector<8x648xf32>
    tpu.vector_store %arg7[%c16_151, %c0_152], %180 {strides = array<i32>} : memref<72x648xf32, #tpu.memory_space<vmem>>, vector<8x648xf32>,
    %c0_153 = arith.constant 0 : index
    %c31_154 = arith.constant 31 : index
    %182 = vector.load %arg6[%c0_153, %c31_154] : memref<8x768xf32, #tpu.memory_space<vmem>>, vector<8x648xf32>
    %c24_155 = arith.constant 24 : index
    %c0_156 = arith.constant 0 : index
    %183 = vector.load %arg7[%c24_155, %c0_156] : memref<72x648xf32, #tpu.memory_space<vmem>>, vector<8x648xf32>
    tpu.vector_store %arg7[%c24_155, %c0_156], %182 {strides = array<i32>} : memref<72x648xf32, #tpu.memory_space<vmem>>, vector<8x648xf32>,
    %c0_157 = arith.constant 0 : index
    %c32_158 = arith.constant 32 : index
    %184 = vector.load %arg6[%c0_157, %c32_158] : memref<8x768xf32, #tpu.memory_space<vmem>>, vector<8x648xf32>
    %c32_159 = arith.constant 32 : index
    %c0_160 = arith.constant 0 : index
    %185 = vector.load %arg7[%c32_159, %c0_160] : memref<72x648xf32, #tpu.memory_space<vmem>>, vector<8x648xf32>
    tpu.vector_store %arg7[%c32_159, %c0_160], %184 {strides = array<i32>} : memref<72x648xf32, #tpu.memory_space<vmem>>, vector<8x648xf32>,
    %c0_161 = arith.constant 0 : index
    %c33_162 = arith.constant 33 : index
    %186 = vector.load %arg6[%c0_161, %c33_162] : memref<8x768xf32, #tpu.memory_space<vmem>>, vector<8x648xf32>
    %c40_163 = arith.constant 40 : index
    %c0_164 = arith.constant 0 : index
    %187 = vector.load %arg7[%c40_163, %c0_164] : memref<72x648xf32, #tpu.memory_space<vmem>>, vector<8x648xf32>
    tpu.vector_store %arg7[%c40_163, %c0_164], %186 {strides = array<i32>} : memref<72x648xf32, #tpu.memory_space<vmem>>, vector<8x648xf32>,
    %c0_165 = arith.constant 0 : index
    %c49_166 = arith.constant 49 : index
    %188 = vector.load %arg6[%c0_165, %c49_166] : memref<8x768xf32, #tpu.memory_space<vmem>>, vector<8x648xf32>
    %c48_167 = arith.constant 48 : index
    %c0_168 = arith.constant 0 : index
    %189 = vector.load %arg7[%c48_167, %c0_168] : memref<72x648xf32, #tpu.memory_space<vmem>>, vector<8x648xf32>
    tpu.vector_store %arg7[%c48_167, %c0_168], %188 {strides = array<i32>} : memref<72x648xf32, #tpu.memory_space<vmem>>, vector<8x648xf32>,
    %c0_169 = arith.constant 0 : index
    %c50_170 = arith.constant 50 : index
    %190 = vector.load %arg6[%c0_169, %c50_170] : memref<8x768xf32, #tpu.memory_space<vmem>>, vector<8x648xf32>
    %c56_171 = arith.constant 56 : index
    %c0_172 = arith.constant 0 : index
    %191 = vector.load %arg7[%c56_171, %c0_172] : memref<72x648xf32, #tpu.memory_space<vmem>>, vector<8x648xf32>
    tpu.vector_store %arg7[%c56_171, %c0_172], %190 {strides = array<i32>} : memref<72x648xf32, #tpu.memory_space<vmem>>, vector<8x648xf32>,
    %c0_173 = arith.constant 0 : index
    %c51_174 = arith.constant 51 : index
    %192 = vector.load %arg6[%c0_173, %c51_174] : memref<8x768xf32, #tpu.memory_space<vmem>>, vector<8x648xf32>
    %c64_175 = arith.constant 64 : index
    %c0_176 = arith.constant 0 : index
    %193 = vector.load %arg7[%c64_175, %c0_176] : memref<72x648xf32, #tpu.memory_space<vmem>>, vector<8x648xf32>
    tpu.vector_store %arg7[%c64_175, %c0_176], %192 {strides = array<i32>} : memref<72x648xf32, #tpu.memory_space<vmem>>, vector<8x648xf32>,
    %c3 = arith.constant 3 : index
    %c0_177 = arith.constant 0 : index
    %c0_178 = arith.constant 0 : index
    %194 = vector.load %arg1[%c3, %c0_177, %c0_178] : memref<4x8x72xf32, #tpu.memory_space<vmem>>, vector<1x8x72xf32>
    %195 = vector.shape_cast %194 : vector<1x8x72xf32> to vector<8x72xf32>
    %c0_179 = arith.constant 0 : index
    %c0_180 = arith.constant 0 : index
    %196 = vector.load %arg7[%c0_179, %c0_180] : memref<72x648xf32, #tpu.memory_space<vmem>>, vector<72x648xf32>
    %cst_181 = arith.constant dense<0.000000e+00> : vector<8x648xf32>
    %197 = tpu.matmul %195, %196, %cst_181 {dimension_numbers = #tpu.dot_dimension_numbers<[1], [0], [0], [1], [0, 0, 1, 1], [], []>} : vector<8x72xf32>, vector<72x648xf32>, vector<8x648xf32> -> vector<8x648xf32>
    %198 = vector.broadcast %0 : vector<1x648xf32> to vector<8x648xf32>
    %199 = arith.mulf %197, %198 : vector<8x648xf32>
    %cst_182 = arith.constant dense<0.000000e+00> : vector<8xf32>
    %200 = vector.multi_reduction <add>, %199, %cst_182 [1] : vector<8x648xf32> to vector<8xf32>
    %201 = vector.shape_cast %200 : vector<8xf32> to vector<8x1xf32>
    %cst_183 = arith.constant 0.001953125 : f32
    %202 = vector.broadcast %cst_183 : f32 to vector<8x1xf32>
    %203 = arith.mulf %201, %202 : vector<8x1xf32>
    %204 = vector.broadcast %203 : vector<8x1xf32> to vector<8x648xf32>
    %205 = arith.subf %197, %204 : vector<8x648xf32>
    %206 = vector.broadcast %0 : vector<1x648xf32> to vector<8x648xf32>
    %207 = arith.mulf %205, %206 : vector<8x648xf32>
    %208 = arith.mulf %207, %207 : vector<8x648xf32>
    %cst_184 = arith.constant dense<0.000000e+00> : vector<8xf32>
    %209 = vector.multi_reduction <add>, %208, %cst_184 [1] : vector<8x648xf32> to vector<8xf32>
    %210 = vector.shape_cast %209 : vector<8xf32> to vector<8x1xf32>
    %cst_185 = arith.constant 0.001953125 : f32
    %211 = vector.broadcast %cst_185 : f32 to vector<8x1xf32>
    %212 = arith.mulf %210, %211 : vector<8x1xf32>
    %213 = vector.extract_strided_slice %1 {offsets = [3, 0, 0], sizes = [1, 8, 1], strides = [1, 1, 1]} : vector<4x8x1xf32> to vector<1x8x1xf32>
    %214 = vector.shape_cast %213 : vector<1x8x1xf32> to vector<8x1xf32>
    %cst_186 = arith.constant 9.99999974E-6 : f32
    %215 = vector.broadcast %cst_186 : f32 to vector<8x1xf32>
    %216 = arith.addf %212, %215 : vector<8x1xf32>
    %217 = math.rsqrt %216 : vector<8x1xf32>
    %218 = arith.mulf %214, %217 : vector<8x1xf32>
    %219 = vector.extract_strided_slice %2 {offsets = [3, 0, 0], sizes = [1, 8, 1], strides = [1, 1, 1]} : vector<4x8x1xf32> to vector<1x8x1xf32>
    %220 = vector.shape_cast %219 : vector<1x8x1xf32> to vector<8x1xf32>
    %221 = arith.mulf %203, %218 : vector<8x1xf32>
    %222 = arith.subf %220, %221 : vector<8x1xf32>
    %223 = vector.broadcast %218 : vector<8x1xf32> to vector<8x648xf32>
    %224 = arith.mulf %197, %223 : vector<8x648xf32>
    %225 = vector.broadcast %222 : vector<8x1xf32> to vector<8x648xf32>
    %226 = arith.addf %224, %225 : vector<8x648xf32>
    %227 = vector.broadcast %0 : vector<1x648xf32> to vector<8x648xf32>
    %228 = arith.mulf %226, %227 : vector<8x648xf32>
    %c0_187 = arith.constant 0 : index
    %c0_188 = arith.constant 0 : index
    %229 = vector.load %arg5[%c0_187, %c0_188] : memref<8x648xf32, #tpu.memory_space<vmem>>, vector<8x648xf32>
    tpu.vector_store %arg5[%c0_187, %c0_188], %228 {strides = array<i32>} : memref<8x648xf32, #tpu.memory_space<vmem>>, vector<8x648xf32>,
    return
  }
}

</mosaic_0001>

<llo_original>
// kernel: tpu_custom_call.1
$region0: #{tpu_custom_call.1}
  #allocation0 [shape = 'u32[]', space=smem, size = 0x4, offset = 0x4, fixed_abs, tag = 'smem constant byte address 0x4 - core index']
  #allocation1 [shape = 'u32[72,128]{1,0:T(1,128)}', space=vmem, size = 0x9000, scoped, tag = 'internal scratch']
  #allocation2 [shape = 'f32[8,768]{1,0:T(8,128)}', space=vmem, size = 0x6000, scoped, tag = 'scratch operand']
  #allocation3 [shape = 'f32[72,648]{1,0:T(8,128)}', space=vmem, size = 0x36000, scoped, tag = 'scratch operand']
  %s0 = inlined_call_operand.vmem [shape: f32[8,768], index: 0, kind: input, shape index: {}]
  %s1 = inlined_call_operand.hbm [shape: f32[4,8,72], index: 1, kind: input, shape index: {}]
  %s2 = inlined_call_operand.vmem [shape: f32[4,8,1], index: 2, kind: input, shape index: {}]
  %s3 = inlined_call_operand.vmem [shape: f32[4,8,1], index: 3, kind: input, shape index: {}]
  %s4 = inlined_call_operand.vmem [shape: f32[1,648], index: 4, kind: input, shape index: {}]
  %s5 = inlined_call_operand.hbm [shape: f32[8,648], index: 5, kind: output, shape index: {}]
  %s6 = sld [smem:[#allocation0]]
  $region34: #{tpu_custom_call.1} parent=0
    _
  %s8 = ssub.s32 1, %s6
  %s9 = scalar_select 0, %s8, %s6
  $region1: #{tpu_custom_call.1} parent=0
    #allocation4 [shape = 'u8[16384]{0}', space=vmem, size = 0x4000, scoped, tag = 'input window, operand 1, single buffered']
    #allocation5 [shape = 's32[1]{0}', space=sflag, size = 0x4, scoped, tag = 'scoped memory for tpu_custom_call.1']
    #allocation6 [shape = 's32[1]{0}', space=sflag, size = 0x4, scoped, tag = 'scoped memory for tpu_custom_call.1']
    #allocation7 [shape = 'u8[24576]{0}', space=vmem, size = 0x6000, scoped, tag = 'output window, operand 0, single buffered']
    %10 = vsyncpa [#allocation5], 0
    %11 = vsyncpa [#allocation6], 0
    // Predicated region
    $region2: #{tpu_custom_call.1} parent=1 // pred_check
      _
    $region3: #{tpu_custom_call.1} parent=1 // pred_check_branch
      %13 = sbr.rel (0) target = $region5
    $region4: #{tpu_custom_call.1} parent=1 // pred_region
      _
    $region5: #{tpu_custom_call.1} parent=1 // pred_fallthru
      _
    // Predicated region
    $region6: #{tpu_custom_call.1} parent=1 // pred_check
      _
    $region7: #{tpu_custom_call.1} parent=1 // pred_check_branch
      %15 = sbr.rel (0) target = $region9
    $region8: #{tpu_custom_call.1} parent=1 // pred_region
      %17 = vsyncadd [#allocation5], 0
      %s18 = sshll.u32 %s1, 4
      %s19 = int_to_ptr.hbm [resolvable:$true] %s18
      %s20 = sshll.u32 [#allocation4], 4
      %s21 = int_to_ptr.vmem [resolvable:$true] %s20
      %26 = dma.hbm_to_vmem [thread:$0]  %s19, 512, %s21, [#allocation5], 128, 128, 8
    $region9: #{tpu_custom_call.1} parent=1 // pred_fallthru
      _
    // Predicated region
    $region10: #{tpu_custom_call.1} parent=1 // pred_check
      _
    $region11: #{tpu_custom_call.1} parent=1 // pred_check_branch
      %28 = sbr.rel (0) target = $region13
    $region12: #{tpu_custom_call.1} parent=1 // pred_region
      _
    $region13: #{tpu_custom_call.1} parent=1 // pred_fallthru
      _
    // Predicated region
    $region14: #{tpu_custom_call.1} parent=1 // pred_check
      _
    $region15: #{tpu_custom_call.1} parent=1 // pred_check_branch
      %30 = sbr.rel (0) target = $region17
    $region16: #{tpu_custom_call.1} parent=1 // pred_region
      _
    $region17: #{tpu_custom_call.1} parent=1 // pred_fallthru
      _
    // Predicated region
    $region18: #{tpu_custom_call.1} parent=1 // pred_check
      _
    $region19: #{tpu_custom_call.1} parent=1 // pred_check_branch
      %32 = sbr.rel (0) target = $region21
    $region20: #{tpu_custom_call.1} parent=1 // pred_region
      _
    $region21: #{tpu_custom_call.1} parent=1 // pred_fallthru
      _
    // Predicated region
    $region22: #{tpu_custom_call.1} parent=1 // pred_check
      _
    $region23: #{tpu_custom_call.1} parent=1 // pred_check_branch
      %34 = sbr.rel (0) target = $region25
    $region24: #{tpu_custom_call.1} parent=1 // pred_region
      %36 = dma.done [#allocation5], 512
    $region25: #{tpu_custom_call.1} parent=1 // pred_fallthru
      _
    %v37 = vld [vmem:[%s4] sm:$0x3f]
    %v38 = vld [vmem:[%s2] sm:$0xff]
    %v39 = vld [vmem:[%s2 + $0x8] sm:$0xff]
    %v40 = vld [vmem:[%s2 + $0x10] sm:$0xff]
    %v41 = vld [vmem:[%s2 + $0x18] sm:$0xff]
    %v42 = vld [vmem:[%s3] sm:$0xff]
    %v43 = vld [vmem:[%s3 + $0x8] sm:$0xff]
    %v44 = vld [vmem:[%s3 + $0x10] sm:$0xff]
    %v45 = vld [vmem:[%s3 + $0x18] sm:$0xff]
    %46 = vst [vmem:[#allocation2] sm:$0xff] 0.0
    %47 = vst [vmem:[#allocation2 + $0x8] sm:$0xff] 0.0
    %48 = vst [vmem:[#allocation2 + $0x10] sm:$0xff] 0.0
    %49 = vst [vmem:[#allocation2 + $0x18] sm:$0xff] 0.0
    %50 = vst [vmem:[#allocation2 + $0x20] sm:$0xff] 0.0
    %51 = vst [vmem:[#allocation2 + $0x28] sm:$0xff] 0.0
    %v52 = vld [vmem:[%s0] sm:$0xff]
    %v53 = vld [vmem:[%s0 + $0x8] sm:$0xff]
    %v54 = vld [vmem:[%s0 + $0x10] sm:$0xff]
    %v55 = vld [vmem:[%s0 + $0x18] sm:$0xff]
    %v56 = vld [vmem:[%s0 + $0x20] sm:$0xff]
    %v57 = vld [vmem:[%s0 + $0x28] sm:$0xff]
    %64 = vrot.lane.b32.xlu0 %v52, 115
    %v65 = vpop.permute.xlu0 %64
    %66 = vrot.lane.b32.xlu0 %v53, 115
    %v67 = vpop.permute.xlu0 %66
    %68 = vrot.lane.b32.xlu0 %v54, 115
    %v69 = vpop.permute.xlu0 %68
    %70 = vrot.lane.b32.xlu0 %v55, 115
    %v71 = vpop.permute.xlu0 %70
    %72 = vrot.lane.b32.xlu0 %v56, 115
    %v73 = vpop.permute.xlu0 %72
    %74 = vrot.lane.b32.xlu0 %v57, 115
    %v75 = vpop.permute.xlu0 %74
    %vm76 = vcmask 941056
    %v77 = vsel %vm76, %v65, %v67
    %v78 = vsel %vm76, %v67, %v69
    %v79 = vsel %vm76, %v69, %v71
    %v80 = vsel %vm76, %v71, %v73
    %v81 = vsel %vm76, %v73, %v75
    %88 = vst [vmem:[#allocation3] sm:$0xff] %v77
    %89 = vst [vmem:[#allocation3 + $0x8] sm:$0xff] %v78
    %90 = vst [vmem:[#allocation3 + $0x10] sm:$0xff] %v79
    %91 = vst [vmem:[#allocation3 + $0x18] sm:$0xff] %v80
    %92 = vst [vmem:[#allocation3 + $0x20] sm:$0xff] %v81
    %vm93 = vcmask 64512
    %94 = vst.msk [vmem:[#allocation3 + $0x28] sm:$0xff] %vm93, %v75
    %v95 = vld [vmem:[%s0] sm:$0xff]
    %v96 = vld [vmem:[%s0 + $0x8] sm:$0xff]
    %v97 = vld [vmem:[%s0 + $0x10] sm:$0xff]
    %v98 = vld [vmem:[%s0 + $0x18] sm:$0xff]
    %v99 = vld [vmem:[%s0 + $0x20] sm:$0xff]
    %v100 = vld [vmem:[%s0 + $0x28] sm:$0xff]
    %107 = vrot.lane.b32.xlu0 %v95, 114
    %v108 = vpop.permute.xlu0 %107
    %109 = vrot.lane.b32.xlu0 %v96, 114
    %v110 = vpop.permute.xlu0 %109
    %111 = vrot.lane.b32.xlu0 %v97, 114
    %v112 = vpop.permute.xlu0 %111
    %113 = vrot.lane.b32.xlu0 %v98, 114
    %v114 = vpop.permute.xlu0 %113
    %115 = vrot.lane.b32.xlu0 %v99, 114
    %v116 = vpop.permute.xlu0 %115
    %117 = vrot.lane.b32.xlu0 %v100, 114
    %v118 = vpop.permute.xlu0 %117
    %vm119 = vcmask 932864
    %v120 = vsel %vm119, %v108, %v110
    %v121 = vsel %vm119, %v110, %v112
    %v122 = vsel %vm119, %v112, %v114
    %v123 = vsel %vm119, %v114, %v116
    %v124 = vsel %vm119, %v116, %v118
    %131 = vst [vmem:[#allocation3 + $0x30] sm:$0xff] %v120
    %132 = vst [vmem:[#allocation3 + $0x38] sm:$0xff] %v121
    %133 = vst [vmem:[#allocation3 + $0x40] sm:$0xff] %v122
    %134 = vst [vmem:[#allocation3 + $0x48] sm:$0xff] %v123
    %135 = vst [vmem:[#allocation3 + $0x50] sm:$0xff] %v124
    %136 = vst.msk [vmem:[#allocation3 + $0x58] sm:$0xff] %vm93, %v118
    %v137 = vld [vmem:[%s0] sm:$0xff]
    %v138 = vld [vmem:[%s0 + $0x8] sm:$0xff]
    %v139 = vld [vmem:[%s0 + $0x10] sm:$0xff]
    %v140 = vld [vmem:[%s0 + $0x18] sm:$0xff]
    %v141 = vld [vmem:[%s0 + $0x20] sm:$0xff]
    %v142 = vld [vmem:[%s0 + $0x28] sm:$0xff]
    %149 = vrot.lane.b32.xlu0 %v137, 113
    %v150 = vpop.permute.xlu0 %149
    %151 = vrot.lane.b32.xlu0 %v138, 113
    %v152 = vpop.permute.xlu0 %151
    %153 = vrot.lane.b32.xlu0 %v139, 113
    %v154 = vpop.permute.xlu0 %153
    %155 = vrot.lane.b32.xlu0 %v140, 113
    %v156 = vpop.permute.xlu0 %155
    %157 = vrot.lane.b32.xlu0 %v141, 113
    %v158 = vpop.permute.xlu0 %157
    %159 = vrot.lane.b32.xlu0 %v142, 113
    %v160 = vpop.permute.xlu0 %159
    %vm161 = vcmask 924672
    %v162 = vsel %vm161, %v150, %v152
    %v163 = vsel %vm161, %v152, %v154
    %v164 = vsel %vm161, %v154, %v156
    %v165 = vsel %vm161, %v156, %v158
    %v166 = vsel %vm161, %v158, %v160
    %173 = vst [vmem:[#allocation3 + $0x60] sm:$0xff] %v162
    %174 = vst [vmem:[#allocation3 + $0x68] sm:$0xff] %v163
    %175 = vst [vmem:[#allocation3 + $0x70] sm:$0xff] %v164
    %176 = vst [vmem:[#allocation3 + $0x78] sm:$0xff] %v165
    %177 = vst [vmem:[#allocation3 + $0x80] sm:$0xff] %v166
    %178 = vst.msk [vmem:[#allocation3 + $0x88] sm:$0xff] %vm93, %v160
    %v179 = vld [vmem:[%s0] sm:$0xff]
    %v180 = vld [vmem:[%s0 + $0x8] sm:$0xff]
    %v181 = vld [vmem:[%s0 + $0x10] sm:$0xff]
    %v182 = vld [vmem:[%s0 + $0x18] sm:$0xff]
    %v183 = vld [vmem:[%s0 + $0x20] sm:$0xff]
    %v184 = vld [vmem:[%s0 + $0x28] sm:$0xff]
    %191 = vrot.lane.b32.xlu0 %v179, 97
    %v192 = vpop.permute.xlu0 %191
    %193 = vrot.lane.b32.xlu0 %v180, 97
    %v194 = vpop.permute.xlu0 %193
    %195 = vrot.lane.b32.xlu0 %v181, 97
    %v196 = vpop.permute.xlu0 %195
    %197 = vrot.lane.b32.xlu0 %v182, 97
    %v198 = vpop.permute.xlu0 %197
    %199 = vrot.lane.b32.xlu0 %v183, 97
    %v200 = vpop.permute.xlu0 %199
    %201 = vrot.lane.b32.xlu0 %v184, 97
    %v202 = vpop.permute.xlu0 %201
    %vm203 = vcmask 793600
    %v204 = vsel %vm203, %v192, %v194
    %v205 = vsel %vm203, %v194, %v196
    %v206 = vsel %vm203, %v196, %v198
    %v207 = vsel %vm203, %v198, %v200
    %v208 = vsel %vm203, %v200, %v202
    %215 = vst [vmem:[#allocation3 + $0x90] sm:$0xff] %v204
    %216 = vst [vmem:[#allocation3 + $0x98] sm:$0xff] %v205
    %217 = vst [vmem:[#allocation3 + $0xa0] sm:$0xff] %v206
    %218 = vst [vmem:[#allocation3 + $0xa8] sm:$0xff] %v207
    %219 = vst [vmem:[#allocation3 + $0xb0] sm:$0xff] %v208
    %220 = vst.msk [vmem:[#allocation3 + $0xb8] sm:$0xff] %vm93, %v202
    %v221 = vld [vmem:[%s0] sm:$0xff]
    %v222 = vld [vmem:[%s0 + $0x8] sm:$0xff]
    %v223 = vld [vmem:[%s0 + $0x10] sm:$0xff]
    %v224 = vld [vmem:[%s0 + $0x18] sm:$0xff]
    %v225 = vld [vmem:[%s0 + $0x20] sm:$0xff]
    %v226 = vld [vmem:[%s0 + $0x28] sm:$0xff]
    %233 = vrot.lane.b32.xlu0 %v221, 96
    %v234 = vpop.permute.xlu0 %233
    %235 = vrot.lane.b32.xlu0 %v222, 96
    %v236 = vpop.permute.xlu0 %235
    %237 = vrot.lane.b32.xlu0 %v223, 96
    %v238 = vpop.permute.xlu0 %237
    %239 = vrot.lane.b32.xlu0 %v224, 96
    %v240 = vpop.permute.xlu0 %239
    %241 = vrot.lane.b32.xlu0 %v225, 96
    %v242 = vpop.permute.xlu0 %241
    %243 = vrot.lane.b32.xlu0 %v226, 96
    %v244 = vpop.permute.xlu0 %243
    %vm245 = vcmask 785408
    %v246 = vsel %vm245, %v234, %v236
    %v247 = vsel %vm245, %v236, %v238
    %v248 = vsel %vm245, %v238, %v240
    %v249 = vsel %vm245, %v240, %v242
    %v250 = vsel %vm245, %v242, %v244
    %257 = vst [vmem:[#allocation3 + $0xc0] sm:$0xff] %v246
    %258 = vst [vmem:[#allocation3 + $0xc8] sm:$0xff] %v247
    %259 = vst [vmem:[#allocation3 + $0xd0] sm:$0xff] %v248
    %260 = vst [vmem:[#allocation3 + $0xd8] sm:$0xff] %v249
    %261 = vst [vmem:[#allocation3 + $0xe0] sm:$0xff] %v250
    %262 = vst.msk [vmem:[#allocation3 + $0xe8] sm:$0xff] %vm93, %v244
    %v263 = vld [vmem:[%s0] sm:$0xff]
    %v264 = vld [vmem:[%s0 + $0x8] sm:$0xff]
    %v265 = vld [vmem:[%s0 + $0x10] sm:$0xff]
    %v266 = vld [vmem:[%s0 + $0x18] sm:$0xff]
    %v267 = vld [vmem:[%s0 + $0x20] sm:$0xff]
    %v268 = vld [vmem:[%s0 + $0x28] sm:$0xff]
    %275 = vrot.lane.b32.xlu0 %v263, 95
    %v276 = vpop.permute.xlu0 %275
    %277 = vrot.lane.b32.xlu0 %v264, 95
    %v278 = vpop.permute.xlu0 %277
    %279 = vrot.lane.b32.xlu0 %v265, 95
    %v280 = vpop.permute.xlu0 %279
    %281 = vrot.lane.b32.xlu0 %v266, 95
    %v282 = vpop.permute.xlu0 %281
    %283 = vrot.lane.b32.xlu0 %v267, 95
    %v284 = vpop.permute.xlu0 %283
    %285 = vrot.lane.b32.xlu0 %v268, 95
    %v286 = vpop.permute.xlu0 %285
    %vm287 = vcmask 777216
    %v288 = vsel %vm287, %v276, %v278
    %v289 = vsel %vm287, %v278, %v280
    %v290 = vsel %vm287, %v280, %v282
    %v291 = vsel %vm287, %v282, %v284
    %v292 = vsel %vm287, %v284, %v286
    %299 = vst [vmem:[#allocation3 + $0xf0] sm:$0xff] %v288
    %300 = vst [vmem:[#allocation3 + $0xf8] sm:$0xff] %v289
    %301 = vst [vmem:[#allocation3 + $0x100] sm:$0xff] %v290
    %302 = vst [vmem:[#allocation3 + $0x108] sm:$0xff] %v291
    %303 = vst [vmem:[#allocation3 + $0x110] sm:$0xff] %v292
    %304 = vst.msk [vmem:[#allocation3 + $0x118] sm:$0xff] %vm93, %v286
    %v305 = vld [vmem:[%s0] sm:$0xff]
    %v306 = vld [vmem:[%s0 + $0x8] sm:$0xff]
    %v307 = vld [vmem:[%s0 + $0x10] sm:$0xff]
    %v308 = vld [vmem:[%s0 + $0x18] sm:$0xff]
    %v309 = vld [vmem:[%s0 + $0x20] sm:$0xff]
    %v310 = vld [vmem:[%s0 + $0x28] sm:$0xff]
    %317 = vrot.lane.b32.xlu0 %v305, 79
    %v318 = vpop.permute.xlu0 %317
    %319 = vrot.lane.b32.xlu0 %v306, 79
    %v320 = vpop.permute.xlu0 %319
    %321 = vrot.lane.b32.xlu0 %v307, 79
    %v322 = vpop.permute.xlu0 %321
    %323 = vrot.lane.b32.xlu0 %v308, 79
    %v324 = vpop.permute.xlu0 %323
    %325 = vrot.lane.b32.xlu0 %v309, 79
    %v326 = vpop.permute.xlu0 %325
    %327 = vrot.lane.b32.xlu0 %v310, 79
    %v328 = vpop.permute.xlu0 %327
    %vm329 = vcmask 646144
    %v330 = vsel %vm329, %v318, %v320
    %v331 = vsel %vm329, %v320, %v322
    %v332 = vsel %vm329, %v322, %v324
    %v333 = vsel %vm329, %v324, %v326
    %v334 = vsel %vm329, %v326, %v328
    %341 = vst [vmem:[#allocation3 + $0x120] sm:$0xff] %v330
    %342 = vst [vmem:[#allocation3 + $0x128] sm:$0xff] %v331
    %343 = vst [vmem:[#allocation3 + $0x130] sm:$0xff] %v332
    %344 = vst [vmem:[#allocation3 + $0x138] sm:$0xff] %v333
    %345 = vst [vmem:[#allocation3 + $0x140] sm:$0xff] %v334
    %346 = vst.msk [vmem:[#allocation3 + $0x148] sm:$0xff] %vm93, %v328
    %v347 = vld [vmem:[%s0] sm:$0xff]
    %v348 = vld [vmem:[%s0 + $0x8] sm:$0xff]
    %v349 = vld [vmem:[%s0 + $0x10] sm:$0xff]
    %v350 = vld [vmem:[%s0 + $0x18] sm:$0xff]
    %v351 = vld [vmem:[%s0 + $0x20] sm:$0xff]
    %v352 = vld [vmem:[%s0 + $0x28] sm:$0xff]
    %359 = vrot.lane.b32.xlu0 %v347, 78
    %v360 = vpop.permute.xlu0 %359
    %361 = vrot.lane.b32.xlu0 %v348, 78
    %v362 = vpop.permute.xlu0 %361
    %363 = vrot.lane.b32.xlu0 %v349, 78
    %v364 = vpop.permute.xlu0 %363
    %365 = vrot.lane.b32.xlu0 %v350, 78
    %v366 = vpop.permute.xlu0 %365
    %367 = vrot.lane.b32.xlu0 %v351, 78
    %v368 = vpop.permute.xlu0 %367
    %369 = vrot.lane.b32.xlu0 %v352, 78
    %v370 = vpop.permute.xlu0 %369
    %vm371 = vcmask 637952
    %v372 = vsel %vm371, %v360, %v362
    %v373 = vsel %vm371, %v362, %v364
    %v374 = vsel %vm371, %v364, %v366
    %v375 = vsel %vm371, %v366, %v368
    %v376 = vsel %vm371, %v368, %v370
    %383 = vst [vmem:[#allocation3 + $0x150] sm:$0xff] %v372
    %384 = vst [vmem:[#allocation3 + $0x158] sm:$0xff] %v373
    %385 = vst [vmem:[#allocation3 + $0x160] sm:$0xff] %v374
    %386 = vst [vmem:[#allocation3 + $0x168] sm:$0xff] %v375
    %387 = vst [vmem:[#allocation3 + $0x170] sm:$0xff] %v376
    %388 = vst.msk [vmem:[#allocation3 + $0x178] sm:$0xff] %vm93, %v370
    %v389 = vld [vmem:[%s0] sm:$0xff]
    %v390 = vld [vmem:[%s0 + $0x8] sm:$0xff]
    %v391 = vld [vmem:[%s0 + $0x10] sm:$0xff]
    %v392 = vld [vmem:[%s0 + $0x18] sm:$0xff]
    %v393 = vld [vmem:[%s0 + $0x20] sm:$0xff]
    %v394 = vld [vmem:[%s0 + $0x28] sm:$0xff]
    %401 = vrot.lane.b32.xlu0 %v389, 77
    %v402 = vpop.permute.xlu0 %401
    %403 = vrot.lane.b32.xlu0 %v390, 77
    %v404 = vpop.permute.xlu0 %403
    %405 = vrot.lane.b32.xlu0 %v391, 77
    %v406 = vpop.permute.xlu0 %405
    %407 = vrot.lane.b32.xlu0 %v392, 77
    %v408 = vpop.permute.xlu0 %407
    %409 = vrot.lane.b32.xlu0 %v393, 77
    %v410 = vpop.permute.xlu0 %409
    %411 = vrot.lane.b32.xlu0 %v394, 77
    %v412 = vpop.permute.xlu0 %411
    %vm413 = vcmask 629760
    %v414 = vsel %vm413, %v402, %v404
    %v415 = vsel %vm413, %v404, %v406
    %v416 = vsel %vm413, %v406, %v408
    %v417 = vsel %vm413, %v408, %v410
    %v418 = vsel %vm413, %v410, %v412
    %425 = vst [vmem:[#allocation3 + $0x180] sm:$0xff] %v414
    %426 = vst [vmem:[#allocation3 + $0x188] sm:$0xff] %v415
    %427 = vst [vmem:[#allocation3 + $0x190] sm:$0xff] %v416
    %428 = vst [vmem:[#allocation3 + $0x198] sm:$0xff] %v417
    %429 = vst [vmem:[#allocation3 + $0x1a0] sm:$0xff] %v418
    %430 = vst.msk [vmem:[#allocation3 + $0x1a8] sm:$0xff] %vm93, %v412
    %v431 = vld [vmem:[#allocation4] sm:$0xff]
    %v432 = vld [vmem:[#allocation3] sm:$0xff]
    %v433 = vld [vmem:[#allocation3 + $0x8] sm:$0xff]
    %v434 = vld [vmem:[#allocation3 + $0x10] sm:$0xff]
    %v435 = vld [vmem:[#allocation3 + $0x18] sm:$0xff]
    %v436 = vld [vmem:[#allocation3 + $0x20] sm:$0xff]
    %v437 = vld [vmem:[#allocation3 + $0x28] sm:$0xff]
    %v438 = vld [vmem:[#allocation3 + $0x30] sm:$0xff]
    %v439 = vld [vmem:[#allocation3 + $0x38] sm:$0xff]
    %v440 = vld [vmem:[#allocation3 + $0x40] sm:$0xff]
    %v441 = vld [vmem:[#allocation3 + $0x48] sm:$0xff]
    %v442 = vld [vmem:[#allocation3 + $0x50] sm:$0xff]
    %v443 = vld [vmem:[#allocation3 + $0x58] sm:$0xff]
    %v444 = vld [vmem:[#allocation3 + $0x60] sm:$0xff]
    %v445 = vld [vmem:[#allocation3 + $0x68] sm:$0xff]
    %v446 = vld [vmem:[#allocation3 + $0x70] sm:$0xff]
    %v447 = vld [vmem:[#allocation3 + $0x78] sm:$0xff]
    %v448 = vld [vmem:[#allocation3 + $0x80] sm:$0xff]
    %v449 = vld [vmem:[#allocation3 + $0x88] sm:$0xff]
    %v450 = vld [vmem:[#allocation3 + $0x90] sm:$0xff]
    %v451 = vld [vmem:[#allocation3 + $0x98] sm:$0xff]
    %v452 = vld [vmem:[#allocation3 + $0xa0] sm:$0xff]
    %v453 = vld [vmem:[#allocation3 + $0xa8] sm:$0xff]
    %v454 = vld [vmem:[#allocation3 + $0xb0] sm:$0xff]
    %v455 = vld [vmem:[#allocation3 + $0xb8] sm:$0xff]
    %v456 = vld [vmem:[#allocation3 + $0xc0] sm:$0xff]
    %v457 = vld [vmem:[#allocation3 + $0xc8] sm:$0xff]
    %v458 = vld [vmem:[#allocation3 + $0xd0] sm:$0xff]
    %v459 = vld [vmem:[#allocation3 + $0xd8] sm:$0xff]
    %v460 = vld [vmem:[#allocation3 + $0xe0] sm:$0xff]
    %v461 = vld [vmem:[#allocation3 + $0xe8] sm:$0xff]
    %v462 = vld [vmem:[#allocation3 + $0xf0] sm:$0xff]
    %v463 = vld [vmem:[#allocation3 + $0xf8] sm:$0xff]
    %v464 = vld [vmem:[#allocation3 + $0x100] sm:$0xff]
    %v465 = vld [vmem:[#allocation3 + $0x108] sm:$0xff]
    %v466 = vld [vmem:[#allocation3 + $0x110] sm:$0xff]
    %v467 = vld [vmem:[#allocation3 + $0x118] sm:$0xff]
    %v468 = vld [vmem:[#allocation3 + $0x120] sm:$0xff]
    %v469 = vld [vmem:[#allocation3 + $0x128] sm:$0xff]
    %v470 = vld [vmem:[#allocation3 + $0x130] sm:$0xff]
    %v471 = vld [vmem:[#allocation3 + $0x138] sm:$0xff]
    %v472 = vld [vmem:[#allocation3 + $0x140] sm:$0xff]
    %v473 = vld [vmem:[#allocation3 + $0x148] sm:$0xff]
    %v474 = vld [vmem:[#allocation3 + $0x150] sm:$0xff]
    %v475 = vld [vmem:[#allocation3 + $0x158] sm:$0xff]
    %v476 = vld [vmem:[#allocation3 + $0x160] sm:$0xff]
    %v477 = vld [vmem:[#allocation3 + $0x168] sm:$0xff]
    %v478 = vld [vmem:[#allocation3 + $0x170] sm:$0xff]
    %v479 = vld [vmem:[#allocation3 + $0x178] sm:$0xff]
    %v480 = vld [vmem:[#allocation3 + $0x180] sm:$0xff]
    %v481 = vld [vmem:[#allocation3 + $0x188] sm:$0xff]
    %v482 = vld [vmem:[#allocation3 + $0x190] sm:$0xff]
    %v483 = vld [vmem:[#allocation3 + $0x198] sm:$0xff]
    %v484 = vld [vmem:[#allocation3 + $0x1a0] sm:$0xff]
    %v485 = vld [vmem:[#allocation3 + $0x1a8] sm:$0xff]
    %vm486 = vcmask 588800
    %v488 = vsel %vm486, %v431, 0
    %490 = vmatpush.msra.mxu0 0.0
    %491 = vmatpush.msra.mxu0 0.0
    %492 = vmatpush.msra.mxu0 0.0
    %493 = vmatpush.msra.mxu0 0.0
    %494 = vmatpush.msra.mxu0 0.0
    %495 = vmatpush.msra.mxu0 0.0
    %496 = vmatpush.msra.mxu0 0.0
    %497 = vmatpush.msra.mxu0 %v480
    %498 = vmatpush.msra.mxu0 %v474
    %499 = vmatpush.msra.mxu0 %v468
    %500 = vmatpush.msra.mxu0 %v462
    %501 = vmatpush.msra.mxu0 %v456
    %502 = vmatpush.msra.mxu0 %v450
    %503 = vmatpush.msra.mxu0 %v444
    %504 = vmatpush.msra.mxu0 %v438
    %505 = vmatpush.msra.mxu0 %v432
    %506 = vmatmul.f32.gmra.mxu0 %v488
    %v507 = vpop.f32.mrf.mxu0
    %v508 = vadd.f32 0.0, %v507
    %509 = vdwg.mxu0
    %510 = vmatpush.msra.mxu0 0.0
    %511 = vmatpush.msra.mxu0 0.0
    %512 = vmatpush.msra.mxu0 0.0
    %513 = vmatpush.msra.mxu0 0.0
    %514 = vmatpush.msra.mxu0 0.0
    %515 = vmatpush.msra.mxu0 0.0
    %516 = vmatpush.msra.mxu0 0.0
    %517 = vmatpush.msra.mxu0 %v481
    %518 = vmatpush.msra.mxu0 %v475
    %519 = vmatpush.msra.mxu0 %v469
    %520 = vmatpush.msra.mxu0 %v463
    %521 = vmatpush.msra.mxu0 %v457
    %522 = vmatpush.msra.mxu0 %v451
    %523 = vmatpush.msra.mxu0 %v445
    %524 = vmatpush.msra.mxu0 %v439
    %525 = vmatpush.msra.mxu0 %v433
    %526 = vmatmul.f32.gmra.mxu0 %v488
    %v527 = vpop.f32.mrf.mxu0
    %v528 = vadd.f32 0.0, %v527
    %529 = vdwg.mxu0
    %530 = vmatpush.msra.mxu0 0.0
    %531 = vmatpush.msra.mxu0 0.0
    %532 = vmatpush.msra.mxu0 0.0
    %533 = vmatpush.msra.mxu0 0.0
    %534 = vmatpush.msra.mxu0 0.0
    %535 = vmatpush.msra.mxu0 0.0
    %536 = vmatpush.msra.mxu0 0.0
    %537 = vmatpush.msra.mxu0 %v482
    %538 = vmatpush.msra.mxu0 %v476
    %539 = vmatpush.msra.mxu0 %v470
    %540 = vmatpush.msra.mxu0 %v464
    %541 = vmatpush.msra.mxu0 %v458
    %542 = vmatpush.msra.mxu0 %v452
    %543 = vmatpush.msra.mxu0 %v446
    %544 = vmatpush.msra.mxu0 %v440
    %545 = vmatpush.msra.mxu0 %v434
    %546 = vmatmul.f32.gmra.mxu0 %v488
    %v547 = vpop.f32.mrf.mxu0
    %v548 = vadd.f32 0.0, %v547
    %549 = vdwg.mxu0
    %550 = vmatpush.msra.mxu0 0.0
    %551 = vmatpush.msra.mxu0 0.0
    %552 = vmatpush.msra.mxu0 0.0
    %553 = vmatpush.msra.mxu0 0.0
    %554 = vmatpush.msra.mxu0 0.0
    %555 = vmatpush.msra.mxu0 0.0
    %556 = vmatpush.msra.mxu0 0.0
    %557 = vmatpush.msra.mxu0 %v483
    %558 = vmatpush.msra.mxu0 %v477
    %559 = vmatpush.msra.mxu0 %v471
    %560 = vmatpush.msra.mxu0 %v465
    %561 = vmatpush.msra.mxu0 %v459
    %562 = vmatpush.msra.mxu0 %v453
    %563 = vmatpush.msra.mxu0 %v447
    %564 = vmatpush.msra.mxu0 %v441
    %565 = vmatpush.msra.mxu0 %v435
    %566 = vmatmul.f32.gmra.mxu0 %v488
    %v567 = vpop.f32.mrf.mxu0
    %v568 = vadd.f32 0.0, %v567
    %569 = vdwg.mxu0
    %570 = vmatpush.msra.mxu0 0.0
    %571 = vmatpush.msra.mxu0 0.0
    %572 = vmatpush.msra.mxu0 0.0
    %573 = vmatpush.msra.mxu0 0.0
    %574 = vmatpush.msra.mxu0 0.0
    %575 = vmatpush.msra.mxu0 0.0
    %576 = vmatpush.msra.mxu0 0.0
    %577 = vmatpush.msra.mxu0 %v484
    %578 = vmatpush.msra.mxu0 %v478
    %579 = vmatpush.msra.mxu0 %v472
    %580 = vmatpush.msra.mxu0 %v466
    %581 = vmatpush.msra.mxu0 %v460
    %582 = vmatpush.msra.mxu0 %v454
    %583 = vmatpush.msra.mxu0 %v448
    %584 = vmatpush.msra.mxu0 %v442
    %585 = vmatpush.msra.mxu0 %v436
    %586 = vmatmul.f32.gmra.mxu0 %v488
    %v587 = vpop.f32.mrf.mxu0
    %v588 = vadd.f32 0.0, %v587
    %589 = vdwg.mxu0
    %590 = vmatpush.msra.mxu0 0.0
    %591 = vmatpush.msra.mxu0 0.0
    %592 = vmatpush.msra.mxu0 0.0
    %593 = vmatpush.msra.mxu0 0.0
    %594 = vmatpush.msra.mxu0 0.0
    %595 = vmatpush.msra.mxu0 0.0
    %596 = vmatpush.msra.mxu0 0.0
    %597 = vmatpush.msra.mxu0 %v485
    %598 = vmatpush.msra.mxu0 %v479
    %599 = vmatpush.msra.mxu0 %v473
    %600 = vmatpush.msra.mxu0 %v467
    %601 = vmatpush.msra.mxu0 %v461
    %602 = vmatpush.msra.mxu0 %v455
    %603 = vmatpush.msra.mxu0 %v449
    %604 = vmatpush.msra.mxu0 %v443
    %605 = vmatpush.msra.mxu0 %v437
    %606 = vmatmul.f32.gmra.mxu0 %v488
    %v607 = vpop.f32.mrf.mxu0
    %v608 = vadd.f32 0.0, %v607
    %609 = vdwg.mxu0
    %v611 = vperm.slane %v37, 0
    %v612 = vperm.slane %v37, 1
    %v613 = vperm.slane %v37, 2
    %v614 = vperm.slane %v37, 3
    %v615 = vperm.slane %v37, 4
    %v616 = vperm.slane %v37, 5
    %v623 = vmul.f32 %v508, %v611
    %v624 = vmul.f32 %v528, %v612
    %v625 = vmul.f32 %v548, %v613
    %v626 = vmul.f32 %v568, %v614
    %v627 = vmul.f32 %v588, %v615
    %v628 = vmul.f32 %v608, %v616
    %v629 = vadd.f32 %v623, %v624
    %v630 = vadd.f32 %v629, %v625
    %v631 = vadd.f32 %v630, %v626
    %v632 = vadd.f32 %v631, %v627
    %v633 = vsel %vm93, %v628, 0.0
    %v634 = vadd.f32 %v632, %v633
    %635 = vadd.xlane.f32.xlu0 %v634
    %v636 = vpop.xlane.xlu0 %635
    %v637 = vmul.f32 %v636, 0.001953125
    %v638 = vsub.f32 %v508, %v637
    %v639 = vsub.f32 %v528, %v637
    %v640 = vsub.f32 %v548, %v637
    %v641 = vsub.f32 %v568, %v637
    %v642 = vsub.f32 %v588, %v637
    %v643 = vsub.f32 %v608, %v637
    %v644 = vmul.f32 %v638, %v611
    %v645 = vmul.f32 %v639, %v612
    %v646 = vmul.f32 %v640, %v613
    %v647 = vmul.f32 %v641, %v614
    %v648 = vmul.f32 %v642, %v615
    %v649 = vmul.f32 %v643, %v616
    %v650 = vmul.f32 %v644, %v644
    %v651 = vmul.f32 %v645, %v645
    %v652 = vmul.f32 %v646, %v646
    %v653 = vmul.f32 %v647, %v647
    %v654 = vmul.f32 %v648, %v648
    %v655 = vmul.f32 %v649, %v649
    %v656 = vadd.f32 %v650, %v651
    %v657 = vadd.f32 %v656, %v652
    %v658 = vadd.f32 %v657, %v653
    %v659 = vadd.f32 %v658, %v654
    %v660 = vsel %vm93, %v655, 0.0
    %v661 = vadd.f32 %v659, %v660
    %662 = vadd.xlane.f32.xlu0 %v661
    %v663 = vpop.xlane.xlu0 %662
    %v664 = vmul.f32 %v663, 0.001953125
    %v665 = vadd.f32 %v664, 1e-05
    %v666 = vrsqrt.pop %v665
    %v667 = vmul.f32 %v666, %v665
    %v668 = vmul.f32 %v667, %v666
    %v669 = vmul.f32 0.5, %v668
    %v670 = vsub.f32 1.5, %v669
    %v671 = vmul.f32 %v666, %v670
    %vm672 = vweird.f32 %v665
    %vm673 = vweird.f32 %v666
    %vm674 = vmor %vm672, %vm673
    %v675 = vsel %vm674, %v666, %v671
    %v676 = vmul.f32 %v38, %v675
    %v677 = vmul.f32 %v637, %v676
    %v678 = vsub.f32 %v42, %v677
    %680 = vset.pattern.permute.xlu0 0
    %681 = vperm.xlu0 %680, %v676
    %v682 = vpop.permute.xlu0 %681
    %v684 = vmul.f32 %v508, %v682
    %v685 = vmul.f32 %v528, %v682
    %v686 = vmul.f32 %v548, %v682
    %v687 = vmul.f32 %v568, %v682
    %v688 = vmul.f32 %v588, %v682
    %v689 = vmul.f32 %v608, %v682
    %691 = vset.pattern.permute.xlu0 0
    %692 = vperm.xlu0 %691, %v678
    %v693 = vpop.permute.xlu0 %692
    %v695 = vadd.f32 %v684, %v693
    %v696 = vadd.f32 %v685, %v693
    %v697 = vadd.f32 %v686, %v693
    %v698 = vadd.f32 %v687, %v693
    %v699 = vadd.f32 %v688, %v693
    %v700 = vadd.f32 %v689, %v693
    %v701 = vmul.f32 %v695, 0.01
    %v702 = vmul.f32 %v696, 0.01
    %v703 = vmul.f32 %v697, 0.01
    %v704 = vmul.f32 %v698, 0.01
    %v705 = vmul.f32 %v699, 0.01
    %v706 = vmul.f32 %v700, 0.01
    %v707 = vmax.f32 %v695, %v701
    %v708 = vmax.f32 %v696, %v702
    %v709 = vmax.f32 %v697, %v703
    %v710 = vmax.f32 %v698, %v704
    %v711 = vmax.f32 %v699, %v705
    %v712 = vmax.f32 %v700, %v706
    %v713 = vmul.f32 %v707, %v611
    %v714 = vmul.f32 %v708, %v612
    %v715 = vmul.f32 %v709, %v613
    %v716 = vmul.f32 %v710, %v614
    %v717 = vmul.f32 %v711, %v615
    %v718 = vmul.f32 %v712, %v616
    %725 = vrot.lane.b32.xlu0 %v713, 32
    %v726 = vpop.permute.xlu0 %725
    %727 = vrot.lane.b32.xlu0 %v714, 32
    %v728 = vpop.permute.xlu0 %727
    %729 = vrot.lane.b32.xlu0 %v715, 32
    %v730 = vpop.permute.xlu0 %729
    %731 = vrot.lane.b32.xlu0 %v716, 32
    %v732 = vpop.permute.xlu0 %731
    %733 = vrot.lane.b32.xlu0 %v717, 32
    %v734 = vpop.permute.xlu0 %733
    %735 = vrot.lane.b32.xlu0 %v718, 32
    %v736 = vpop.permute.xlu0 %735
    %vm737 = vcmask 261120
    %v738 = vsel %vm737, %v726, %v728
    %v739 = vsel %vm737, %v728, %v730
    %v740 = vsel %vm737, %v730, %v732
    %v741 = vsel %vm737, %v732, %v734
    %v742 = vsel %vm737, %v734, %v736
    %vm749 = vcmask 1047808
    %750 = vst.msk [vmem:[#allocation2] sm:$0xff] %vm749, %v726
    %751 = vst [vmem:[#allocation2 + $0x8] sm:$0xff] %v738
    %752 = vst [vmem:[#allocation2 + $0x10] sm:$0xff] %v739
    %753 = vst [vmem:[#allocation2 + $0x18] sm:$0xff] %v740
    %754 = vst [vmem:[#allocation2 + $0x20] sm:$0xff] %v741
    %vm755 = vcmask 326656
    %756 = vst.msk [vmem:[#allocation2 + $0x28] sm:$0xff] %vm755, %v742
    %v757 = vld [vmem:[#allocation2] sm:$0xff]
    %v758 = vld [vmem:[#allocation2 + $0x8] sm:$0xff]
    %v759 = vld [vmem:[#allocation2 + $0x10] sm:$0xff]
    %v760 = vld [vmem:[#allocation2 + $0x18] sm:$0xff]
    %v761 = vld [vmem:[#allocation2 + $0x20] sm:$0xff]
    %v762 = vld [vmem:[#allocation2 + $0x28] sm:$0xff]
    %769 = vrot.lane.b32.xlu0 %v757, 115
    %v770 = vpop.permute.xlu0 %769
    %771 = vrot.lane.b32.xlu0 %v758, 115
    %v772 = vpop.permute.xlu0 %771
    %773 = vrot.lane.b32.xlu0 %v759, 115
    %v774 = vpop.permute.xlu0 %773
    %775 = vrot.lane.b32.xlu0 %v760, 115
    %v776 = vpop.permute.xlu0 %775
    %777 = vrot.lane.b32.xlu0 %v761, 115
    %v778 = vpop.permute.xlu0 %777
    %779 = vrot.lane.b32.xlu0 %v762, 115
    %v780 = vpop.permute.xlu0 %779
    %v781 = vsel %vm76, %v770, %v772
    %v782 = vsel %vm76, %v772, %v774
    %v783 = vsel %vm76, %v774, %v776
    %v784 = vsel %vm76, %v776, %v778
    %v785 = vsel %vm76, %v778, %v780
    %792 = vst [vmem:[#allocation3] sm:$0xff] %v781
    %793 = vst [vmem:[#allocation3 + $0x8] sm:$0xff] %v782
    %794 = vst [vmem:[#allocation3 + $0x10] sm:$0xff] %v783
    %795 = vst [vmem:[#allocation3 + $0x18] sm:$0xff] %v784
    %796 = vst [vmem:[#allocation3 + $0x20] sm:$0xff] %v785
    %797 = vst.msk [vmem:[#allocation3 + $0x28] sm:$0xff] %vm93, %v780
    %v798 = vld [vmem:[#allocation2] sm:$0xff]
    %v799 = vld [vmem:[#allocation2 + $0x8] sm:$0xff]
    %v800 = vld [vmem:[#allocation2 + $0x10] sm:$0xff]
    %v801 = vld [vmem:[#allocation2 + $0x18] sm:$0xff]
    %v802 = vld [vmem:[#allocation2 + $0x20] sm:$0xff]
    %v803 = vld [vmem:[#allocation2 + $0x28] sm:$0xff]
    %810 = vrot.lane.b32.xlu0 %v798, 114
    %v811 = vpop.permute.xlu0 %810
    %812 = vrot.lane.b32.xlu0 %v799, 114
    %v813 = vpop.permute.xlu0 %812
    %814 = vrot.lane.b32.xlu0 %v800, 114
    %v815 = vpop.permute.xlu0 %814
    %816 = vrot.lane.b32.xlu0 %v801, 114
    %v817 = vpop.permute.xlu0 %816
    %818 = vrot.lane.b32.xlu0 %v802, 114
    %v819 = vpop.permute.xlu0 %818
    %820 = vrot.lane.b32.xlu0 %v803, 114
    %v821 = vpop.permute.xlu0 %820
    %v822 = vsel %vm119, %v811, %v813
    %v823 = vsel %vm119, %v813, %v815
    %v824 = vsel %vm119, %v815, %v817
    %v825 = vsel %vm119, %v817, %v819
    %v826 = vsel %vm119, %v819, %v821
    %833 = vst [vmem:[#allocation3 + $0x30] sm:$0xff] %v822
    %834 = vst [vmem:[#allocation3 + $0x38] sm:$0xff] %v823
    %835 = vst [vmem:[#allocation3 + $0x40] sm:$0xff] %v824
    %836 = vst [vmem:[#allocation3 + $0x48] sm:$0xff] %v825
    %837 = vst [vmem:[#allocation3 + $0x50] sm:$0xff] %v826
    %838 = vst.msk [vmem:[#allocation3 + $0x58] sm:$0xff] %vm93, %v821
    %v839 = vld [vmem:[#allocation2] sm:$0xff]
    %v840 = vld [vmem:[#allocation2 + $0x8] sm:$0xff]
    %v841 = vld [vmem:[#allocation2 + $0x10] sm:$0xff]
    %v842 = vld [vmem:[#allocation2 + $0x18] sm:$0xff]
    %v843 = vld [vmem:[#allocation2 + $0x20] sm:$0xff]
    %v844 = vld [vmem:[#allocation2 + $0x28] sm:$0xff]
    %851 = vrot.lane.b32.xlu0 %v839, 113
    %v852 = vpop.permute.xlu0 %851
    %853 = vrot.lane.b32.xlu0 %v840, 113
    %v854 = vpop.permute.xlu0 %853
    %855 = vrot.lane.b32.xlu0 %v841, 113
    %v856 = vpop.permute.xlu0 %855
    %857 = vrot.lane.b32.xlu0 %v842, 113
    %v858 = vpop.permute.xlu0 %857
    %859 = vrot.lane.b32.xlu0 %v843, 113
    %v860 = vpop.permute.xlu0 %859
    %861 = vrot.lane.b32.xlu0 %v844, 113
    %v862 = vpop.permute.xlu0 %861
    %v863 = vsel %vm161, %v852, %v854
    %v864 = vsel %vm161, %v854, %v856
    %v865 = vsel %vm161, %v856, %v858
    %v866 = vsel %vm161, %v858, %v860
    %v867 = vsel %vm161, %v860, %v862
    %874 = vst [vmem:[#allocation3 + $0x60] sm:$0xff] %v863
    %875 = vst [vmem:[#allocation3 + $0x68] sm:$0xff] %v864
    %876 = vst [vmem:[#allocation3 + $0x70] sm:$0xff] %v865
    %877 = vst [vmem:[#allocation3 + $0x78] sm:$0xff] %v866
    %878 = vst [vmem:[#allocation3 + $0x80] sm:$0xff] %v867
    %879 = vst.msk [vmem:[#allocation3 + $0x88] sm:$0xff] %vm93, %v862
    %v880 = vld [vmem:[#allocation2] sm:$0xff]
    %v881 = vld [vmem:[#allocation2 + $0x8] sm:$0xff]
    %v882 = vld [vmem:[#allocation2 + $0x10] sm:$0xff]
    %v883 = vld [vmem:[#allocation2 + $0x18] sm:$0xff]
    %v884 = vld [vmem:[#allocation2 + $0x20] sm:$0xff]
    %v885 = vld [vmem:[#allocation2 + $0x28] sm:$0xff]
    %892 = vrot.lane.b32.xlu0 %v880, 97
    %v893 = vpop.permute.xlu0 %892
    %894 = vrot.lane.b32.xlu0 %v881, 97
    %v895 = vpop.permute.xlu0 %894
    %896 = vrot.lane.b32.xlu0 %v882, 97
    %v897 = vpop.permute.xlu0 %896
    %898 = vrot.lane.b32.xlu0 %v883, 97
    %v899 = vpop.permute.xlu0 %898
    %900 = vrot.lane.b32.xlu0 %v884, 97
    %v901 = vpop.permute.xlu0 %900
    %902 = vrot.lane.b32.xlu0 %v885, 97
    %v903 = vpop.permute.xlu0 %902
    %v904 = vsel %vm203, %v893, %v895
    %v905 = vsel %vm203, %v895, %v897
    %v906 = vsel %vm203, %v897, %v899
    %v907 = vsel %vm203, %v899, %v901
    %v908 = vsel %vm203, %v901, %v903
    %915 = vst [vmem:[#allocation3 + $0x90] sm:$0xff] %v904
    %916 = vst [vmem:[#allocation3 + $0x98] sm:$0xff] %v905
    %917 = vst [vmem:[#allocation3 + $0xa0] sm:$0xff] %v906
    %918 = vst [vmem:[#allocation3 + $0xa8] sm:$0xff] %v907
    %919 = vst [vmem:[#allocation3 + $0xb0] sm:$0xff] %v908
    %920 = vst.msk [vmem:[#allocation3 + $0xb8] sm:$0xff] %vm93, %v903
    %v921 = vld [vmem:[#allocation2] sm:$0xff]
    %v922 = vld [vmem:[#allocation2 + $0x8] sm:$0xff]
    %v923 = vld [vmem:[#allocation2 + $0x10] sm:$0xff]
    %v924 = vld [vmem:[#allocation2 + $0x18] sm:$0xff]
    %v925 = vld [vmem:[#allocation2 + $0x20] sm:$0xff]
    %v926 = vld [vmem:[#allocation2 + $0x28] sm:$0xff]
    %933 = vrot.lane.b32.xlu0 %v921, 96
    %v934 = vpop.permute.xlu0 %933
    %935 = vrot.lane.b32.xlu0 %v922, 96
    %v936 = vpop.permute.xlu0 %935
    %937 = vrot.lane.b32.xlu0 %v923, 96
    %v938 = vpop.permute.xlu0 %937
    %939 = vrot.lane.b32.xlu0 %v924, 96
    %v940 = vpop.permute.xlu0 %939
    %941 = vrot.lane.b32.xlu0 %v925, 96
    %v942 = vpop.permute.xlu0 %941
    %943 = vrot.lane.b32.xlu0 %v926, 96
    %v944 = vpop.permute.xlu0 %943
    %v945 = vsel %vm245, %v934, %v936
    %v946 = vsel %vm245, %v936, %v938
    %v947 = vsel %vm245, %v938, %v940
    %v948 = vsel %vm245, %v940, %v942
    %v949 = vsel %vm245, %v942, %v944
    %956 = vst [vmem:[#allocation3 + $0xc0] sm:$0xff] %v945
    %957 = vst [vmem:[#allocation3 + $0xc8] sm:$0xff] %v946
    %958 = vst [vmem:[#allocation3 + $0xd0] sm:$0xff] %v947
    %959 = vst [vmem:[#allocation3 + $0xd8] sm:$0xff] %v948
    %960 = vst [vmem:[#allocation3 + $0xe0] sm:$0xff] %v949
    %961 = vst.msk [vmem:[#allocation3 + $0xe8] sm:$0xff] %vm93, %v944
    %v962 = vld [vmem:[#allocation2] sm:$0xff]
    %v963 = vld [vmem:[#allocation2 + $0x8] sm:$0xff]
    %v964 = vld [vmem:[#allocation2 + $0x10] sm:$0xff]
    %v965 = vld [vmem:[#allocation2 + $0x18] sm:$0xff]
    %v966 = vld [vmem:[#allocation2 + $0x20] sm:$0xff]
    %v967 = vld [vmem:[#allocation2 + $0x28] sm:$0xff]
    %974 = vrot.lane.b32.xlu0 %v962, 95
    %v975 = vpop.permute.xlu0 %974
    %976 = vrot.lane.b32.xlu0 %v963, 95
    %v977 = vpop.permute.xlu0 %976
    %978 = vrot.lane.b32.xlu0 %v964, 95
    %v979 = vpop.permute.xlu0 %978
    %980 = vrot.lane.b32.xlu0 %v965, 95
    %v981 = vpop.permute.xlu0 %980
    %982 = vrot.lane.b32.xlu0 %v966, 95
    %v983 = vpop.permute.xlu0 %982
    %984 = vrot.lane.b32.xlu0 %v967, 95
    %v985 = vpop.permute.xlu0 %984
    %v986 = vsel %vm287, %v975, %v977
    %v987 = vsel %vm287, %v977, %v979
    %v988 = vsel %vm287, %v979, %v981
    %v989 = vsel %vm287, %v981, %v983
    %v990 = vsel %vm287, %v983, %v985
    %997 = vst [vmem:[#allocation3 + $0xf0] sm:$0xff] %v986
    %998 = vst [vmem:[#allocation3 + $0xf8] sm:$0xff] %v987
    %999 = vst [vmem:[#allocation3 + $0x100] sm:$0xff] %v988
    %1000 = vst [vmem:[#allocation3 + $0x108] sm:$0xff] %v989
    %1001 = vst [vmem:[#allocation3 + $0x110] sm:$0xff] %v990
    %1002 = vst.msk [vmem:[#allocation3 + $0x118] sm:$0xff] %vm93, %v985
    %v1003 = vld [vmem:[#allocation2] sm:$0xff]
    %v1004 = vld [vmem:[#allocation2 + $0x8] sm:$0xff]
    %v1005 = vld [vmem:[#allocation2 + $0x10] sm:$0xff]
    %v1006 = vld [vmem:[#allocation2 + $0x18] sm:$0xff]
    %v1007 = vld [vmem:[#allocation2 + $0x20] sm:$0xff]
    %v1008 = vld [vmem:[#allocation2 + $0x28] sm:$0xff]
    %1015 = vrot.lane.b32.xlu0 %v1003, 79
    %v1016 = vpop.permute.xlu0 %1015
    %1017 = vrot.lane.b32.xlu0 %v1004, 79
    %v1018 = vpop.permute.xlu0 %1017
    %1019 = vrot.lane.b32.xlu0 %v1005, 79
    %v1020 = vpop.permute.xlu0 %1019
    %1021 = vrot.lane.b32.xlu0 %v1006, 79
    %v1022 = vpop.permute.xlu0 %1021
    %1023 = vrot.lane.b32.xlu0 %v1007, 79
    %v1024 = vpop.permute.xlu0 %1023
    %1025 = vrot.lane.b32.xlu0 %v1008, 79
    %v1026 = vpop.permute.xlu0 %1025
    %v1027 = vsel %vm329, %v1016, %v1018
    %v1028 = vsel %vm329, %v1018, %v1020
    %v1029 = vsel %vm329, %v1020, %v1022
    %v1030 = vsel %vm329, %v1022, %v1024
    %v1031 = vsel %vm329, %v1024, %v1026
    %1038 = vst [vmem:[#allocation3 + $0x120] sm:$0xff] %v1027
    %1039 = vst [vmem:[#allocation3 + $0x128] sm:$0xff] %v1028
    %1040 = vst [vmem:[#allocation3 + $0x130] sm:$0xff] %v1029
    %1041 = vst [vmem:[#allocation3 + $0x138] sm:$0xff] %v1030
    %1042 = vst [vmem:[#allocation3 + $0x140] sm:$0xff] %v1031
    %1043 = vst.msk [vmem:[#allocation3 + $0x148] sm:$0xff] %vm93, %v1026
    %v1044 = vld [vmem:[#allocation2] sm:$0xff]
    %v1045 = vld [vmem:[#allocation2 + $0x8] sm:$0xff]
    %v1046 = vld [vmem:[#allocation2 + $0x10] sm:$0xff]
    %v1047 = vld [vmem:[#allocation2 + $0x18] sm:$0xff]
    %v1048 = vld [vmem:[#allocation2 + $0x20] sm:$0xff]
    %v1049 = vld [vmem:[#allocation2 + $0x28] sm:$0xff]
    %1056 = vrot.lane.b32.xlu0 %v1044, 78
    %v1057 = vpop.permute.xlu0 %1056
    %1058 = vrot.lane.b32.xlu0 %v1045, 78
    %v1059 = vpop.permute.xlu0 %1058
    %1060 = vrot.lane.b32.xlu0 %v1046, 78
    %v1061 = vpop.permute.xlu0 %1060
    %1062 = vrot.lane.b32.xlu0 %v1047, 78
    %v1063 = vpop.permute.xlu0 %1062
    %1064 = vrot.lane.b32.xlu0 %v1048, 78
    %v1065 = vpop.permute.xlu0 %1064
    %1066 = vrot.lane.b32.xlu0 %v1049, 78
    %v1067 = vpop.permute.xlu0 %1066
    %v1068 = vsel %vm371, %v1057, %v1059
    %v1069 = vsel %vm371, %v1059, %v1061
    %v1070 = vsel %vm371, %v1061, %v1063
    %v1071 = vsel %vm371, %v1063, %v1065
    %v1072 = vsel %vm371, %v1065, %v1067
    %1079 = vst [vmem:[#allocation3 + $0x150] sm:$0xff] %v1068
    %1080 = vst [vmem:[#allocation3 + $0x158] sm:$0xff] %v1069
    %1081 = vst [vmem:[#allocation3 + $0x160] sm:$0xff] %v1070
    %1082 = vst [vmem:[#allocation3 + $0x168] sm:$0xff] %v1071
    %1083 = vst [vmem:[#allocation3 + $0x170] sm:$0xff] %v1072
    %1084 = vst.msk [vmem:[#allocation3 + $0x178] sm:$0xff] %vm93, %v1067
    %v1085 = vld [vmem:[#allocation2] sm:$0xff]
    %v1086 = vld [vmem:[#allocation2 + $0x8] sm:$0xff]
    %v1087 = vld [vmem:[#allocation2 + $0x10] sm:$0xff]
    %v1088 = vld [vmem:[#allocation2 + $0x18] sm:$0xff]
    %v1089 = vld [vmem:[#allocation2 + $0x20] sm:$0xff]
    %v1090 = vld [vmem:[#allocation2 + $0x28] sm:$0xff]
    %1097 = vrot.lane.b32.xlu0 %v1085, 77
    %v1098 = vpop.permute.xlu0 %1097
    %1099 = vrot.lane.b32.xlu0 %v1086, 77
    %v1100 = vpop.permute.xlu0 %1099
    %1101 = vrot.lane.b32.xlu0 %v1087, 77
    %v1102 = vpop.permute.xlu0 %1101
    %1103 = vrot.lane.b32.xlu0 %v1088, 77
    %v1104 = vpop.permute.xlu0 %1103
    %1105 = vrot.lane.b32.xlu0 %v1089, 77
    %v1106 = vpop.permute.xlu0 %1105
    %1107 = vrot.lane.b32.xlu0 %v1090, 77
    %v1108 = vpop.permute.xlu0 %1107
    %v1109 = vsel %vm413, %v1098, %v1100
    %v1110 = vsel %vm413, %v1100, %v1102
    %v1111 = vsel %vm413, %v1102, %v1104
    %v1112 = vsel %vm413, %v1104, %v1106
    %v1113 = vsel %vm413, %v1106, %v1108
    %1120 = vst [vmem:[#allocation3 + $0x180] sm:$0xff] %v1109
    %1121 = vst [vmem:[#allocation3 + $0x188] sm:$0xff] %v1110
    %1122 = vst [vmem:[#allocation3 + $0x190] sm:$0xff] %v1111
    %1123 = vst [vmem:[#allocation3 + $0x198] sm:$0xff] %v1112
    %1124 = vst [vmem:[#allocation3 + $0x1a0] sm:$0xff] %v1113
    %1125 = vst.msk [vmem:[#allocation3 + $0x1a8] sm:$0xff] %vm93, %v1108
    %s1126 = scalar_lea.vmem [#allocation4], 8
    %v1127 = vld [vmem:[%s1126] sm:$0xff]
    %v1128 = vld [vmem:[#allocation3] sm:$0xff]
    %v1129 = vld [vmem:[#allocation3 + $0x8] sm:$0xff]
    %v1130 = vld [vmem:[#allocation3 + $0x10] sm:$0xff]
    %v1131 = vld [vmem:[#allocation3 + $0x18] sm:$0xff]
    %v1132 = vld [vmem:[#allocation3 + $0x20] sm:$0xff]
    %v1133 = vld [vmem:[#allocation3 + $0x28] sm:$0xff]
    %v1134 = vld [vmem:[#allocation3 + $0x30] sm:$0xff]
    %v1135 = vld [vmem:[#allocation3 + $0x38] sm:$0xff]
    %v1136 = vld [vmem:[#allocation3 + $0x40] sm:$0xff]
    %v1137 = vld [vmem:[#allocation3 + $0x48] sm:$0xff]
    %v1138 = vld [vmem:[#allocation3 + $0x50] sm:$0xff]
    %v1139 = vld [vmem:[#allocation3 + $0x58] sm:$0xff]
    %v1140 = vld [vmem:[#allocation3 + $0x60] sm:$0xff]
    %v1141 = vld [vmem:[#allocation3 + $0x68] sm:$0xff]
    %v1142 = vld [vmem:[#allocation3 + $0x70] sm:$0xff]
    %v1143 = vld [vmem:[#allocation3 + $0x78] sm:$0xff]
    %v1144 = vld [vmem:[#allocation3 + $0x80] sm:$0xff]
    %v1145 = vld [vmem:[#allocation3 + $0x88] sm:$0xff]
    %v1146 = vld [vmem:[#allocation3 + $0x90] sm:$0xff]
    %v1147 = vld [vmem:[#allocation3 + $0x98] sm:$0xff]
    %v1148 = vld [vmem:[#allocation3 + $0xa0] sm:$0xff]
    %v1149 = vld [vmem:[#allocation3 + $0xa8] sm:$0xff]
    %v1150 = vld [vmem:[#allocation3 + $0xb0] sm:$0xff]
    %v1151 = vld [vmem:[#allocation3 + $0xb8] sm:$0xff]
    %v1152 = vld [vmem:[#allocation3 + $0xc0] sm:$0xff]
    %v1153 = vld [vmem:[#allocation3 + $0xc8] sm:$0xff]
    %v1154 = vld [vmem:[#allocation3 + $0xd0] sm:$0xff]
    %v1155 = vld [vmem:[#allocation3 + $0xd8] sm:$0xff]
    %v1156 = vld [vmem:[#allocation3 + $0xe0] sm:$0xff]
    %v1157 = vld [vmem:[#allocation3 + $0xe8] sm:$0xff]
    %v1158 = vld [vmem:[#allocation3 + $0xf0] sm:$0xff]
    %v1159 = vld [vmem:[#allocation3 + $0xf8] sm:$0xff]
    %v1160 = vld [vmem:[#allocation3 + $0x100] sm:$0xff]
    %v1161 = vld [vmem:[#allocation3 + $0x108] sm:$0xff]
    %v1162 = vld [vmem:[#allocation3 + $0x110] sm:$0xff]
    %v1163 = vld [vmem:[#allocation3 + $0x118] sm:$0xff]
    %v1164 = vld [vmem:[#allocation3 + $0x120] sm:$0xff]
    %v1165 = vld [vmem:[#allocation3 + $0x128] sm:$0xff]
    %v1166 = vld [vmem:[#allocation3 + $0x130] sm:$0xff]
    %v1167 = vld [vmem:[#allocation3 + $0x138] sm:$0xff]
    %v1168 = vld [vmem:[#allocation3 + $0x140] sm:$0xff]
    %v1169 = vld [vmem:[#allocation3 + $0x148] sm:$0xff]
    %v1170 = vld [vmem:[#allocation3 + $0x150] sm:$0xff]
    %v1171 = vld [vmem:[#allocation3 + $0x158] sm:$0xff]
    %v1172 = vld [vmem:[#allocation3 + $0x160] sm:$0xff]
    %v1173 = vld [vmem:[#allocation3 + $0x168] sm:$0xff]
    %v1174 = vld [vmem:[#allocation3 + $0x170] sm:$0xff]
    %v1175 = vld [vmem:[#allocation3 + $0x178] sm:$0xff]
    %v1176 = vld [vmem:[#allocation3 + $0x180] sm:$0xff]
    %v1177 = vld [vmem:[#allocation3 + $0x188] sm:$0xff]
    %v1178 = vld [vmem:[#allocation3 + $0x190] sm:$0xff]
    %v1179 = vld [vmem:[#allocation3 + $0x198] sm:$0xff]
    %v1180 = vld [vmem:[#allocation3 + $0x1a0] sm:$0xff]
    %v1181 = vld [vmem:[#allocation3 + $0x1a8] sm:$0xff]
    %v1183 = vsel %vm486, %v1127, 0
    %1185 = vmatpush.msra.mxu0 0.0
    %1186 = vmatpush.msra.mxu0 0.0
    %1187 = vmatpush.msra.mxu0 0.0
    %1188 = vmatpush.msra.mxu0 0.0
    %1189 = vmatpush.msra.mxu0 0.0
    %1190 = vmatpush.msra.mxu0 0.0
    %1191 = vmatpush.msra.mxu0 0.0
    %1192 = vmatpush.msra.mxu0 %v1176
    %1193 = vmatpush.msra.mxu0 %v1170
    %1194 = vmatpush.msra.mxu0 %v1164
    %1195 = vmatpush.msra.mxu0 %v1158
    %1196 = vmatpush.msra.mxu0 %v1152
    %1197 = vmatpush.msra.mxu0 %v1146
    %1198 = vmatpush.msra.mxu0 %v1140
    %1199 = vmatpush.msra.mxu0 %v1134
    %1200 = vmatpush.msra.mxu0 %v1128
    %1201 = vmatmul.f32.gmra.mxu0 %v1183
    %v1202 = vpop.f32.mrf.mxu0
    %v1203 = vadd.f32 0.0, %v1202
    %1204 = vdwg.mxu0
    %1205 = vmatpush.msra.mxu0 0.0
    %1206 = vmatpush.msra.mxu0 0.0
    %1207 = vmatpush.msra.mxu0 0.0
    %1208 = vmatpush.msra.mxu0 0.0
    %1209 = vmatpush.msra.mxu0 0.0
    %1210 = vmatpush.msra.mxu0 0.0
    %1211 = vmatpush.msra.mxu0 0.0
    %1212 = vmatpush.msra.mxu0 %v1177
    %1213 = vmatpush.msra.mxu0 %v1171
    %1214 = vmatpush.msra.mxu0 %v1165
    %1215 = vmatpush.msra.mxu0 %v1159
    %1216 = vmatpush.msra.mxu0 %v1153
    %1217 = vmatpush.msra.mxu0 %v1147
    %1218 = vmatpush.msra.mxu0 %v1141
    %1219 = vmatpush.msra.mxu0 %v1135
    %1220 = vmatpush.msra.mxu0 %v1129
    %1221 = vmatmul.f32.gmra.mxu0 %v1183
    %v1222 = vpop.f32.mrf.mxu0
    %v1223 = vadd.f32 0.0, %v1222
    %1224 = vdwg.mxu0
    %1225 = vmatpush.msra.mxu0 0.0
    %1226 = vmatpush.msra.mxu0 0.0
    %1227 = vmatpush.msra.mxu0 0.0
    %1228 = vmatpush.msra.mxu0 0.0
    %1229 = vmatpush.msra.mxu0 0.0
    %1230 = vmatpush.msra.mxu0 0.0
    %1231 = vmatpush.msra.mxu0 0.0
    %1232 = vmatpush.msra.mxu0 %v1178
    %1233 = vmatpush.msra.mxu0 %v1172
    %1234 = vmatpush.msra.mxu0 %v1166
    %1235 = vmatpush.msra.mxu0 %v1160
    %1236 = vmatpush.msra.mxu0 %v1154
    %1237 = vmatpush.msra.mxu0 %v1148
    %1238 = vmatpush.msra.mxu0 %v1142
    %1239 = vmatpush.msra.mxu0 %v1136
    %1240 = vmatpush.msra.mxu0 %v1130
    %1241 = vmatmul.f32.gmra.mxu0 %v1183
    %v1242 = vpop.f32.mrf.mxu0
    %v1243 = vadd.f32 0.0, %v1242
    %1244 = vdwg.mxu0
    %1245 = vmatpush.msra.mxu0 0.0
    %1246 = vmatpush.msra.mxu0 0.0
    %1247 = vmatpush.msra.mxu0 0.0
    %1248 = vmatpush.msra.mxu0 0.0
    %1249 = vmatpush.msra.mxu0 0.0
    %1250 = vmatpush.msra.mxu0 0.0
    %1251 = vmatpush.msra.mxu0 0.0
    %1252 = vmatpush.msra.mxu0 %v1179
    %1253 = vmatpush.msra.mxu0 %v1173
    %1254 = vmatpush.msra.mxu0 %v1167
    %1255 = vmatpush.msra.mxu0 %v1161
    %1256 = vmatpush.msra.mxu0 %v1155
    %1257 = vmatpush.msra.mxu0 %v1149
    %1258 = vmatpush.msra.mxu0 %v1143
    %1259 = vmatpush.msra.mxu0 %v1137
    %1260 = vmatpush.msra.mxu0 %v1131
    %1261 = vmatmul.f32.gmra.mxu0 %v1183
    %v1262 = vpop.f32.mrf.mxu0
    %v1263 = vadd.f32 0.0, %v1262
    %1264 = vdwg.mxu0
    %1265 = vmatpush.msra.mxu0 0.0
    %1266 = vmatpush.msra.mxu0 0.0
    %1267 = vmatpush.msra.mxu0 0.0
    %1268 = vmatpush.msra.mxu0 0.0
    %1269 = vmatpush.msra.mxu0 0.0
    %1270 = vmatpush.msra.mxu0 0.0
    %1271 = vmatpush.msra.mxu0 0.0
    %1272 = vmatpush.msra.mxu0 %v1180
    %1273 = vmatpush.msra.mxu0 %v1174
    %1274 = vmatpush.msra.mxu0 %v1168
    %1275 = vmatpush.msra.mxu0 %v1162
    %1276 = vmatpush.msra.mxu0 %v1156
    %1277 = vmatpush.msra.mxu0 %v1150
    %1278 = vmatpush.msra.mxu0 %v1144
    %1279 = vmatpush.msra.mxu0 %v1138
    %1280 = vmatpush.msra.mxu0 %v1132
    %1281 = vmatmul.f32.gmra.mxu0 %v1183
    %v1282 = vpop.f32.mrf.mxu0
    %v1283 = vadd.f32 0.0, %v1282
    %1284 = vdwg.mxu0
    %1285 = vmatpush.msra.mxu0 0.0
    %1286 = vmatpush.msra.mxu0 0.0
    %1287 = vmatpush.msra.mxu0 0.0
    %1288 = vmatpush.msra.mxu0 0.0
    %1289 = vmatpush.msra.mxu0 0.0
    %1290 = vmatpush.msra.mxu0 0.0
    %1291 = vmatpush.msra.mxu0 0.0
    %1292 = vmatpush.msra.mxu0 %v1181
    %1293 = vmatpush.msra.mxu0 %v1175
    %1294 = vmatpush.msra.mxu0 %v1169
    %1295 = vmatpush.msra.mxu0 %v1163
    %1296 = vmatpush.msra.mxu0 %v1157
    %1297 = vmatpush.msra.mxu0 %v1151
    %1298 = vmatpush.msra.mxu0 %v1145
    %1299 = vmatpush.msra.mxu0 %v1139
    %1300 = vmatpush.msra.mxu0 %v1133
    %1301 = vmatmul.f32.gmra.mxu0 %v1183
    %v1302 = vpop.f32.mrf.mxu0
    %v1303 = vadd.f32 0.0, %v1302
    %1304 = vdwg.mxu0
    %v1305 = vmul.f32 %v1203, %v611
    %v1306 = vmul.f32 %v1223, %v612
    %v1307 = vmul.f32 %v1243, %v613
    %v1308 = vmul.f32 %v1263, %v614
    %v1309 = vmul.f32 %v1283, %v615
    %v1310 = vmul.f32 %v1303, %v616
    %v1311 = vadd.f32 %v1305, %v1306
    %v1312 = vadd.f32 %v1311, %v1307
    %v1313 = vadd.f32 %v1312, %v1308
    %v1314 = vadd.f32 %v1313, %v1309
    %v1315 = vsel %vm93, %v1310, 0.0
    %v1316 = vadd.f32 %v1314, %v1315
    %1317 = vadd.xlane.f32.xlu0 %v1316
    %v1318 = vpop.xlane.xlu0 %1317
    %v1319 = vmul.f32 %v1318, 0.001953125
    %v1320 = vsub.f32 %v1203, %v1319
    %v1321 = vsub.f32 %v1223, %v1319
    %v1322 = vsub.f32 %v1243, %v1319
    %v1323 = vsub.f32 %v1263, %v1319
    %v1324 = vsub.f32 %v1283, %v1319
    %v1325 = vsub.f32 %v1303, %v1319
    %v1326 = vmul.f32 %v1320, %v611
    %v1327 = vmul.f32 %v1321, %v612
    %v1328 = vmul.f32 %v1322, %v613
    %v1329 = vmul.f32 %v1323, %v614
    %v1330 = vmul.f32 %v1324, %v615
    %v1331 = vmul.f32 %v1325, %v616
    %v1332 = vmul.f32 %v1326, %v1326
    %v1333 = vmul.f32 %v1327, %v1327
    %v1334 = vmul.f32 %v1328, %v1328
    %v1335 = vmul.f32 %v1329, %v1329
    %v1336 = vmul.f32 %v1330, %v1330
    %v1337 = vmul.f32 %v1331, %v1331
    %v1338 = vadd.f32 %v1332, %v1333
    %v1339 = vadd.f32 %v1338, %v1334
    %v1340 = vadd.f32 %v1339, %v1335
    %v1341 = vadd.f32 %v1340, %v1336
    %v1342 = vsel %vm93, %v1337, 0.0
    %v1343 = vadd.f32 %v1341, %v1342
    %1344 = vadd.xlane.f32.xlu0 %v1343
    %v1345 = vpop.xlane.xlu0 %1344
    %v1346 = vmul.f32 %v1345, 0.001953125
    %v1347 = vadd.f32 %v1346, 1e-05
    %v1348 = vrsqrt.pop %v1347
    %v1349 = vmul.f32 %v1348, %v1347
    %v1350 = vmul.f32 %v1349, %v1348
    %v1351 = vmul.f32 0.5, %v1350
    %v1352 = vsub.f32 1.5, %v1351
    %v1353 = vmul.f32 %v1348, %v1352
    %vm1354 = vweird.f32 %v1347
    %vm1355 = vweird.f32 %v1348
    %vm1356 = vmor %vm1354, %vm1355
    %v1357 = vsel %vm1356, %v1348, %v1353
    %v1358 = vmul.f32 %v39, %v1357
    %v1359 = vmul.f32 %v1319, %v1358
    %v1360 = vsub.f32 %v43, %v1359
    %1362 = vset.pattern.permute.xlu0 0
    %1363 = vperm.xlu0 %1362, %v1358
    %v1364 = vpop.permute.xlu0 %1363
    %v1366 = vmul.f32 %v1203, %v1364
    %v1367 = vmul.f32 %v1223, %v1364
    %v1368 = vmul.f32 %v1243, %v1364
    %v1369 = vmul.f32 %v1263, %v1364
    %v1370 = vmul.f32 %v1283, %v1364
    %v1371 = vmul.f32 %v1303, %v1364
    %1373 = vset.pattern.permute.xlu0 0
    %1374 = vperm.xlu0 %1373, %v1360
    %v1375 = vpop.permute.xlu0 %1374
    %v1377 = vadd.f32 %v1366, %v1375
    %v1378 = vadd.f32 %v1367, %v1375
    %v1379 = vadd.f32 %v1368, %v1375
    %v1380 = vadd.f32 %v1369, %v1375
    %v1381 = vadd.f32 %v1370, %v1375
    %v1382 = vadd.f32 %v1371, %v1375
    %v1383 = vmul.f32 %v1377, 0.01
    %v1384 = vmul.f32 %v1378, 0.01
    %v1385 = vmul.f32 %v1379, 0.01
    %v1386 = vmul.f32 %v1380, 0.01
    %v1387 = vmul.f32 %v1381, 0.01
    %v1388 = vmul.f32 %v1382, 0.01
    %v1389 = vmax.f32 %v1377, %v1383
    %v1390 = vmax.f32 %v1378, %v1384
    %v1391 = vmax.f32 %v1379, %v1385
    %v1392 = vmax.f32 %v1380, %v1386
    %v1393 = vmax.f32 %v1381, %v1387
    %v1394 = vmax.f32 %v1382, %v1388
    %v1395 = vmul.f32 %v1389, %v611
    %v1396 = vmul.f32 %v1390, %v612
    %v1397 = vmul.f32 %v1391, %v613
    %v1398 = vmul.f32 %v1392, %v614
    %v1399 = vmul.f32 %v1393, %v615
    %v1400 = vmul.f32 %v1394, %v616
    %1407 = vrot.lane.b32.xlu0 %v1395, 32
    %v1408 = vpop.permute.xlu0 %1407
    %1409 = vrot.lane.b32.xlu0 %v1396, 32
    %v1410 = vpop.permute.xlu0 %1409
    %1411 = vrot.lane.b32.xlu0 %v1397, 32
    %v1412 = vpop.permute.xlu0 %1411
    %1413 = vrot.lane.b32.xlu0 %v1398, 32
    %v1414 = vpop.permute.xlu0 %1413
    %1415 = vrot.lane.b32.xlu0 %v1399, 32
    %v1416 = vpop.permute.xlu0 %1415
    %1417 = vrot.lane.b32.xlu0 %v1400, 32
    %v1418 = vpop.permute.xlu0 %1417
    %v1419 = vsel %vm737, %v1408, %v1410
    %v1420 = vsel %vm737, %v1410, %v1412
    %v1421 = vsel %vm737, %v1412, %v1414
    %v1422 = vsel %vm737, %v1414, %v1416
    %v1423 = vsel %vm737, %v1416, %v1418
    %1430 = vst.msk [vmem:[#allocation2] sm:$0xff] %vm749, %v1408
    %1431 = vst [vmem:[#allocation2 + $0x8] sm:$0xff] %v1419
    %1432 = vst [vmem:[#allocation2 + $0x10] sm:$0xff] %v1420
    %1433 = vst [vmem:[#allocation2 + $0x18] sm:$0xff] %v1421
    %1434 = vst [vmem:[#allocation2 + $0x20] sm:$0xff] %v1422
    %1435 = vst.msk [vmem:[#allocation2 + $0x28] sm:$0xff] %vm755, %v1423
    %v1436 = vld [vmem:[#allocation2] sm:$0xff]
    %v1437 = vld [vmem:[#allocation2 + $0x8] sm:$0xff]
    %v1438 = vld [vmem:[#allocation2 + $0x10] sm:$0xff]
    %v1439 = vld [vmem:[#allocation2 + $0x18] sm:$0xff]
    %v1440 = vld [vmem:[#allocation2 + $0x20] sm:$0xff]
    %v1441 = vld [vmem:[#allocation2 + $0x28] sm:$0xff]
    %1448 = vrot.lane.b32.xlu0 %v1436, 115
    %v1449 = vpop.permute.xlu0 %1448
    %1450 = vrot.lane.b32.xlu0 %v1437, 115
    %v1451 = vpop.permute.xlu0 %1450
    %1452 = vrot.lane.b32.xlu0 %v1438, 115
    %v1453 = vpop.permute.xlu0 %1452
    %1454 = vrot.lane.b32.xlu0 %v1439, 115
    %v1455 = vpop.permute.xlu0 %1454
    %1456 = vrot.lane.b32.xlu0 %v1440, 115
    %v1457 = vpop.permute.xlu0 %1456
    %1458 = vrot.lane.b32.xlu0 %v1441, 115
    %v1459 = vpop.permute.xlu0 %1458
    %v1460 = vsel %vm76, %v1449, %v1451
    %v1461 = vsel %vm76, %v1451, %v1453
    %v1462 = vsel %vm76, %v1453, %v1455
    %v1463 = vsel %vm76, %v1455, %v1457
    %v1464 = vsel %vm76, %v1457, %v1459
    %1471 = vst [vmem:[#allocation3] sm:$0xff] %v1460
    %1472 = vst [vmem:[#allocation3 + $0x8] sm:$0xff] %v1461
    %1473 = vst [vmem:[#allocation3 + $0x10] sm:$0xff] %v1462
    %1474 = vst [vmem:[#allocation3 + $0x18] sm:$0xff] %v1463
    %1475 = vst [vmem:[#allocation3 + $0x20] sm:$0xff] %v1464
    %1476 = vst.msk [vmem:[#allocation3 + $0x28] sm:$0xff] %vm93, %v1459
    %v1477 = vld [vmem:[#allocation2] sm:$0xff]
    %v1478 = vld [vmem:[#allocation2 + $0x8] sm:$0xff]
    %v1479 = vld [vmem:[#allocation2 + $0x10] sm:$0xff]
    %v1480 = vld [vmem:[#allocation2 + $0x18] sm:$0xff]
    %v1481 = vld [vmem:[#allocation2 + $0x20] sm:$0xff]
    %v1482 = vld [vmem:[#allocation2 + $0x28] sm:$0xff]
    %1489 = vrot.lane.b32.xlu0 %v1477, 114
    %v1490 = vpop.permute.xlu0 %1489
    %1491 = vrot.lane.b32.xlu0 %v1478, 114
    %v1492 = vpop.permute.xlu0 %1491
    %1493 = vrot.lane.b32.xlu0 %v1479, 114
    %v1494 = vpop.permute.xlu0 %1493
    %1495 = vrot.lane.b32.xlu0 %v1480, 114
    %v1496 = vpop.permute.xlu0 %1495
    %1497 = vrot.lane.b32.xlu0 %v1481, 114
    %v1498 = vpop.permute.xlu0 %1497
    %1499 = vrot.lane.b32.xlu0 %v1482, 114
    %v1500 = vpop.permute.xlu0 %1499
    %v1501 = vsel %vm119, %v1490, %v1492
    %v1502 = vsel %vm119, %v1492, %v1494
    %v1503 = vsel %vm119, %v1494, %v1496
    %v1504 = vsel %vm119, %v1496, %v1498
    %v1505 = vsel %vm119, %v1498, %v1500
    %1512 = vst [vmem:[#allocation3 + $0x30] sm:$0xff] %v1501
    %1513 = vst [vmem:[#allocation3 + $0x38] sm:$0xff] %v1502
    %1514 = vst [vmem:[#allocation3 + $0x40] sm:$0xff] %v1503
    %1515 = vst [vmem:[#allocation3 + $0x48] sm:$0xff] %v1504
    %1516 = vst [vmem:[#allocation3 + $0x50] sm:$0xff] %v1505
    %1517 = vst.msk [vmem:[#allocation3 + $0x58] sm:$0xff] %vm93, %v1500
    %v1518 = vld [vmem:[#allocation2] sm:$0xff]
    %v1519 = vld [vmem:[#allocation2 + $0x8] sm:$0xff]
    %v1520 = vld [vmem:[#allocation2 + $0x10] sm:$0xff]
    %v1521 = vld [vmem:[#allocation2 + $0x18] sm:$0xff]
    %v1522 = vld [vmem:[#allocation2 + $0x20] sm:$0xff]
    %v1523 = vld [vmem:[#allocation2 + $0x28] sm:$0xff]
    %1530 = vrot.lane.b32.xlu0 %v1518, 113
    %v1531 = vpop.permute.xlu0 %1530
    %1532 = vrot.lane.b32.xlu0 %v1519, 113
    %v1533 = vpop.permute.xlu0 %1532
    %1534 = vrot.lane.b32.xlu0 %v1520, 113
    %v1535 = vpop.permute.xlu0 %1534
    %1536 = vrot.lane.b32.xlu0 %v1521, 113
    %v1537 = vpop.permute.xlu0 %1536
    %1538 = vrot.lane.b32.xlu0 %v1522, 113
    %v1539 = vpop.permute.xlu0 %1538
    %1540 = vrot.lane.b32.xlu0 %v1523, 113
    %v1541 = vpop.permute.xlu0 %1540
    %v1542 = vsel %vm161, %v1531, %v1533
    %v1543 = vsel %vm161, %v1533, %v1535
    %v1544 = vsel %vm161, %v1535, %v1537
    %v1545 = vsel %vm161, %v1537, %v1539
    %v1546 = vsel %vm161, %v1539, %v1541
    %1553 = vst [vmem:[#allocation3 + $0x60] sm:$0xff] %v1542
    %1554 = vst [vmem:[#allocation3 + $0x68] sm:$0xff] %v1543
    %1555 = vst [vmem:[#allocation3 + $0x70] sm:$0xff] %v1544
    %1556 = vst [vmem:[#allocation3 + $0x78] sm:$0xff] %v1545
    %1557 = vst [vmem:[#allocation3 + $0x80] sm:$0xff] %v1546
    %1558 = vst.msk [vmem:[#allocation3 + $0x88] sm:$0xff] %vm93, %v1541
    %v1559 = vld [vmem:[#allocation2] sm:$0xff]
    %v1560 = vld [vmem:[#allocation2 + $0x8] sm:$0xff]
    %v1561 = vld [vmem:[#allocation2 + $0x10] sm:$0xff]
    %v1562 = vld [vmem:[#allocation2 + $0x18] sm:$0xff]
    %v1563 = vld [vmem:[#allocation2 + $0x20] sm:$0xff]
    %v1564 = vld [vmem:[#allocation2 + $0x28] sm:$0xff]
    %1571 = vrot.lane.b32.xlu0 %v1559, 97
    %v1572 = vpop.permute.xlu0 %1571
    %1573 = vrot.lane.b32.xlu0 %v1560, 97
    %v1574 = vpop.permute.xlu0 %1573
    %1575 = vrot.lane.b32.xlu0 %v1561, 97
    %v1576 = vpop.permute.xlu0 %1575
    %1577 = vrot.lane.b32.xlu0 %v1562, 97
    %v1578 = vpop.permute.xlu0 %1577
    %1579 = vrot.lane.b32.xlu0 %v1563, 97
    %v1580 = vpop.permute.xlu0 %1579
    %1581 = vrot.lane.b32.xlu0 %v1564, 97
    %v1582 = vpop.permute.xlu0 %1581
    %v1583 = vsel %vm203, %v1572, %v1574
    %v1584 = vsel %vm203, %v1574, %v1576
    %v1585 = vsel %vm203, %v1576, %v1578
    %v1586 = vsel %vm203, %v1578, %v1580
    %v1587 = vsel %vm203, %v1580, %v1582
    %1594 = vst [vmem:[#allocation3 + $0x90] sm:$0xff] %v1583
    %1595 = vst [vmem:[#allocation3 + $0x98] sm:$0xff] %v1584
    %1596 = vst [vmem:[#allocation3 + $0xa0] sm:$0xff] %v1585
    %1597 = vst [vmem:[#allocation3 + $0xa8] sm:$0xff] %v1586
    %1598 = vst [vmem:[#allocation3 + $0xb0] sm:$0xff] %v1587
    %1599 = vst.msk [vmem:[#allocation3 + $0xb8] sm:$0xff] %vm93, %v1582
    %v1600 = vld [vmem:[#allocation2] sm:$0xff]
    %v1601 = vld [vmem:[#allocation2 + $0x8] sm:$0xff]
    %v1602 = vld [vmem:[#allocation2 + $0x10] sm:$0xff]
    %v1603 = vld [vmem:[#allocation2 + $0x18] sm:$0xff]
    %v1604 = vld [vmem:[#allocation2 + $0x20] sm:$0xff]
    %v1605 = vld [vmem:[#allocation2 + $0x28] sm:$0xff]
    %1612 = vrot.lane.b32.xlu0 %v1600, 96
    %v1613 = vpop.permute.xlu0 %1612
    %1614 = vrot.lane.b32.xlu0 %v1601, 96
    %v1615 = vpop.permute.xlu0 %1614
    %1616 = vrot.lane.b32.xlu0 %v1602, 96
    %v1617 = vpop.permute.xlu0 %1616
    %1618 = vrot.lane.b32.xlu0 %v1603, 96
    %v1619 = vpop.permute.xlu0 %1618
    %1620 = vrot.lane.b32.xlu0 %v1604, 96
    %v1621 = vpop.permute.xlu0 %1620
    %1622 = vrot.lane.b32.xlu0 %v1605, 96
    %v1623 = vpop.permute.xlu0 %1622
    %v1624 = vsel %vm245, %v1613, %v1615
    %v1625 = vsel %vm245, %v1615, %v1617
    %v1626 = vsel %vm245, %v1617, %v1619
    %v1627 = vsel %vm245, %v1619, %v1621
    %v1628 = vsel %vm245, %v1621, %v1623
    %1635 = vst [vmem:[#allocation3 + $0xc0] sm:$0xff] %v1624
    %1636 = vst [vmem:[#allocation3 + $0xc8] sm:$0xff] %v1625
    %1637 = vst [vmem:[#allocation3 + $0xd0] sm:$0xff] %v1626
    %1638 = vst [vmem:[#allocation3 + $0xd8] sm:$0xff] %v1627
    %1639 = vst [vmem:[#allocation3 + $0xe0] sm:$0xff] %v1628
    %1640 = vst.msk [vmem:[#allocation3 + $0xe8] sm:$0xff] %vm93, %v1623
    %v1641 = vld [vmem:[#allocation2] sm:$0xff]
    %v1642 = vld [vmem:[#allocation2 + $0x8] sm:$0xff]
    %v1643 = vld [vmem:[#allocation2 + $0x10] sm:$0xff]
    %v1644 = vld [vmem:[#allocation2 + $0x18] sm:$0xff]
    %v1645 = vld [vmem:[#allocation2 + $0x20] sm:$0xff]
    %v1646 = vld [vmem:[#allocation2 + $0x28] sm:$0xff]
    %1653 = vrot.lane.b32.xlu0 %v1641, 95
    %v1654 = vpop.permute.xlu0 %1653
    %1655 = vrot.lane.b32.xlu0 %v1642, 95
    %v1656 = vpop.permute.xlu0 %1655
    %1657 = vrot.lane.b32.xlu0 %v1643, 95
    %v1658 = vpop.permute.xlu0 %1657
    %1659 = vrot.lane.b32.xlu0 %v1644, 95
    %v1660 = vpop.permute.xlu0 %1659
    %1661 = vrot.lane.b32.xlu0 %v1645, 95
    %v1662 = vpop.permute.xlu0 %1661
    %1663 = vrot.lane.b32.xlu0 %v1646, 95
    %v1664 = vpop.permute.xlu0 %1663
    %v1665 = vsel %vm287, %v1654, %v1656
    %v1666 = vsel %vm287, %v1656, %v1658
    %v1667 = vsel %vm287, %v1658, %v1660
    %v1668 = vsel %vm287, %v1660, %v1662
    %v1669 = vsel %vm287, %v1662, %v1664
    %1676 = vst [vmem:[#allocation3 + $0xf0] sm:$0xff] %v1665
    %1677 = vst [vmem:[#allocation3 + $0xf8] sm:$0xff] %v1666
    %1678 = vst [vmem:[#allocation3 + $0x100] sm:$0xff] %v1667
    %1679 = vst [vmem:[#allocation3 + $0x108] sm:$0xff] %v1668
    %1680 = vst [vmem:[#allocation3 + $0x110] sm:$0xff] %v1669
    %1681 = vst.msk [vmem:[#allocation3 + $0x118] sm:$0xff] %vm93, %v1664
    %v1682 = vld [vmem:[#allocation2] sm:$0xff]
    %v1683 = vld [vmem:[#allocation2 + $0x8] sm:$0xff]
    %v1684 = vld [vmem:[#allocation2 + $0x10] sm:$0xff]
    %v1685 = vld [vmem:[#allocation2 + $0x18] sm:$0xff]
    %v1686 = vld [vmem:[#allocation2 + $0x20] sm:$0xff]
    %v1687 = vld [vmem:[#allocation2 + $0x28] sm:$0xff]
    %1694 = vrot.lane.b32.xlu0 %v1682, 79
    %v1695 = vpop.permute.xlu0 %1694
    %1696 = vrot.lane.b32.xlu0 %v1683, 79
    %v1697 = vpop.permute.xlu0 %1696
    %1698 = vrot.lane.b32.xlu0 %v1684, 79
    %v1699 = vpop.permute.xlu0 %1698
    %1700 = vrot.lane.b32.xlu0 %v1685, 79
    %v1701 = vpop.permute.xlu0 %1700
    %1702 = vrot.lane.b32.xlu0 %v1686, 79
    %v1703 = vpop.permute.xlu0 %1702
    %1704 = vrot.lane.b32.xlu0 %v1687, 79
    %v1705 = vpop.permute.xlu0 %1704
    %v1706 = vsel %vm329, %v1695, %v1697
    %v1707 = vsel %vm329, %v1697, %v1699
    %v1708 = vsel %vm329, %v1699, %v1701
    %v1709 = vsel %vm329, %v1701, %v1703
    %v1710 = vsel %vm329, %v1703, %v1705
    %1717 = vst [vmem:[#allocation3 + $0x120] sm:$0xff] %v1706
    %1718 = vst [vmem:[#allocation3 + $0x128] sm:$0xff] %v1707
    %1719 = vst [vmem:[#allocation3 + $0x130] sm:$0xff] %v1708
    %1720 = vst [vmem:[#allocation3 + $0x138] sm:$0xff] %v1709
    %1721 = vst [vmem:[#allocation3 + $0x140] sm:$0xff] %v1710
    %1722 = vst.msk [vmem:[#allocation3 + $0x148] sm:$0xff] %vm93, %v1705
    %v1723 = vld [vmem:[#allocation2] sm:$0xff]
    %v1724 = vld [vmem:[#allocation2 + $0x8] sm:$0xff]
    %v1725 = vld [vmem:[#allocation2 + $0x10] sm:$0xff]
    %v1726 = vld [vmem:[#allocation2 + $0x18] sm:$0xff]
    %v1727 = vld [vmem:[#allocation2 + $0x20] sm:$0xff]
    %v1728 = vld [vmem:[#allocation2 + $0x28] sm:$0xff]
    %1735 = vrot.lane.b32.xlu0 %v1723, 78
    %v1736 = vpop.permute.xlu0 %1735
    %1737 = vrot.lane.b32.xlu0 %v1724, 78
    %v1738 = vpop.permute.xlu0 %1737
    %1739 = vrot.lane.b32.xlu0 %v1725, 78
    %v1740 = vpop.permute.xlu0 %1739
    %1741 = vrot.lane.b32.xlu0 %v1726, 78
    %v1742 = vpop.permute.xlu0 %1741
    %1743 = vrot.lane.b32.xlu0 %v1727, 78
    %v1744 = vpop.permute.xlu0 %1743
    %1745 = vrot.lane.b32.xlu0 %v1728, 78
    %v1746 = vpop.permute.xlu0 %1745
    %v1747 = vsel %vm371, %v1736, %v1738
    %v1748 = vsel %vm371, %v1738, %v1740
    %v1749 = vsel %vm371, %v1740, %v1742
    %v1750 = vsel %vm371, %v1742, %v1744
    %v1751 = vsel %vm371, %v1744, %v1746
    %1758 = vst [vmem:[#allocation3 + $0x150] sm:$0xff] %v1747
    %1759 = vst [vmem:[#allocation3 + $0x158] sm:$0xff] %v1748
    %1760 = vst [vmem:[#allocation3 + $0x160] sm:$0xff] %v1749
    %1761 = vst [vmem:[#allocation3 + $0x168] sm:$0xff] %v1750
    %1762 = vst [vmem:[#allocation3 + $0x170] sm:$0xff] %v1751
    %1763 = vst.msk [vmem:[#allocation3 + $0x178] sm:$0xff] %vm93, %v1746
    %v1764 = vld [vmem:[#allocation2] sm:$0xff]
    %v1765 = vld [vmem:[#allocation2 + $0x8] sm:$0xff]
    %v1766 = vld [vmem:[#allocation2 + $0x10] sm:$0xff]
    %v1767 = vld [vmem:[#allocation2 + $0x18] sm:$0xff]
    %v1768 = vld [vmem:[#allocation2 + $0x20] sm:$0xff]
    %v1769 = vld [vmem:[#allocation2 + $0x28] sm:$0xff]
    %1776 = vrot.lane.b32.xlu0 %v1764, 77
    %v1777 = vpop.permute.xlu0 %1776
    %1778 = vrot.lane.b32.xlu0 %v1765, 77
    %v1779 = vpop.permute.xlu0 %1778
    %1780 = vrot.lane.b32.xlu0 %v1766, 77
    %v1781 = vpop.permute.xlu0 %1780
    %1782 = vrot.lane.b32.xlu0 %v1767, 77
    %v1783 = vpop.permute.xlu0 %1782
    %1784 = vrot.lane.b32.xlu0 %v1768, 77
    %v1785 = vpop.permute.xlu0 %1784
    %1786 = vrot.lane.b32.xlu0 %v1769, 77
    %v1787 = vpop.permute.xlu0 %1786
    %v1788 = vsel %vm413, %v1777, %v1779
    %v1789 = vsel %vm413, %v1779, %v1781
    %v1790 = vsel %vm413, %v1781, %v1783
    %v1791 = vsel %vm413, %v1783, %v1785
    %v1792 = vsel %vm413, %v1785, %v1787
    %1799 = vst [vmem:[#allocation3 + $0x180] sm:$0xff] %v1788
    %1800 = vst [vmem:[#allocation3 + $0x188] sm:$0xff] %v1789
    %1801 = vst [vmem:[#allocation3 + $0x190] sm:$0xff] %v1790
    %1802 = vst [vmem:[#allocation3 + $0x198] sm:$0xff] %v1791
    %1803 = vst [vmem:[#allocation3 + $0x1a0] sm:$0xff] %v1792
    %1804 = vst.msk [vmem:[#allocation3 + $0x1a8] sm:$0xff] %vm93, %v1787
    %s1805 = scalar_lea.vmem [#allocation4], 16
    %v1806 = vld [vmem:[%s1805] sm:$0xff]
    %v1807 = vld [vmem:[#allocation3] sm:$0xff]
    %v1808 = vld [vmem:[#allocation3 + $0x8] sm:$0xff]
    %v1809 = vld [vmem:[#allocation3 + $0x10] sm:$0xff]
    %v1810 = vld [vmem:[#allocation3 + $0x18] sm:$0xff]
    %v1811 = vld [vmem:[#allocation3 + $0x20] sm:$0xff]
    %v1812 = vld [vmem:[#allocation3 + $0x28] sm:$0xff]
    %v1813 = vld [vmem:[#allocation3 + $0x30] sm:$0xff]
    %v1814 = vld [vmem:[#allocation3 + $0x38] sm:$0xff]
    %v1815 = vld [vmem:[#allocation3 + $0x40] sm:$0xff]
    %v1816 = vld [vmem:[#allocation3 + $0x48] sm:$0xff]
    %v1817 = vld [vmem:[#allocation3 + $0x50] sm:$0xff]
    %v1818 = vld [vmem:[#allocation3 + $0x58] sm:$0xff]
    %v1819 = vld [vmem:[#allocation3 + $0x60] sm:$0xff]
    %v1820 = vld [vmem:[#allocation3 + $0x68] sm:$0xff]
    %v1821 = vld [vmem:[#allocation3 + $0x70] sm:$0xff]
    %v1822 = vld [vmem:[#allocation3 + $0x78] sm:$0xff]
    %v1823 = vld [vmem:[#allocation3 + $0x80] sm:$0xff]
    %v1824 = vld [vmem:[#allocation3 + $0x88] sm:$0xff]
    %v1825 = vld [vmem:[#allocation3 + $0x90] sm:$0xff]
    %v1826 = vld [vmem:[#allocation3 + $0x98] sm:$0xff]
    %v1827 = vld [vmem:[#allocation3 + $0xa0] sm:$0xff]
    %v1828 = vld [vmem:[#allocation3 + $0xa8] sm:$0xff]
    %v1829 = vld [vmem:[#allocation3 + $0xb0] sm:$0xff]
    %v1830 = vld [vmem:[#allocation3 + $0xb8] sm:$0xff]
    %v1831 = vld [vmem:[#allocation3 + $0xc0] sm:$0xff]
    %v1832 = vld [vmem:[#allocation3 + $0xc8] sm:$0xff]
    %v1833 = vld [vmem:[#allocation3 + $0xd0] sm:$0xff]
    %v1834 = vld [vmem:[#allocation3 + $0xd8] sm:$0xff]
    %v1835 = vld [vmem:[#allocation3 + $0xe0] sm:$0xff]
    %v1836 = vld [vmem:[#allocation3 + $0xe8] sm:$0xff]
    %v1837 = vld [vmem:[#allocation3 + $0xf0] sm:$0xff]
    %v1838 = vld [vmem:[#allocation3 + $0xf8] sm:$0xff]
    %v1839 = vld [vmem:[#allocation3 + $0x100] sm:$0xff]
    %v1840 = vld [vmem:[#allocation3 + $0x108] sm:$0xff]
    %v1841 = vld [vmem:[#allocation3 + $0x110] sm:$0xff]
    %v1842 = vld [vmem:[#allocation3 + $0x118] sm:$0xff]
    %v1843 = vld [vmem:[#allocation3 + $0x120] sm:$0xff]
    %v1844 = vld [vmem:[#allocation3 + $0x128] sm:$0xff]
    %v1845 = vld [vmem:[#allocation3 + $0x130] sm:$0xff]
    %v1846 = vld [vmem:[#allocation3 + $0x138] sm:$0xff]
    %v1847 = vld [vmem:[#allocation3 + $0x140] sm:$0xff]
    %v1848 = vld [vmem:[#allocation3 + $0x148] sm:$0xff]
    %v1849 = vld [vmem:[#allocation3 + $0x150] sm:$0xff]
    %v1850 = vld [vmem:[#allocation3 + $0x158] sm:$0xff]
    %v1851 = vld [vmem:[#allocation3 + $0x160] sm:$0xff]
    %v1852 = vld [vmem:[#allocation3 + $0x168] sm:$0xff]
    %v1853 = vld [vmem:[#allocation3 + $0x170] sm:$0xff]
    %v1854 = vld [vmem:[#allocation3 + $0x178] sm:$0xff]
    %v1855 = vld [vmem:[#allocation3 + $0x180] sm:$0xff]
    %v1856 = vld [vmem:[#allocation3 + $0x188] sm:$0xff]
    %v1857 = vld [vmem:[#allocation3 + $0x190] sm:$0xff]
    %v1858 = vld [vmem:[#allocation3 + $0x198] sm:$0xff]
    %v1859 = vld [vmem:[#allocation3 + $0x1a0] sm:$0xff]
    %v1860 = vld [vmem:[#allocation3 + $0x1a8] sm:$0xff]
    %v1862 = vsel %vm486, %v1806, 0
    %1864 = vmatpush.msra.mxu0 0.0
    %1865 = vmatpush.msra.mxu0 0.0
    %1866 = vmatpush.msra.mxu0 0.0
    %1867 = vmatpush.msra.mxu0 0.0
    %1868 = vmatpush.msra.mxu0 0.0
    %1869 = vmatpush.msra.mxu0 0.0
    %1870 = vmatpush.msra.mxu0 0.0
    %1871 = vmatpush.msra.mxu0 %v1855
    %1872 = vmatpush.msra.mxu0 %v1849
    %1873 = vmatpush.msra.mxu0 %v1843
    %1874 = vmatpush.msra.mxu0 %v1837
    %1875 = vmatpush.msra.mxu0 %v1831
    %1876 = vmatpush.msra.mxu0 %v1825
    %1877 = vmatpush.msra.mxu0 %v1819
    %1878 = vmatpush.msra.mxu0 %v1813
    %1879 = vmatpush.msra.mxu0 %v1807
    %1880 = vmatmul.f32.gmra.mxu0 %v1862
    %v1881 = vpop.f32.mrf.mxu0
    %v1882 = vadd.f32 0.0, %v1881
    %1883 = vdwg.mxu0
    %1884 = vmatpush.msra.mxu0 0.0
    %1885 = vmatpush.msra.mxu0 0.0
    %1886 = vmatpush.msra.mxu0 0.0
    %1887 = vmatpush.msra.mxu0 0.0
    %1888 = vmatpush.msra.mxu0 0.0
    %1889 = vmatpush.msra.mxu0 0.0
    %1890 = vmatpush.msra.mxu0 0.0
    %1891 = vmatpush.msra.mxu0 %v1856
    %1892 = vmatpush.msra.mxu0 %v1850
    %1893 = vmatpush.msra.mxu0 %v1844
    %1894 = vmatpush.msra.mxu0 %v1838
    %1895 = vmatpush.msra.mxu0 %v1832
    %1896 = vmatpush.msra.mxu0 %v1826
    %1897 = vmatpush.msra.mxu0 %v1820
    %1898 = vmatpush.msra.mxu0 %v1814
    %1899 = vmatpush.msra.mxu0 %v1808
    %1900 = vmatmul.f32.gmra.mxu0 %v1862
    %v1901 = vpop.f32.mrf.mxu0
    %v1902 = vadd.f32 0.0, %v1901
    %1903 = vdwg.mxu0
    %1904 = vmatpush.msra.mxu0 0.0
    %1905 = vmatpush.msra.mxu0 0.0
    %1906 = vmatpush.msra.mxu0 0.0
    %1907 = vmatpush.msra.mxu0 0.0
    %1908 = vmatpush.msra.mxu0 0.0
    %1909 = vmatpush.msra.mxu0 0.0
    %1910 = vmatpush.msra.mxu0 0.0
    %1911 = vmatpush.msra.mxu0 %v1857
    %1912 = vmatpush.msra.mxu0 %v1851
    %1913 = vmatpush.msra.mxu0 %v1845
    %1914 = vmatpush.msra.mxu0 %v1839
    %1915 = vmatpush.msra.mxu0 %v1833
    %1916 = vmatpush.msra.mxu0 %v1827
    %1917 = vmatpush.msra.mxu0 %v1821
    %1918 = vmatpush.msra.mxu0 %v1815
    %1919 = vmatpush.msra.mxu0 %v1809
    %1920 = vmatmul.f32.gmra.mxu0 %v1862
    %v1921 = vpop.f32.mrf.mxu0
    %v1922 = vadd.f32 0.0, %v1921
    %1923 = vdwg.mxu0
    %1924 = vmatpush.msra.mxu0 0.0
    %1925 = vmatpush.msra.mxu0 0.0
    %1926 = vmatpush.msra.mxu0 0.0
    %1927 = vmatpush.msra.mxu0 0.0
    %1928 = vmatpush.msra.mxu0 0.0
    %1929 = vmatpush.msra.mxu0 0.0
    %1930 = vmatpush.msra.mxu0 0.0
    %1931 = vmatpush.msra.mxu0 %v1858
    %1932 = vmatpush.msra.mxu0 %v1852
    %1933 = vmatpush.msra.mxu0 %v1846
    %1934 = vmatpush.msra.mxu0 %v1840
    %1935 = vmatpush.msra.mxu0 %v1834
    %1936 = vmatpush.msra.mxu0 %v1828
    %1937 = vmatpush.msra.mxu0 %v1822
    %1938 = vmatpush.msra.mxu0 %v1816
    %1939 = vmatpush.msra.mxu0 %v1810
    %1940 = vmatmul.f32.gmra.mxu0 %v1862
    %v1941 = vpop.f32.mrf.mxu0
    %v1942 = vadd.f32 0.0, %v1941
    %1943 = vdwg.mxu0
    %1944 = vmatpush.msra.mxu0 0.0
    %1945 = vmatpush.msra.mxu0 0.0
    %1946 = vmatpush.msra.mxu0 0.0
    %1947 = vmatpush.msra.mxu0 0.0
    %1948 = vmatpush.msra.mxu0 0.0
    %1949 = vmatpush.msra.mxu0 0.0
    %1950 = vmatpush.msra.mxu0 0.0
    %1951 = vmatpush.msra.mxu0 %v1859
    %1952 = vmatpush.msra.mxu0 %v1853
    %1953 = vmatpush.msra.mxu0 %v1847
    %1954 = vmatpush.msra.mxu0 %v1841
    %1955 = vmatpush.msra.mxu0 %v1835
    %1956 = vmatpush.msra.mxu0 %v1829
    %1957 = vmatpush.msra.mxu0 %v1823
    %1958 = vmatpush.msra.mxu0 %v1817
    %1959 = vmatpush.msra.mxu0 %v1811
    %1960 = vmatmul.f32.gmra.mxu0 %v1862
    %v1961 = vpop.f32.mrf.mxu0
    %v1962 = vadd.f32 0.0, %v1961
    %1963 = vdwg.mxu0
    %1964 = vmatpush.msra.mxu0 0.0
    %1965 = vmatpush.msra.mxu0 0.0
    %1966 = vmatpush.msra.mxu0 0.0
    %1967 = vmatpush.msra.mxu0 0.0
    %1968 = vmatpush.msra.mxu0 0.0
    %1969 = vmatpush.msra.mxu0 0.0
    %1970 = vmatpush.msra.mxu0 0.0
    %1971 = vmatpush.msra.mxu0 %v1860
    %1972 = vmatpush.msra.mxu0 %v1854
    %1973 = vmatpush.msra.mxu0 %v1848
    %1974 = vmatpush.msra.mxu0 %v1842
    %1975 = vmatpush.msra.mxu0 %v1836
    %1976 = vmatpush.msra.mxu0 %v1830
    %1977 = vmatpush.msra.mxu0 %v1824
    %1978 = vmatpush.msra.mxu0 %v1818
    %1979 = vmatpush.msra.mxu0 %v1812
    %1980 = vmatmul.f32.gmra.mxu0 %v1862
    %v1981 = vpop.f32.mrf.mxu0
    %v1982 = vadd.f32 0.0, %v1981
    %1983 = vdwg.mxu0
    %v1984 = vmul.f32 %v1882, %v611
    %v1985 = vmul.f32 %v1902, %v612
    %v1986 = vmul.f32 %v1922, %v613
    %v1987 = vmul.f32 %v1942, %v614
    %v1988 = vmul.f32 %v1962, %v615
    %v1989 = vmul.f32 %v1982, %v616
    %v1990 = vadd.f32 %v1984, %v1985
    %v1991 = vadd.f32 %v1990, %v1986
    %v1992 = vadd.f32 %v1991, %v1987
    %v1993 = vadd.f32 %v1992, %v1988
    %v1994 = vsel %vm93, %v1989, 0.0
    %v1995 = vadd.f32 %v1993, %v1994
    %1996 = vadd.xlane.f32.xlu0 %v1995
    %v1997 = vpop.xlane.xlu0 %1996
    %v1998 = vmul.f32 %v1997, 0.001953125
    %v1999 = vsub.f32 %v1882, %v1998
    %v2000 = vsub.f32 %v1902, %v1998
    %v2001 = vsub.f32 %v1922, %v1998
    %v2002 = vsub.f32 %v1942, %v1998
    %v2003 = vsub.f32 %v1962, %v1998
    %v2004 = vsub.f32 %v1982, %v1998
    %v2005 = vmul.f32 %v1999, %v611
    %v2006 = vmul.f32 %v2000, %v612
    %v2007 = vmul.f32 %v2001, %v613
    %v2008 = vmul.f32 %v2002, %v614
    %v2009 = vmul.f32 %v2003, %v615
    %v2010 = vmul.f32 %v2004, %v616
    %v2011 = vmul.f32 %v2005, %v2005
    %v2012 = vmul.f32 %v2006, %v2006
    %v2013 = vmul.f32 %v2007, %v2007
    %v2014 = vmul.f32 %v2008, %v2008
    %v2015 = vmul.f32 %v2009, %v2009
    %v2016 = vmul.f32 %v2010, %v2010
    %v2017 = vadd.f32 %v2011, %v2012
    %v2018 = vadd.f32 %v2017, %v2013
    %v2019 = vadd.f32 %v2018, %v2014
    %v2020 = vadd.f32 %v2019, %v2015
    %v2021 = vsel %vm93, %v2016, 0.0
    %v2022 = vadd.f32 %v2020, %v2021
    %2023 = vadd.xlane.f32.xlu0 %v2022
    %v2024 = vpop.xlane.xlu0 %2023
    %v2025 = vmul.f32 %v2024, 0.001953125
    %v2026 = vadd.f32 %v2025, 1e-05
    %v2027 = vrsqrt.pop %v2026
    %v2028 = vmul.f32 %v2027, %v2026
    %v2029 = vmul.f32 %v2028, %v2027
    %v2030 = vmul.f32 0.5, %v2029
    %v2031 = vsub.f32 1.5, %v2030
    %v2032 = vmul.f32 %v2027, %v2031
    %vm2033 = vweird.f32 %v2026
    %vm2034 = vweird.f32 %v2027
    %vm2035 = vmor %vm2033, %vm2034
    %v2036 = vsel %vm2035, %v2027, %v2032
    %v2037 = vmul.f32 %v40, %v2036
    %v2038 = vmul.f32 %v1998, %v2037
    %v2039 = vsub.f32 %v44, %v2038
    %2041 = vset.pattern.permute.xlu0 0
    %2042 = vperm.xlu0 %2041, %v2037
    %v2043 = vpop.permute.xlu0 %2042
    %v2045 = vmul.f32 %v1882, %v2043
    %v2046 = vmul.f32 %v1902, %v2043
    %v2047 = vmul.f32 %v1922, %v2043
    %v2048 = vmul.f32 %v1942, %v2043
    %v2049 = vmul.f32 %v1962, %v2043
    %v2050 = vmul.f32 %v1982, %v2043
    %2052 = vset.pattern.permute.xlu0 0
    %2053 = vperm.xlu0 %2052, %v2039
    %v2054 = vpop.permute.xlu0 %2053
    %v2056 = vadd.f32 %v2045, %v2054
    %v2057 = vadd.f32 %v2046, %v2054
    %v2058 = vadd.f32 %v2047, %v2054
    %v2059 = vadd.f32 %v2048, %v2054
    %v2060 = vadd.f32 %v2049, %v2054
    %v2061 = vadd.f32 %v2050, %v2054
    %v2062 = vmul.f32 %v2056, 0.01
    %v2063 = vmul.f32 %v2057, 0.01
    %v2064 = vmul.f32 %v2058, 0.01
    %v2065 = vmul.f32 %v2059, 0.01
    %v2066 = vmul.f32 %v2060, 0.01
    %v2067 = vmul.f32 %v2061, 0.01
    %v2068 = vmax.f32 %v2056, %v2062
    %v2069 = vmax.f32 %v2057, %v2063
    %v2070 = vmax.f32 %v2058, %v2064
    %v2071 = vmax.f32 %v2059, %v2065
    %v2072 = vmax.f32 %v2060, %v2066
    %v2073 = vmax.f32 %v2061, %v2067
    %v2074 = vmul.f32 %v2068, %v611
    %v2075 = vmul.f32 %v2069, %v612
    %v2076 = vmul.f32 %v2070, %v613
    %v2077 = vmul.f32 %v2071, %v614
    %v2078 = vmul.f32 %v2072, %v615
    %v2079 = vmul.f32 %v2073, %v616
    %2086 = vrot.lane.b32.xlu0 %v2074, 32
    %v2087 = vpop.permute.xlu0 %2086
    %2088 = vrot.lane.b32.xlu0 %v2075, 32
    %v2089 = vpop.permute.xlu0 %2088
    %2090 = vrot.lane.b32.xlu0 %v2076, 32
    %v2091 = vpop.permute.xlu0 %2090
    %2092 = vrot.lane.b32.xlu0 %v2077, 32
    %v2093 = vpop.permute.xlu0 %2092
    %2094 = vrot.lane.b32.xlu0 %v2078, 32
    %v2095 = vpop.permute.xlu0 %2094
    %2096 = vrot.lane.b32.xlu0 %v2079, 32
    %v2097 = vpop.permute.xlu0 %2096
    %v2098 = vsel %vm737, %v2087, %v2089
    %v2099 = vsel %vm737, %v2089, %v2091
    %v2100 = vsel %vm737, %v2091, %v2093
    %v2101 = vsel %vm737, %v2093, %v2095
    %v2102 = vsel %vm737, %v2095, %v2097
    %2109 = vst.msk [vmem:[#allocation2] sm:$0xff] %vm749, %v2087
    %2110 = vst [vmem:[#allocation2 + $0x8] sm:$0xff] %v2098
    %2111 = vst [vmem:[#allocation2 + $0x10] sm:$0xff] %v2099
    %2112 = vst [vmem:[#allocation2 + $0x18] sm:$0xff] %v2100
    %2113 = vst [vmem:[#allocation2 + $0x20] sm:$0xff] %v2101
    %2114 = vst.msk [vmem:[#allocation2 + $0x28] sm:$0xff] %vm755, %v2102
    %v2115 = vld [vmem:[#allocation2] sm:$0xff]
    %v2116 = vld [vmem:[#allocation2 + $0x8] sm:$0xff]
    %v2117 = vld [vmem:[#allocation2 + $0x10] sm:$0xff]
    %v2118 = vld [vmem:[#allocation2 + $0x18] sm:$0xff]
    %v2119 = vld [vmem:[#allocation2 + $0x20] sm:$0xff]
    %v2120 = vld [vmem:[#allocation2 + $0x28] sm:$0xff]
    %2127 = vrot.lane.b32.xlu0 %v2115, 115
    %v2128 = vpop.permute.xlu0 %2127
    %2129 = vrot.lane.b32.xlu0 %v2116, 115
    %v2130 = vpop.permute.xlu0 %2129
    %2131 = vrot.lane.b32.xlu0 %v2117, 115
    %v2132 = vpop.permute.xlu0 %2131
    %2133 = vrot.lane.b32.xlu0 %v2118, 115
    %v2134 = vpop.permute.xlu0 %2133
    %2135 = vrot.lane.b32.xlu0 %v2119, 115
    %v2136 = vpop.permute.xlu0 %2135
    %2137 = vrot.lane.b32.xlu0 %v2120, 115
    %v2138 = vpop.permute.xlu0 %2137
    %v2139 = vsel %vm76, %v2128, %v2130
    %v2140 = vsel %vm76, %v2130, %v2132
    %v2141 = vsel %vm76, %v2132, %v2134
    %v2142 = vsel %vm76, %v2134, %v2136
    %v2143 = vsel %vm76, %v2136, %v2138
    %2150 = vst [vmem:[#allocation3] sm:$0xff] %v2139
    %2151 = vst [vmem:[#allocation3 + $0x8] sm:$0xff] %v2140
    %2152 = vst [vmem:[#allocation3 + $0x10] sm:$0xff] %v2141
    %2153 = vst [vmem:[#allocation3 + $0x18] sm:$0xff] %v2142
    %2154 = vst [vmem:[#allocation3 + $0x20] sm:$0xff] %v2143
    %2155 = vst.msk [vmem:[#allocation3 + $0x28] sm:$0xff] %vm93, %v2138
    %v2156 = vld [vmem:[#allocation2] sm:$0xff]
    %v2157 = vld [vmem:[#allocation2 + $0x8] sm:$0xff]
    %v2158 = vld [vmem:[#allocation2 + $0x10] sm:$0xff]
    %v2159 = vld [vmem:[#allocation2 + $0x18] sm:$0xff]
    %v2160 = vld [vmem:[#allocation2 + $0x20] sm:$0xff]
    %v2161 = vld [vmem:[#allocation2 + $0x28] sm:$0xff]
    %2168 = vrot.lane.b32.xlu0 %v2156, 114
    %v2169 = vpop.permute.xlu0 %2168
    %2170 = vrot.lane.b32.xlu0 %v2157, 114
    %v2171 = vpop.permute.xlu0 %2170
    %2172 = vrot.lane.b32.xlu0 %v2158, 114
    %v2173 = vpop.permute.xlu0 %2172
    %2174 = vrot.lane.b32.xlu0 %v2159, 114
    %v2175 = vpop.permute.xlu0 %2174
    %2176 = vrot.lane.b32.xlu0 %v2160, 114
    %v2177 = vpop.permute.xlu0 %2176
    %2178 = vrot.lane.b32.xlu0 %v2161, 114
    %v2179 = vpop.permute.xlu0 %2178
    %v2180 = vsel %vm119, %v2169, %v2171
    %v2181 = vsel %vm119, %v2171, %v2173
    %v2182 = vsel %vm119, %v2173, %v2175
    %v2183 = vsel %vm119, %v2175, %v2177
    %v2184 = vsel %vm119, %v2177, %v2179
    %2191 = vst [vmem:[#allocation3 + $0x30] sm:$0xff] %v2180
    %2192 = vst [vmem:[#allocation3 + $0x38] sm:$0xff] %v2181
    %2193 = vst [vmem:[#allocation3 + $0x40] sm:$0xff] %v2182
    %2194 = vst [vmem:[#allocation3 + $0x48] sm:$0xff] %v2183
    %2195 = vst [vmem:[#allocation3 + $0x50] sm:$0xff] %v2184
    %2196 = vst.msk [vmem:[#allocation3 + $0x58] sm:$0xff] %vm93, %v2179
    %v2197 = vld [vmem:[#allocation2] sm:$0xff]
    %v2198 = vld [vmem:[#allocation2 + $0x8] sm:$0xff]
    %v2199 = vld [vmem:[#allocation2 + $0x10] sm:$0xff]
    %v2200 = vld [vmem:[#allocation2 + $0x18] sm:$0xff]
    %v2201 = vld [vmem:[#allocation2 + $0x20] sm:$0xff]
    %v2202 = vld [vmem:[#allocation2 + $0x28] sm:$0xff]
    %2209 = vrot.lane.b32.xlu0 %v2197, 113
    %v2210 = vpop.permute.xlu0 %2209
    %2211 = vrot.lane.b32.xlu0 %v2198, 113
    %v2212 = vpop.permute.xlu0 %2211
    %2213 = vrot.lane.b32.xlu0 %v2199, 113
    %v2214 = vpop.permute.xlu0 %2213
    %2215 = vrot.lane.b32.xlu0 %v2200, 113
    %v2216 = vpop.permute.xlu0 %2215
    %2217 = vrot.lane.b32.xlu0 %v2201, 113
    %v2218 = vpop.permute.xlu0 %2217
    %2219 = vrot.lane.b32.xlu0 %v2202, 113
    %v2220 = vpop.permute.xlu0 %2219
    %v2221 = vsel %vm161, %v2210, %v2212
    %v2222 = vsel %vm161, %v2212, %v2214
    %v2223 = vsel %vm161, %v2214, %v2216
    %v2224 = vsel %vm161, %v2216, %v2218
    %v2225 = vsel %vm161, %v2218, %v2220
    %2232 = vst [vmem:[#allocation3 + $0x60] sm:$0xff] %v2221
    %2233 = vst [vmem:[#allocation3 + $0x68] sm:$0xff] %v2222
    %2234 = vst [vmem:[#allocation3 + $0x70] sm:$0xff] %v2223
    %2235 = vst [vmem:[#allocation3 + $0x78] sm:$0xff] %v2224
    %2236 = vst [vmem:[#allocation3 + $0x80] sm:$0xff] %v2225
    %2237 = vst.msk [vmem:[#allocation3 + $0x88] sm:$0xff] %vm93, %v2220
    %v2238 = vld [vmem:[#allocation2] sm:$0xff]
    %v2239 = vld [vmem:[#allocation2 + $0x8] sm:$0xff]
    %v2240 = vld [vmem:[#allocation2 + $0x10] sm:$0xff]
    %v2241 = vld [vmem:[#allocation2 + $0x18] sm:$0xff]
    %v2242 = vld [vmem:[#allocation2 + $0x20] sm:$0xff]
    %v2243 = vld [vmem:[#allocation2 + $0x28] sm:$0xff]
    %2250 = vrot.lane.b32.xlu0 %v2238, 97
    %v2251 = vpop.permute.xlu0 %2250
    %2252 = vrot.lane.b32.xlu0 %v2239, 97
    %v2253 = vpop.permute.xlu0 %2252
    %2254 = vrot.lane.b32.xlu0 %v2240, 97
    %v2255 = vpop.permute.xlu0 %2254
    %2256 = vrot.lane.b32.xlu0 %v2241, 97
    %v2257 = vpop.permute.xlu0 %2256
    %2258 = vrot.lane.b32.xlu0 %v2242, 97
    %v2259 = vpop.permute.xlu0 %2258
    %2260 = vrot.lane.b32.xlu0 %v2243, 97
    %v2261 = vpop.permute.xlu0 %2260
    %v2262 = vsel %vm203, %v2251, %v2253
    %v2263 = vsel %vm203, %v2253, %v2255
    %v2264 = vsel %vm203, %v2255, %v2257
    %v2265 = vsel %vm203, %v2257, %v2259
    %v2266 = vsel %vm203, %v2259, %v2261
    %2273 = vst [vmem:[#allocation3 + $0x90] sm:$0xff] %v2262
    %2274 = vst [vmem:[#allocation3 + $0x98] sm:$0xff] %v2263
    %2275 = vst [vmem:[#allocation3 + $0xa0] sm:$0xff] %v2264
    %2276 = vst [vmem:[#allocation3 + $0xa8] sm:$0xff] %v2265
    %2277 = vst [vmem:[#allocation3 + $0xb0] sm:$0xff] %v2266
    %2278 = vst.msk [vmem:[#allocation3 + $0xb8] sm:$0xff] %vm93, %v2261
    %v2279 = vld [vmem:[#allocation2] sm:$0xff]
    %v2280 = vld [vmem:[#allocation2 + $0x8] sm:$0xff]
    %v2281 = vld [vmem:[#allocation2 + $0x10] sm:$0xff]
    %v2282 = vld [vmem:[#allocation2 + $0x18] sm:$0xff]
    %v2283 = vld [vmem:[#allocation2 + $0x20] sm:$0xff]
    %v2284 = vld [vmem:[#allocation2 + $0x28] sm:$0xff]
    %2291 = vrot.lane.b32.xlu0 %v2279, 96
    %v2292 = vpop.permute.xlu0 %2291
    %2293 = vrot.lane.b32.xlu0 %v2280, 96
    %v2294 = vpop.permute.xlu0 %2293
    %2295 = vrot.lane.b32.xlu0 %v2281, 96
    %v2296 = vpop.permute.xlu0 %2295
    %2297 = vrot.lane.b32.xlu0 %v2282, 96
    %v2298 = vpop.permute.xlu0 %2297
    %2299 = vrot.lane.b32.xlu0 %v2283, 96
    %v2300 = vpop.permute.xlu0 %2299
    %2301 = vrot.lane.b32.xlu0 %v2284, 96
    %v2302 = vpop.permute.xlu0 %2301
    %v2303 = vsel %vm245, %v2292, %v2294
    %v2304 = vsel %vm245, %v2294, %v2296
    %v2305 = vsel %vm245, %v2296, %v2298
    %v2306 = vsel %vm245, %v2298, %v2300
    %v2307 = vsel %vm245, %v2300, %v2302
    %2314 = vst [vmem:[#allocation3 + $0xc0] sm:$0xff] %v2303
    %2315 = vst [vmem:[#allocation3 + $0xc8] sm:$0xff] %v2304
    %2316 = vst [vmem:[#allocation3 + $0xd0] sm:$0xff] %v2305
    %2317 = vst [vmem:[#allocation3 + $0xd8] sm:$0xff] %v2306
    %2318 = vst [vmem:[#allocation3 + $0xe0] sm:$0xff] %v2307
    %2319 = vst.msk [vmem:[#allocation3 + $0xe8] sm:$0xff] %vm93, %v2302
    %v2320 = vld [vmem:[#allocation2] sm:$0xff]
    %v2321 = vld [vmem:[#allocation2 + $0x8] sm:$0xff]
    %v2322 = vld [vmem:[#allocation2 + $0x10] sm:$0xff]
    %v2323 = vld [vmem:[#allocation2 + $0x18] sm:$0xff]
    %v2324 = vld [vmem:[#allocation2 + $0x20] sm:$0xff]
    %v2325 = vld [vmem:[#allocation2 + $0x28] sm:$0xff]
    %2332 = vrot.lane.b32.xlu0 %v2320, 95
    %v2333 = vpop.permute.xlu0 %2332
    %2334 = vrot.lane.b32.xlu0 %v2321, 95
    %v2335 = vpop.permute.xlu0 %2334
    %2336 = vrot.lane.b32.xlu0 %v2322, 95
    %v2337 = vpop.permute.xlu0 %2336
    %2338 = vrot.lane.b32.xlu0 %v2323, 95
    %v2339 = vpop.permute.xlu0 %2338
    %2340 = vrot.lane.b32.xlu0 %v2324, 95
    %v2341 = vpop.permute.xlu0 %2340
    %2342 = vrot.lane.b32.xlu0 %v2325, 95
    %v2343 = vpop.permute.xlu0 %2342
    %v2344 = vsel %vm287, %v2333, %v2335
    %v2345 = vsel %vm287, %v2335, %v2337
    %v2346 = vsel %vm287, %v2337, %v2339
    %v2347 = vsel %vm287, %v2339, %v2341
    %v2348 = vsel %vm287, %v2341, %v2343
    %2355 = vst [vmem:[#allocation3 + $0xf0] sm:$0xff] %v2344
    %2356 = vst [vmem:[#allocation3 + $0xf8] sm:$0xff] %v2345
    %2357 = vst [vmem:[#allocation3 + $0x100] sm:$0xff] %v2346
    %2358 = vst [vmem:[#allocation3 + $0x108] sm:$0xff] %v2347
    %2359 = vst [vmem:[#allocation3 + $0x110] sm:$0xff] %v2348
    %2360 = vst.msk [vmem:[#allocation3 + $0x118] sm:$0xff] %vm93, %v2343
    %v2361 = vld [vmem:[#allocation2] sm:$0xff]
    %v2362 = vld [vmem:[#allocation2 + $0x8] sm:$0xff]
    %v2363 = vld [vmem:[#allocation2 + $0x10] sm:$0xff]
    %v2364 = vld [vmem:[#allocation2 + $0x18] sm:$0xff]
    %v2365 = vld [vmem:[#allocation2 + $0x20] sm:$0xff]
    %v2366 = vld [vmem:[#allocation2 + $0x28] sm:$0xff]
    %2373 = vrot.lane.b32.xlu0 %v2361, 79
    %v2374 = vpop.permute.xlu0 %2373
    %2375 = vrot.lane.b32.xlu0 %v2362, 79
    %v2376 = vpop.permute.xlu0 %2375
    %2377 = vrot.lane.b32.xlu0 %v2363, 79
    %v2378 = vpop.permute.xlu0 %2377
    %2379 = vrot.lane.b32.xlu0 %v2364, 79
    %v2380 = vpop.permute.xlu0 %2379
    %2381 = vrot.lane.b32.xlu0 %v2365, 79
    %v2382 = vpop.permute.xlu0 %2381
    %2383 = vrot.lane.b32.xlu0 %v2366, 79
    %v2384 = vpop.permute.xlu0 %2383
    %v2385 = vsel %vm329, %v2374, %v2376
    %v2386 = vsel %vm329, %v2376, %v2378
    %v2387 = vsel %vm329, %v2378, %v2380
    %v2388 = vsel %vm329, %v2380, %v2382
    %v2389 = vsel %vm329, %v2382, %v2384
    %2396 = vst [vmem:[#allocation3 + $0x120] sm:$0xff] %v2385
    %2397 = vst [vmem:[#allocation3 + $0x128] sm:$0xff] %v2386
    %2398 = vst [vmem:[#allocation3 + $0x130] sm:$0xff] %v2387
    %2399 = vst [vmem:[#allocation3 + $0x138] sm:$0xff] %v2388
    %2400 = vst [vmem:[#allocation3 + $0x140] sm:$0xff] %v2389
    %2401 = vst.msk [vmem:[#allocation3 + $0x148] sm:$0xff] %vm93, %v2384
    %v2402 = vld [vmem:[#allocation2] sm:$0xff]
    %v2403 = vld [vmem:[#allocation2 + $0x8] sm:$0xff]
    %v2404 = vld [vmem:[#allocation2 + $0x10] sm:$0xff]
    %v2405 = vld [vmem:[#allocation2 + $0x18] sm:$0xff]
    %v2406 = vld [vmem:[#allocation2 + $0x20] sm:$0xff]
    %v2407 = vld [vmem:[#allocation2 + $0x28] sm:$0xff]
    %2414 = vrot.lane.b32.xlu0 %v2402, 78
    %v2415 = vpop.permute.xlu0 %2414
    %2416 = vrot.lane.b32.xlu0 %v2403, 78
    %v2417 = vpop.permute.xlu0 %2416
    %2418 = vrot.lane.b32.xlu0 %v2404, 78
    %v2419 = vpop.permute.xlu0 %2418
    %2420 = vrot.lane.b32.xlu0 %v2405, 78
    %v2421 = vpop.permute.xlu0 %2420
    %2422 = vrot.lane.b32.xlu0 %v2406, 78
    %v2423 = vpop.permute.xlu0 %2422
    %2424 = vrot.lane.b32.xlu0 %v2407, 78
    %v2425 = vpop.permute.xlu0 %2424
    %v2426 = vsel %vm371, %v2415, %v2417
    %v2427 = vsel %vm371, %v2417, %v2419
    %v2428 = vsel %vm371, %v2419, %v2421
    %v2429 = vsel %vm371, %v2421, %v2423
    %v2430 = vsel %vm371, %v2423, %v2425
    %2437 = vst [vmem:[#allocation3 + $0x150] sm:$0xff] %v2426
    %2438 = vst [vmem:[#allocation3 + $0x158] sm:$0xff] %v2427
    %2439 = vst [vmem:[#allocation3 + $0x160] sm:$0xff] %v2428
    %2440 = vst [vmem:[#allocation3 + $0x168] sm:$0xff] %v2429
    %2441 = vst [vmem:[#allocation3 + $0x170] sm:$0xff] %v2430
    %2442 = vst.msk [vmem:[#allocation3 + $0x178] sm:$0xff] %vm93, %v2425
    %v2443 = vld [vmem:[#allocation2] sm:$0xff]
    %v2444 = vld [vmem:[#allocation2 + $0x8] sm:$0xff]
    %v2445 = vld [vmem:[#allocation2 + $0x10] sm:$0xff]
    %v2446 = vld [vmem:[#allocation2 + $0x18] sm:$0xff]
    %v2447 = vld [vmem:[#allocation2 + $0x20] sm:$0xff]
    %v2448 = vld [vmem:[#allocation2 + $0x28] sm:$0xff]
    %2455 = vrot.lane.b32.xlu0 %v2443, 77
    %v2456 = vpop.permute.xlu0 %2455
    %2457 = vrot.lane.b32.xlu0 %v2444, 77
    %v2458 = vpop.permute.xlu0 %2457
    %2459 = vrot.lane.b32.xlu0 %v2445, 77
    %v2460 = vpop.permute.xlu0 %2459
    %2461 = vrot.lane.b32.xlu0 %v2446, 77
    %v2462 = vpop.permute.xlu0 %2461
    %2463 = vrot.lane.b32.xlu0 %v2447, 77
    %v2464 = vpop.permute.xlu0 %2463
    %2465 = vrot.lane.b32.xlu0 %v2448, 77
    %v2466 = vpop.permute.xlu0 %2465
    %v2467 = vsel %vm413, %v2456, %v2458
    %v2468 = vsel %vm413, %v2458, %v2460
    %v2469 = vsel %vm413, %v2460, %v2462
    %v2470 = vsel %vm413, %v2462, %v2464
    %v2471 = vsel %vm413, %v2464, %v2466
    %2478 = vst [vmem:[#allocation3 + $0x180] sm:$0xff] %v2467
    %2479 = vst [vmem:[#allocation3 + $0x188] sm:$0xff] %v2468
    %2480 = vst [vmem:[#allocation3 + $0x190] sm:$0xff] %v2469
    %2481 = vst [vmem:[#allocation3 + $0x198] sm:$0xff] %v2470
    %2482 = vst [vmem:[#allocation3 + $0x1a0] sm:$0xff] %v2471
    %2483 = vst.msk [vmem:[#allocation3 + $0x1a8] sm:$0xff] %vm93, %v2466
    %s2484 = scalar_lea.vmem [#allocation4], 24
    %v2485 = vld [vmem:[%s2484] sm:$0xff]
    %v2486 = vld [vmem:[#allocation3] sm:$0xff]
    %v2487 = vld [vmem:[#allocation3 + $0x8] sm:$0xff]
    %v2488 = vld [vmem:[#allocation3 + $0x10] sm:$0xff]
    %v2489 = vld [vmem:[#allocation3 + $0x18] sm:$0xff]
    %v2490 = vld [vmem:[#allocation3 + $0x20] sm:$0xff]
    %v2491 = vld [vmem:[#allocation3 + $0x28] sm:$0xff]
    %v2492 = vld [vmem:[#allocation3 + $0x30] sm:$0xff]
    %v2493 = vld [vmem:[#allocation3 + $0x38] sm:$0xff]
    %v2494 = vld [vmem:[#allocation3 + $0x40] sm:$0xff]
    %v2495 = vld [vmem:[#allocation3 + $0x48] sm:$0xff]
    %v2496 = vld [vmem:[#allocation3 + $0x50] sm:$0xff]
    %v2497 = vld [vmem:[#allocation3 + $0x58] sm:$0xff]
    %v2498 = vld [vmem:[#allocation3 + $0x60] sm:$0xff]
    %v2499 = vld [vmem:[#allocation3 + $0x68] sm:$0xff]
    %v2500 = vld [vmem:[#allocation3 + $0x70] sm:$0xff]
    %v2501 = vld [vmem:[#allocation3 + $0x78] sm:$0xff]
    %v2502 = vld [vmem:[#allocation3 + $0x80] sm:$0xff]
    %v2503 = vld [vmem:[#allocation3 + $0x88] sm:$0xff]
    %v2504 = vld [vmem:[#allocation3 + $0x90] sm:$0xff]
    %v2505 = vld [vmem:[#allocation3 + $0x98] sm:$0xff]
    %v2506 = vld [vmem:[#allocation3 + $0xa0] sm:$0xff]
    %v2507 = vld [vmem:[#allocation3 + $0xa8] sm:$0xff]
    %v2508 = vld [vmem:[#allocation3 + $0xb0] sm:$0xff]
    %v2509 = vld [vmem:[#allocation3 + $0xb8] sm:$0xff]
    %v2510 = vld [vmem:[#allocation3 + $0xc0] sm:$0xff]
    %v2511 = vld [vmem:[#allocation3 + $0xc8] sm:$0xff]
    %v2512 = vld [vmem:[#allocation3 + $0xd0] sm:$0xff]
    %v2513 = vld [vmem:[#allocation3 + $0xd8] sm:$0xff]
    %v2514 = vld [vmem:[#allocation3 + $0xe0] sm:$0xff]
    %v2515 = vld [vmem:[#allocation3 + $0xe8] sm:$0xff]
    %v2516 = vld [vmem:[#allocation3 + $0xf0] sm:$0xff]
    %v2517 = vld [vmem:[#allocation3 + $0xf8] sm:$0xff]
    %v2518 = vld [vmem:[#allocation3 + $0x100] sm:$0xff]
    %v2519 = vld [vmem:[#allocation3 + $0x108] sm:$0xff]
    %v2520 = vld [vmem:[#allocation3 + $0x110] sm:$0xff]
    %v2521 = vld [vmem:[#allocation3 + $0x118] sm:$0xff]
    %v2522 = vld [vmem:[#allocation3 + $0x120] sm:$0xff]
    %v2523 = vld [vmem:[#allocation3 + $0x128] sm:$0xff]
    %v2524 = vld [vmem:[#allocation3 + $0x130] sm:$0xff]
    %v2525 = vld [vmem:[#allocation3 + $0x138] sm:$0xff]
    %v2526 = vld [vmem:[#allocation3 + $0x140] sm:$0xff]
    %v2527 = vld [vmem:[#allocation3 + $0x148] sm:$0xff]
    %v2528 = vld [vmem:[#allocation3 + $0x150] sm:$0xff]
    %v2529 = vld [vmem:[#allocation3 + $0x158] sm:$0xff]
    %v2530 = vld [vmem:[#allocation3 + $0x160] sm:$0xff]
    %v2531 = vld [vmem:[#allocation3 + $0x168] sm:$0xff]
    %v2532 = vld [vmem:[#allocation3 + $0x170] sm:$0xff]
    %v2533 = vld [vmem:[#allocation3 + $0x178] sm:$0xff]
    %v2534 = vld [vmem:[#allocation3 + $0x180] sm:$0xff]
    %v2535 = vld [vmem:[#allocation3 + $0x188] sm:$0xff]
    %v2536 = vld [vmem:[#allocation3 + $0x190] sm:$0xff]
    %v2537 = vld [vmem:[#allocation3 + $0x198] sm:$0xff]
    %v2538 = vld [vmem:[#allocation3 + $0x1a0] sm:$0xff]
    %v2539 = vld [vmem:[#allocation3 + $0x1a8] sm:$0xff]
    %v2541 = vsel %vm486, %v2485, 0
    %2543 = vmatpush.msra.mxu0 0.0
    %2544 = vmatpush.msra.mxu0 0.0
    %2545 = vmatpush.msra.mxu0 0.0
    %2546 = vmatpush.msra.mxu0 0.0
    %2547 = vmatpush.msra.mxu0 0.0
    %2548 = vmatpush.msra.mxu0 0.0
    %2549 = vmatpush.msra.mxu0 0.0
    %2550 = vmatpush.msra.mxu0 %v2534
    %2551 = vmatpush.msra.mxu0 %v2528
    %2552 = vmatpush.msra.mxu0 %v2522
    %2553 = vmatpush.msra.mxu0 %v2516
    %2554 = vmatpush.msra.mxu0 %v2510
    %2555 = vmatpush.msra.mxu0 %v2504
    %2556 = vmatpush.msra.mxu0 %v2498
    %2557 = vmatpush.msra.mxu0 %v2492
    %2558 = vmatpush.msra.mxu0 %v2486
    %2559 = vmatmul.f32.gmra.mxu0 %v2541
    %v2560 = vpop.f32.mrf.mxu0
    %v2561 = vadd.f32 0.0, %v2560
    %2562 = vdwg.mxu0
    %2563 = vmatpush.msra.mxu0 0.0
    %2564 = vmatpush.msra.mxu0 0.0
    %2565 = vmatpush.msra.mxu0 0.0
    %2566 = vmatpush.msra.mxu0 0.0
    %2567 = vmatpush.msra.mxu0 0.0
    %2568 = vmatpush.msra.mxu0 0.0
    %2569 = vmatpush.msra.mxu0 0.0
    %2570 = vmatpush.msra.mxu0 %v2535
    %2571 = vmatpush.msra.mxu0 %v2529
    %2572 = vmatpush.msra.mxu0 %v2523
    %2573 = vmatpush.msra.mxu0 %v2517
    %2574 = vmatpush.msra.mxu0 %v2511
    %2575 = vmatpush.msra.mxu0 %v2505
    %2576 = vmatpush.msra.mxu0 %v2499
    %2577 = vmatpush.msra.mxu0 %v2493
    %2578 = vmatpush.msra.mxu0 %v2487
    %2579 = vmatmul.f32.gmra.mxu0 %v2541
    %v2580 = vpop.f32.mrf.mxu0
    %v2581 = vadd.f32 0.0, %v2580
    %2582 = vdwg.mxu0
    %2583 = vmatpush.msra.mxu0 0.0
    %2584 = vmatpush.msra.mxu0 0.0
    %2585 = vmatpush.msra.mxu0 0.0
    %2586 = vmatpush.msra.mxu0 0.0
    %2587 = vmatpush.msra.mxu0 0.0
    %2588 = vmatpush.msra.mxu0 0.0
    %2589 = vmatpush.msra.mxu0 0.0
    %2590 = vmatpush.msra.mxu0 %v2536
    %2591 = vmatpush.msra.mxu0 %v2530
    %2592 = vmatpush.msra.mxu0 %v2524
    %2593 = vmatpush.msra.mxu0 %v2518
    %2594 = vmatpush.msra.mxu0 %v2512
    %2595 = vmatpush.msra.mxu0 %v2506
    %2596 = vmatpush.msra.mxu0 %v2500
    %2597 = vmatpush.msra.mxu0 %v2494
    %2598 = vmatpush.msra.mxu0 %v2488
    %2599 = vmatmul.f32.gmra.mxu0 %v2541
    %v2600 = vpop.f32.mrf.mxu0
    %v2601 = vadd.f32 0.0, %v2600
    %2602 = vdwg.mxu0
    %2603 = vmatpush.msra.mxu0 0.0
    %2604 = vmatpush.msra.mxu0 0.0
    %2605 = vmatpush.msra.mxu0 0.0
    %2606 = vmatpush.msra.mxu0 0.0
    %2607 = vmatpush.msra.mxu0 0.0
    %2608 = vmatpush.msra.mxu0 0.0
    %2609 = vmatpush.msra.mxu0 0.0
    %2610 = vmatpush.msra.mxu0 %v2537
    %2611 = vmatpush.msra.mxu0 %v2531
    %2612 = vmatpush.msra.mxu0 %v2525
    %2613 = vmatpush.msra.mxu0 %v2519
    %2614 = vmatpush.msra.mxu0 %v2513
    %2615 = vmatpush.msra.mxu0 %v2507
    %2616 = vmatpush.msra.mxu0 %v2501
    %2617 = vmatpush.msra.mxu0 %v2495
    %2618 = vmatpush.msra.mxu0 %v2489
    %2619 = vmatmul.f32.gmra.mxu0 %v2541
    %v2620 = vpop.f32.mrf.mxu0
    %v2621 = vadd.f32 0.0, %v2620
    %2622 = vdwg.mxu0
    %2623 = vmatpush.msra.mxu0 0.0
    %2624 = vmatpush.msra.mxu0 0.0
    %2625 = vmatpush.msra.mxu0 0.0
    %2626 = vmatpush.msra.mxu0 0.0
    %2627 = vmatpush.msra.mxu0 0.0
    %2628 = vmatpush.msra.mxu0 0.0
    %2629 = vmatpush.msra.mxu0 0.0
    %2630 = vmatpush.msra.mxu0 %v2538
    %2631 = vmatpush.msra.mxu0 %v2532
    %2632 = vmatpush.msra.mxu0 %v2526
    %2633 = vmatpush.msra.mxu0 %v2520
    %2634 = vmatpush.msra.mxu0 %v2514
    %2635 = vmatpush.msra.mxu0 %v2508
    %2636 = vmatpush.msra.mxu0 %v2502
    %2637 = vmatpush.msra.mxu0 %v2496
    %2638 = vmatpush.msra.mxu0 %v2490
    %2639 = vmatmul.f32.gmra.mxu0 %v2541
    %v2640 = vpop.f32.mrf.mxu0
    %v2641 = vadd.f32 0.0, %v2640
    %2642 = vdwg.mxu0
    %2643 = vmatpush.msra.mxu0 0.0
    %2644 = vmatpush.msra.mxu0 0.0
    %2645 = vmatpush.msra.mxu0 0.0
    %2646 = vmatpush.msra.mxu0 0.0
    %2647 = vmatpush.msra.mxu0 0.0
    %2648 = vmatpush.msra.mxu0 0.0
    %2649 = vmatpush.msra.mxu0 0.0
    %2650 = vmatpush.msra.mxu0 %v2539
    %2651 = vmatpush.msra.mxu0 %v2533
    %2652 = vmatpush.msra.mxu0 %v2527
    %2653 = vmatpush.msra.mxu0 %v2521
    %2654 = vmatpush.msra.mxu0 %v2515
    %2655 = vmatpush.msra.mxu0 %v2509
    %2656 = vmatpush.msra.mxu0 %v2503
    %2657 = vmatpush.msra.mxu0 %v2497
    %2658 = vmatpush.msra.mxu0 %v2491
    %2659 = vmatmul.f32.gmra.mxu0 %v2541
    %v2660 = vpop.f32.mrf.mxu0
    %v2661 = vadd.f32 0.0, %v2660
    %2662 = vdwg.mxu0
    %v2663 = vmul.f32 %v2561, %v611
    %v2664 = vmul.f32 %v2581, %v612
    %v2665 = vmul.f32 %v2601, %v613
    %v2666 = vmul.f32 %v2621, %v614
    %v2667 = vmul.f32 %v2641, %v615
    %v2668 = vmul.f32 %v2661, %v616
    %v2669 = vadd.f32 %v2663, %v2664
    %v2670 = vadd.f32 %v2669, %v2665
    %v2671 = vadd.f32 %v2670, %v2666
    %v2672 = vadd.f32 %v2671, %v2667
    %v2673 = vsel %vm93, %v2668, 0.0
    %v2674 = vadd.f32 %v2672, %v2673
    %2675 = vadd.xlane.f32.xlu0 %v2674
    %v2676 = vpop.xlane.xlu0 %2675
    %v2677 = vmul.f32 %v2676, 0.001953125
    %v2678 = vsub.f32 %v2561, %v2677
    %v2679 = vsub.f32 %v2581, %v2677
    %v2680 = vsub.f32 %v2601, %v2677
    %v2681 = vsub.f32 %v2621, %v2677
    %v2682 = vsub.f32 %v2641, %v2677
    %v2683 = vsub.f32 %v2661, %v2677
    %v2684 = vmul.f32 %v2678, %v611
    %v2685 = vmul.f32 %v2679, %v612
    %v2686 = vmul.f32 %v2680, %v613
    %v2687 = vmul.f32 %v2681, %v614
    %v2688 = vmul.f32 %v2682, %v615
    %v2689 = vmul.f32 %v2683, %v616
    %v2690 = vmul.f32 %v2684, %v2684
    %v2691 = vmul.f32 %v2685, %v2685
    %v2692 = vmul.f32 %v2686, %v2686
    %v2693 = vmul.f32 %v2687, %v2687
    %v2694 = vmul.f32 %v2688, %v2688
    %v2695 = vmul.f32 %v2689, %v2689
    %v2696 = vadd.f32 %v2690, %v2691
    %v2697 = vadd.f32 %v2696, %v2692
    %v2698 = vadd.f32 %v2697, %v2693
    %v2699 = vadd.f32 %v2698, %v2694
    %v2700 = vsel %vm93, %v2695, 0.0
    %v2701 = vadd.f32 %v2699, %v2700
    %2702 = vadd.xlane.f32.xlu0 %v2701
    %v2703 = vpop.xlane.xlu0 %2702
    %v2704 = vmul.f32 %v2703, 0.001953125
    %v2705 = vadd.f32 %v2704, 1e-05
    %v2706 = vrsqrt.pop %v2705
    %v2707 = vmul.f32 %v2706, %v2705
    %v2708 = vmul.f32 %v2707, %v2706
    %v2709 = vmul.f32 0.5, %v2708
    %v2710 = vsub.f32 1.5, %v2709
    %v2711 = vmul.f32 %v2706, %v2710
    %vm2712 = vweird.f32 %v2705
    %vm2713 = vweird.f32 %v2706
    %vm2714 = vmor %vm2712, %vm2713
    %v2715 = vsel %vm2714, %v2706, %v2711
    %v2716 = vmul.f32 %v41, %v2715
    %v2717 = vmul.f32 %v2677, %v2716
    %v2718 = vsub.f32 %v45, %v2717
    %2720 = vset.pattern.permute.xlu0 0
    %2721 = vperm.xlu0 %2720, %v2716
    %v2722 = vpop.permute.xlu0 %2721
    %v2724 = vmul.f32 %v2561, %v2722
    %v2725 = vmul.f32 %v2581, %v2722
    %v2726 = vmul.f32 %v2601, %v2722
    %v2727 = vmul.f32 %v2621, %v2722
    %v2728 = vmul.f32 %v2641, %v2722
    %v2729 = vmul.f32 %v2661, %v2722
    %2731 = vset.pattern.permute.xlu0 0
    %2732 = vperm.xlu0 %2731, %v2718
    %v2733 = vpop.permute.xlu0 %2732
    %v2735 = vadd.f32 %v2724, %v2733
    %v2736 = vadd.f32 %v2725, %v2733
    %v2737 = vadd.f32 %v2726, %v2733
    %v2738 = vadd.f32 %v2727, %v2733
    %v2739 = vadd.f32 %v2728, %v2733
    %v2740 = vadd.f32 %v2729, %v2733
    %v2741 = vmul.f32 %v2735, %v611
    %v2742 = vmul.f32 %v2736, %v612
    %v2743 = vmul.f32 %v2737, %v613
    %v2744 = vmul.f32 %v2738, %v614
    %v2745 = vmul.f32 %v2739, %v615
    %v2746 = vmul.f32 %v2740, %v616
    %2747 = vst [vmem:[#allocation7] sm:$0xff] %v2741
    %2748 = vst [vmem:[#allocation7 + $0x8] sm:$0xff] %v2742
    %2749 = vst [vmem:[#allocation7 + $0x10] sm:$0xff] %v2743
    %2750 = vst [vmem:[#allocation7 + $0x18] sm:$0xff] %v2744
    %2751 = vst [vmem:[#allocation7 + $0x20] sm:$0xff] %v2745
    %2752 = vst.msk [vmem:[#allocation7 + $0x28] sm:$0xff] %vm93, %v2746
    // Predicated region
    $region26: #{tpu_custom_call.1} parent=1 // pred_check
      _
    $region27: #{tpu_custom_call.1} parent=1 // pred_check_branch
      %2754 = sbr.rel (0) target = $region29
    $region28: #{tpu_custom_call.1} parent=1 // pred_region
      %2756 = vsyncadd [#allocation6], 0
      %s2758 = sshll.u32 [#allocation7], 4
      %s2759 = int_to_ptr.vmem [resolvable:$true] %s2758
      %s2760 = sshll.u32 %s5, 4
      %s2761 = int_to_ptr.hbm [resolvable:$true] %s2760
      %2763 = dma.vmem_to_hbm [thread:$0]  %s2759, 768, %s2761, [#allocation6]
    $region29: #{tpu_custom_call.1} parent=1 // pred_fallthru
      _
    // Predicated region
    $region30: #{tpu_custom_call.1} parent=1 // pred_check
      _
    $region31: #{tpu_custom_call.1} parent=1 // pred_check_branch
      %2765 = sbr.rel (0) target = $region33
    $region32: #{tpu_custom_call.1} parent=1 // pred_region
      %2767 = dma.done [#allocation6], 768
    $region33: #{tpu_custom_call.1} parent=1 // pred_fallthru
      _
    %2768 = vsyncpa [#allocation5], 1
    %2769 = vsyncpa [#allocation6], 1

</llo_original>
